<compile_context>
chip_gen: v7x
topology: tpu7x:2x2x1
jax: 0.10.0
libtpu: 0.0.40
codegen_flags: <defaults>
</compile_context>

<pallas_src>
import functools

import jax
import jax.numpy as jnp
from jax.experimental import pallas as pl
from jax.experimental.pallas import tpu as pltpu


# ----------------------------------------------------------------------------
# Fused stage-5 head kernel: 3 Bottleneck blocks (FrozenBN folded into weights),
# one grid step == one tile of ROIs.  In-kernel layout is (H, W, ROI, C) so the
# lane dim is channels and all 3x3 window shifts are leading-dim slices.
# ----------------------------------------------------------------------------
def _res5_head_kernel(x_ref, *refs):
    (w1a, b1a, w2a, b2a, w3a, b3a, wda, bda,      # block 1 (+ 1x1 downsample)
     w1b, b1b, w2b, b2b, w3b, b3b,                # block 2
     w1c, b1c, w2c, b2c, w3c, b3c,                # block 3
     o_ref, pad_ref) = refs

    H, W, TR, Cin = x_ref.shape
    Cb = w1a.shape[1]
    Cout = w3a.shape[1]
    M = H * W * TR

    # Zero only the 1-px halo of the conv2 scratch; the interior is fully
    # overwritten by every block.  Done every grid step (cheap) rather than only
    # at program_id==0 so each core's private scratch is initialised even when
    # the "parallel" ROI axis is split across TensorCores.
    zrow = jnp.zeros((1, W + 2, TR, Cb), pad_ref.dtype)
    zcol = jnp.zeros((H, 1, TR, Cb), pad_ref.dtype)
    pad_ref[0:1] = zrow
    pad_ref[H + 1:H + 2] = zrow
    pad_ref[1:H + 1, 0:1] = zcol
    pad_ref[1:H + 1, W + 1:W + 2] = zcol

    def bottleneck(x2d, w1, b1, w2, b2, w3, b3, wd=None, bd=None):
        """x2d: (M, C_in_block) f32 -> (M, Cout) f32. FrozenBN folded into w*."""
        x_bf = x2d.astype(jnp.bfloat16)

        # conv1 1x1 + ReLU (stays in VMEM / vregs, never goes to HBM)
        h1 = jnp.dot(x_bf, w1[...], preferred_element_type=jnp.float32)
        h1 = jnp.maximum(h1 + b1[...], 0.0).astype(jnp.bfloat16)

        # conv2 3x3 (stride 1, pad 1): write the bf16 activation into the
        # zero-padded scratch, then a SINGLE deep-K matmul (K = 9*Cb) over the
        # 9 shifted windows -- accumulation happens inside the MXU.
        pad_ref[1:H + 1, 1:W + 1] = h1.reshape(H, W, TR, Cb)
        xp = pad_ref[...]
        patch = jnp.concatenate(
            [xp[dy:dy + H, dx:dx + W] for dy in range(3) for dx in range(3)],
            axis=-1).reshape(M, 9 * Cb)
        h2 = jnp.dot(patch, w2[...], preferred_element_type=jnp.float32)
        h2 = jnp.maximum(h2 + b2[...], 0.0).astype(jnp.bfloat16)

        # residual branch: identity, or 1x1 downsample (block 1)
        if wd is None:
            res = x2d
        else:
            res = jnp.dot(x_bf, wd[...], preferred_element_type=jnp.float32) + bd[...]

        # conv3 1x1 + residual + ReLU
        y = jnp.dot(h2, w3[...], preferred_element_type=jnp.float32)
        return jnp.maximum(y + b3[...] + res, 0.0)

    a0 = x_ref[...].reshape(M, Cin)
    a1 = bottleneck(a0, w1a, b1a, w2a, b2a, w3a, b3a, wda, bda)
    a2 = bottleneck(a1, w1b, b1b, w2b, b2b, w3b, b3b)
    a3 = bottleneck(a2, w1c, b1c, w2c, b2c, w3c, b3c)
    o_ref[...] = a3.reshape(H, W, TR, Cout)


def res5_head(x_hwrc, params, roi_tile):
    """x_hwrc: [H, W, R, Cin] (R a multiple of roi_tile) -> [H, W, R, Cout]."""
    H, W, Rp, Cin = x_hwrc.shape
    assert Rp % roi_tile == 0
    p1, p2, p3 = params
    Cb = p1["w1"].shape[1]
    Cout = p1["w3"].shape[1]

    weights = [p1["w1"], p1["b1"], p1["w2"], p1["b2"], p1["w3"], p1["b3"],
               p1["wd"], p1["bd"],
               p2["w1"], p2["b1"], p2["w2"], p2["b2"], p2["w3"], p2["b3"],
               p3["w1"], p3["b1"], p3["w2"], p3["b2"], p3["w3"], p3["b3"]]

    def const_spec(a):
        zeros = (0,) * a.ndim
        return pl.BlockSpec(a.shape, lambda i, _z=zeros: _z)

    in_specs = ([pl.BlockSpec((H, W, roi_tile, Cin), lambda i: (0, 0, i, 0))]
                + [const_spec(w) for w in weights])
    out_spec = pl.BlockSpec((H, W, roi_tile, Cout), lambda i: (0, 0, i, 0))

    return pl.pallas_call(
        _res5_head_kernel,
        out_shape=jax.ShapeDtypeStruct((H, W, Rp, Cout), jnp.float32),
        grid_spec=pltpu.PrefetchScalarGridSpec(
            num_scalar_prefetch=0,
            grid=(Rp // roi_tile,),
            in_specs=in_specs,
            out_specs=out_spec,
            scratch_shapes=[
                pltpu.VMEM((H + 2, W + 2, roi_tile, Cb), jnp.bfloat16)],
        ),
        compiler_params=pltpu.CompilerParams(
            dimension_semantics=("parallel",)),
    )(x_hwrc, *weights)


# ----------------------------------------------------------------------------
# Pooler: single-scale ROIAlign (maskrcnn_benchmark, aligned=False) evaluated
# only at the EVEN output bins (what the stride-2 1x1 convs of stage-5 read).
# ----------------------------------------------------------------------------
def roi_align_even_bins(feat, rois, pooled_size, spatial_scale, sampling_ratio):
    """feat: [N,H,W,C]; rois: [R,5]=(batch, x1, y1, x2, y2) -> [R, P//2, P//2, C].

    Numerically identical to full PxP ROIAlign followed by [:, ::2, ::2, :].
    """
    N, H, W, C = feat.shape
    P, sg = pooled_size, sampling_ratio
    assert sg > 0, "adaptive sampling_ratio (<=0) not implemented"
    assert P % 2 == 0, "even pooler resolution expected (stage-5 stride 2)"
    P2 = P // 2
    S = P2 * sg

    batch = rois[:, 0].astype(jnp.int32)
    x1 = rois[:, 1] * spatial_scale
    y1 = rois[:, 2] * spatial_scale
    x2 = rois[:, 3] * spatial_scale
    y2 = rois[:, 4] * spatial_scale
    roi_w = jnp.maximum(x2 - x1, 1.0)
    roi_h = jnp.maximum(y2 - y1, 1.0)
    bin_w = roi_w / P
    bin_h = roi_h / P

    # Sample offsets (in units of bins) for the even bins only.
    idx = jnp.arange(S)
    m = idx // sg
    k = idx % sg
    off = 2.0 * m.astype(jnp.float32) + (k.astype(jnp.float32) + 0.5) / sg

    ys = y1[:, None] + bin_h[:, None] * off[None, :]      # [R, S]
    xs = x1[:, None] + bin_w[:, None] * off[None, :]      # [R, S]

    def axis_weights(coord, size):
        # Reference CUDA semantics: coord in [-1, size] is valid (else weight 0).
        valid = ((coord >= -1.0) & (coord <= size)).astype(jnp.float32)
        c = jnp.clip(coord, 0.0, float(size - 1))
        low = jnp.minimum(jnp.floor(c).astype(jnp.int32), size - 1)
        high = jnp.minimum(low + 1, size - 1)
        frac = jnp.where(low >= size - 1, 0.0, c - low.astype(jnp.float32))
        return low, high, (1.0 - frac) * valid, frac * valid

    yl, yh, wyl, wyh = axis_weights(ys, H)
    xl, xh, wxl, wxh = axis_weights(xs, W)

    # y axis: gather only the 2*S feature-map rows each ROI actually touches.
    feat_rows = feat.reshape(N * H, W, C)
    top = feat_rows[batch[:, None] * H + yl]              # [R, S, W, C]
    bot = feat_rows[batch[:, None] * H + yh]              # [R, S, W, C]

    # x axis: dense interpolation weights (two nonzeros per row) -> MXU matmul
    # instead of a take_along_axis gather that materializes [R,S,S,C] twice.
    cols = jnp.arange(W, dtype=jnp.int32)
    wx = (wxl[:, :, None] * (cols[None, None, :] == xl[:, :, None])
          + wxh[:, :, None] * (cols[None, None, :] == xh[:, :, None]))  # [R,S,W]
    hp = jax.lax.Precision.HIGHEST
    top_v = jnp.einsum('rywc,rxw->ryxc', top, wx, precision=hp)
    bot_v = jnp.einsum('rywc,rxw->ryxc', bot, wx, precision=hp)
    vals = top_v * wyl[:, :, None, None] + bot_v * wyh[:, :, None, None]
    # TODO(synk): the data-dependent bilinear row gather stays in plain JAX; a
    #             PrefetchScalarGridSpec + make_async_copy row-gather kernel is
    #             the natural follow-up.
    return vals.reshape(-1, P2, sg, P2, sg, C).mean(axis=(2, 4))


# ----------------------------------------------------------------------------
# Parameters: raw FrozenBN params, then folded (w' = w * scale, bf16) for kernels
# ----------------------------------------------------------------------------
def init_head_params(key, in_c, bottleneck_c, out_c, n_blocks=3):
    blocks = []
    for i in range(n_blocks):
        cin = in_c if i == 0 else out_c
        key, *ks = jax.random.split(key, 13)

        def nrm(k, shape, sc=0.05):
            return jax.random.normal(k, shape, dtype=jnp.float32) * sc

        blk = {
            "w1": nrm(ks[0], (cin, bottleneck_c)),
            "s1": 1.0 + 0.1 * jax.random.normal(ks[1], (1, bottleneck_c), jnp.float32),
            "b1": nrm(ks[2], (1, bottleneck_c), 0.1),
            "w2": nrm(ks[3], (3, 3, bottleneck_c, bottleneck_c)),
            "s2": 1.0 + 0.1 * jax.random.normal(ks[4], (1, bottleneck_c), jnp.float32),
            "b2": nrm(ks[5], (1, bottleneck_c), 0.1),
            "w3": nrm(ks[6], (bottleneck_c, out_c)),
            "s3": 1.0 + 0.1 * jax.random.normal(ks[7], (1, out_c), jnp.float32),
            "b3": nrm(ks[8], (1, out_c), 0.1),
        }
        if i == 0:
            blk["wd"] = nrm(ks[9], (cin, out_c))
            blk["sd"] = 1.0 + 0.1 * jax.random.normal(ks[10], (1, out_c), jnp.float32)
            blk["bd"] = nrm(ks[11], (1, out_c), 0.1)
        blocks.append(blk)
    return blocks


def fold_frozen_bn(raw_blocks):
    """Fold FrozenBN scale into conv weights (per out-channel) and cast to bf16.

    NOTE: for real FrozenBatchNorm2d checkpoints use
      scale = gamma / sqrt(running_var + eps), bias = beta - running_mean * scale;
    the bias passed here must already be that affine shift.
    """
    folded = []
    for blk in raw_blocks:
        cb = blk["w1"].shape[1]
        f = {
            "w1": (blk["w1"] * blk["s1"]).astype(jnp.bfloat16),
            "b1": blk["b1"].astype(jnp.float32),
            # (3,3,Cb,Cb) -> (9*Cb, Cb): matches the kernel's window-concat order.
            "w2": (blk["w2"] * blk["s2"]).reshape(9 * cb, cb).astype(jnp.bfloat16),
            "b2": blk["b2"].astype(jnp.float32),
            "w3": (blk["w3"] * blk["s3"]).astype(jnp.bfloat16),
            "b3": blk["b3"].astype(jnp.float32),
        }
        if "wd" in blk:
            f["wd"] = (blk["wd"] * blk["sd"]).astype(jnp.bfloat16)
            f["bd"] = blk["bd"].astype(jnp.float32)
        folded.append(f)
    return folded


# ----------------------------------------------------------------------------
# Full forward: pooler(x, proposals) -> head(x)
# ----------------------------------------------------------------------------
def roi_feature_extractor(x_nchw, rois, params, *, pooled, scale,
                          sampling_ratio, roi_tile=16):
    feat = jnp.transpose(x_nchw, (0, 2, 3, 1))                       # NCHW -> NHWC
    # Pool directly at P/2 x P/2 (even bins) -- identical to PxP + stride-2 convs.
    x_pool = roi_align_even_bins(feat, rois, pooled, scale, sampling_ratio)

    # Pad ROI count up to a multiple of the kernel's ROI tile; slice off later.
    # TODO(synk): mask the tail inside the kernel instead of padding whole tiles.
    r_real = x_pool.shape[0]
    r_pad = roi_tile * ((r_real + roi_tile - 1) // roi_tile)
    if r_pad != r_real:
        x_pool = jnp.pad(x_pool, ((0, r_pad - r_real), (0, 0), (0, 0), (0, 0)))

    # Kernel layout (H, W, R, C): lanes = channels, sublanes = ROIs; all 3x3
    # window shifts become leading-dim slices inside the kernel.
    x_hwrc = jnp.transpose(x_pool, (1, 2, 0, 3))
    out_hwrc = res5_head(x_hwrc, params, roi_tile)            # (P/2, P/2, r_pad, Cout)
    out = out_hwrc[:, :, :r_real, :]
    return jnp.transpose(out, (2, 3, 0, 1))                   # [R, Cout, P/2, P/2]


if __name__ == "__main__":
    key = jax.random.PRNGKey(0)
    k_feat, k_param, k_box1, k_box2, k_batch = jax.random.split(key, 5)

    # Small-config analogue of the module (RES2_OUT_CHANNELS=16, NUM_GROUPS=1,
    # WIDTH_PER_GROUP=4, stage index=4):
    #   in_channels=64, bottleneck_channels=32, out_channels=128
    in_channels = 64
    bottleneck_channels = 32
    out_channels = 128
    pooler_resolution = 8        # stage-5 stride 2 -> 4x4 head output
    spatial_scale = 1.0 / 16.0
    sampling_ratio = 2

    N, H, W = 2, 16, 16
    x = jax.random.normal(k_feat, (N, in_channels, H, W), dtype=jnp.float32)

    # proposals as rois: [R, 5] = (batch_idx, x1, y1, x2, y2) on a 256x256 image.
    R = 32
    batch_idx = jax.random.randint(k_batch, (R, 1), 0, N).astype(jnp.float32)
    xy1 = jax.random.uniform(k_box1, (R, 2), minval=0.0, maxval=160.0)
    wh = jax.random.uniform(k_box2, (R, 2), minval=24.0, maxval=96.0)
    xy2 = jnp.minimum(xy1 + wh, 255.0)
    rois = jnp.concatenate([batch_idx, xy1, xy2], axis=1)

    raw_params = init_head_params(k_param, in_channels, bottleneck_channels,
                                  out_channels)
    params = fold_frozen_bn(raw_params)

    fn = jax.jit(functools.partial(
        roi_feature_extractor,
        pooled=pooler_resolution, scale=spatial_scale,
        sampling_ratio=sampling_ratio, roi_tile=16))

    out = fn(x, rois, params)
    jax.block_until_ready(out)

    assert out.shape == (R, out_channels,
                         pooler_resolution // 2, pooler_resolution // 2), out.shape
    assert out.dtype == jnp.float32
    assert bool(jnp.all(jnp.isfinite(out)))
    print("KERNEL_OK")
</pallas_src>

<mosaic_0001>
module attributes {stable_mosaic.version = 11 : i64} {
  func.func @_res5_head_kernel(%arg0: i32, %arg1: memref<4x4x16x64xf32, #tpu.memory_space<vmem>>, %arg2: memref<64x32xbf16, #tpu.memory_space<vmem>>, %arg3: memref<1x32xf32, #tpu.memory_space<vmem>>, %arg4: memref<288x32xbf16, #tpu.memory_space<vmem>>, %arg5: memref<1x32xf32, #tpu.memory_space<vmem>>, %arg6: memref<32x128xbf16, #tpu.memory_space<vmem>>, %arg7: memref<1x128xf32, #tpu.memory_space<vmem>>, %arg8: memref<64x128xbf16, #tpu.memory_space<vmem>>, %arg9: memref<1x128xf32, #tpu.memory_space<vmem>>, %arg10: memref<128x32xbf16, #tpu.memory_space<vmem>>, %arg11: memref<1x32xf32, #tpu.memory_space<vmem>>, %arg12: memref<288x32xbf16, #tpu.memory_space<vmem>>, %arg13: memref<1x32xf32, #tpu.memory_space<vmem>>, %arg14: memref<32x128xbf16, #tpu.memory_space<vmem>>, %arg15: memref<1x128xf32, #tpu.memory_space<vmem>>, %arg16: memref<128x32xbf16, #tpu.memory_space<vmem>>, %arg17: memref<1x32xf32, #tpu.memory_space<vmem>>, %arg18: memref<288x32xbf16, #tpu.memory_space<vmem>>, %arg19: memref<1x32xf32, #tpu.memory_space<vmem>>, %arg20: memref<32x128xbf16, #tpu.memory_space<vmem>>, %arg21: memref<1x128xf32, #tpu.memory_space<vmem>>, %arg22: memref<4x4x16x128xf32, #tpu.memory_space<vmem>>, %arg23: memref<6x6x16x32xbf16, #tpu.memory_space<vmem>>) attributes {dimension_semantics = [#tpu.dimension_semantics<parallel>], iteration_bounds = array<i64: 2>, scalar_prefetch = 0 : i64, scratch_operands = 1 : i64, tpu.core_type = #tpu.core_type<tc>, window_params = [{transform_indices = @transform_0, window_bounds = array<i64: 4, 4, 16, 64>}, {pipeline_mode = #tpu.pipeline_mode<synchronous>, transform_indices = @transform_1, window_bounds = array<i64: 64, 32>}, {pipeline_mode = #tpu.pipeline_mode<synchronous>, transform_indices = @transform_2, window_bounds = array<i64: 1, 32>}, {pipeline_mode = #tpu.pipeline_mode<synchronous>, transform_indices = @transform_3, window_bounds = array<i64: 288, 32>}, {pipeline_mode = #tpu.pipeline_mode<synchronous>, transform_indices = @transform_4, window_bounds = array<i64: 1, 32>}, {pipeline_mode = #tpu.pipeline_mode<synchronous>, transform_indices = @transform_5, window_bounds = array<i64: 32, 128>}, {pipeline_mode = #tpu.pipeline_mode<synchronous>, transform_indices = @transform_6, window_bounds = array<i64: 1, 128>}, {pipeline_mode = #tpu.pipeline_mode<synchronous>, transform_indices = @transform_7, window_bounds = array<i64: 64, 128>}, {pipeline_mode = #tpu.pipeline_mode<synchronous>, transform_indices = @transform_8, window_bounds = array<i64: 1, 128>}, {pipeline_mode = #tpu.pipeline_mode<synchronous>, transform_indices = @transform_9, window_bounds = array<i64: 128, 32>}, {pipeline_mode = #tpu.pipeline_mode<synchronous>, transform_indices = @transform_10, window_bounds = array<i64: 1, 32>}, {pipeline_mode = #tpu.pipeline_mode<synchronous>, transform_indices = @transform_11, window_bounds = array<i64: 288, 32>}, {pipeline_mode = #tpu.pipeline_mode<synchronous>, transform_indices = @transform_12, window_bounds = array<i64: 1, 32>}, {pipeline_mode = #tpu.pipeline_mode<synchronous>, transform_indices = @transform_13, window_bounds = array<i64: 32, 128>}, {pipeline_mode = #tpu.pipeline_mode<synchronous>, transform_indices = @transform_14, window_bounds = array<i64: 1, 128>}, {pipeline_mode = #tpu.pipeline_mode<synchronous>, transform_indices = @transform_15, window_bounds = array<i64: 128, 32>}, {pipeline_mode = #tpu.pipeline_mode<synchronous>, transform_indices = @transform_16, window_bounds = array<i64: 1, 32>}, {pipeline_mode = #tpu.pipeline_mode<synchronous>, transform_indices = @transform_17, window_bounds = array<i64: 288, 32>}, {pipeline_mode = #tpu.pipeline_mode<synchronous>, transform_indices = @transform_18, window_bounds = array<i64: 1, 32>}, {pipeline_mode = #tpu.pipeline_mode<synchronous>, transform_indices = @transform_19, window_bounds = array<i64: 32, 128>}, {pipeline_mode = #tpu.pipeline_mode<synchronous>, transform_indices = @transform_20, window_bounds = array<i64: 1, 128>}, {transform_indices = @transform_21, window_bounds = array<i64: 4, 4, 16, 128>}]} {
    %cst = arith.constant 0.000000e+00 : bf16
    %0 = vector.broadcast %cst : bf16 to vector<1x6x16x32xbf16>
    %cst_0 = arith.constant 0.000000e+00 : bf16
    %1 = vector.broadcast %cst_0 : bf16 to vector<4x1x16x32xbf16>
    %c0 = arith.constant 0 : index
    %c0_1 = arith.constant 0 : index
    %c0_2 = arith.constant 0 : index
    %c0_3 = arith.constant 0 : index
    %2 = vector.load %arg23[%c0, %c0_1, %c0_2, %c0_3] : memref<6x6x16x32xbf16, #tpu.memory_space<vmem>>, vector<1x6x16x32xbf16>
    tpu.vector_store %arg23[%c0, %c0_1, %c0_2, %c0_3], %0 {strides = array<i32>} : memref<6x6x16x32xbf16, #tpu.memory_space<vmem>>, vector<1x6x16x32xbf16>,
    %c5 = arith.constant 5 : index
    %c0_4 = arith.constant 0 : index
    %c0_5 = arith.constant 0 : index
    %c0_6 = arith.constant 0 : index
    %3 = vector.load %arg23[%c5, %c0_4, %c0_5, %c0_6] : memref<6x6x16x32xbf16, #tpu.memory_space<vmem>>, vector<1x6x16x32xbf16>
    tpu.vector_store %arg23[%c5, %c0_4, %c0_5, %c0_6], %0 {strides = array<i32>} : memref<6x6x16x32xbf16, #tpu.memory_space<vmem>>, vector<1x6x16x32xbf16>,
    %c1 = arith.constant 1 : index
    %c0_7 = arith.constant 0 : index
    %c0_8 = arith.constant 0 : index
    %c0_9 = arith.constant 0 : index
    %4 = vector.load %arg23[%c1, %c0_7, %c0_8, %c0_9] : memref<6x6x16x32xbf16, #tpu.memory_space<vmem>>, vector<4x1x16x32xbf16>
    tpu.vector_store %arg23[%c1, %c0_7, %c0_8, %c0_9], %1 {strides = array<i32>} : memref<6x6x16x32xbf16, #tpu.memory_space<vmem>>, vector<4x1x16x32xbf16>,
    %c1_10 = arith.constant 1 : index
    %c5_11 = arith.constant 5 : index
    %c0_12 = arith.constant 0 : index
    %c0_13 = arith.constant 0 : index
    %5 = vector.load %arg23[%c1_10, %c5_11, %c0_12, %c0_13] : memref<6x6x16x32xbf16, #tpu.memory_space<vmem>>, vector<4x1x16x32xbf16>
    tpu.vector_store %arg23[%c1_10, %c5_11, %c0_12, %c0_13], %1 {strides = array<i32>} : memref<6x6x16x32xbf16, #tpu.memory_space<vmem>>, vector<4x1x16x32xbf16>,
    %c0_14 = arith.constant 0 : index
    %c0_15 = arith.constant 0 : index
    %c0_16 = arith.constant 0 : index
    %c0_17 = arith.constant 0 : index
    %6 = vector.load %arg1[%c0_14, %c0_15, %c0_16, %c0_17] : memref<4x4x16x64xf32, #tpu.memory_space<vmem>>, vector<4x4x16x64xf32>
    %7 = vector.shape_cast %6 : vector<4x4x16x64xf32> to vector<256x64xf32>
    %8 = arith.truncf %7 : vector<256x64xf32> to vector<256x64xbf16>
    %c0_18 = arith.constant 0 : index
    %c0_19 = arith.constant 0 : index
    %9 = vector.load %arg2[%c0_18, %c0_19] : memref<64x32xbf16, #tpu.memory_space<vmem>>, vector<64x32xbf16>
    %cst_20 = arith.constant dense<0.000000e+00> : vector<256x32xf32>
    %10 = tpu.matmul %8, %9, %cst_20 {dimension_numbers = #tpu.dot_dimension_numbers<[1], [0], [0], [1], [0, 0, 1, 1], [], []>} : vector<256x64xbf16>, vector<64x32xbf16>, vector<256x32xf32> -> vector<256x32xf32>
    %c0_21 = arith.constant 0 : index
    %c0_22 = arith.constant 0 : index
    %11 = vector.load %arg3[%c0_21, %c0_22] : memref<1x32xf32, #tpu.memory_space<vmem>>, vector<1x32xf32>
    %12 = vector.broadcast %11 : vector<1x32xf32> to vector<256x32xf32>
    %13 = arith.addf %10, %12 : vector<256x32xf32>
    %cst_23 = arith.constant 0.000000e+00 : f32
    %14 = vector.broadcast %cst_23 : f32 to vector<256x32xf32>
    %15 = arith.maximumf %13, %14 : vector<256x32xf32>
    %16 = arith.truncf %15 : vector<256x32xf32> to vector<256x32xbf16>
    %17 = vector.shape_cast %16 : vector<256x32xbf16> to vector<4x4x16x32xbf16>
    %c1_24 = arith.constant 1 : index
    %c1_25 = arith.constant 1 : index
    %c0_26 = arith.constant 0 : index
    %c0_27 = arith.constant 0 : index
    %18 = vector.load %arg23[%c1_24, %c1_25, %c0_26, %c0_27] : memref<6x6x16x32xbf16, #tpu.memory_space<vmem>>, vector<4x4x16x32xbf16>
    tpu.vector_store %arg23[%c1_24, %c1_25, %c0_26, %c0_27], %17 {strides = array<i32>} : memref<6x6x16x32xbf16, #tpu.memory_space<vmem>>, vector<4x4x16x32xbf16>,
    %c0_28 = arith.constant 0 : index
    %c0_29 = arith.constant 0 : index
    %c0_30 = arith.constant 0 : index
    %c0_31 = arith.constant 0 : index
    %19 = vector.load %arg23[%c0_28, %c0_29, %c0_30, %c0_31] : memref<6x6x16x32xbf16, #tpu.memory_space<vmem>>, vector<6x6x16x32xbf16>
    %20 = vector.extract_strided_slice %19 {offsets = [0, 0, 0, 0], sizes = [4, 4, 16, 32], strides = [1, 1, 1, 1]} : vector<6x6x16x32xbf16> to vector<4x4x16x32xbf16>
    %21 = vector.extract_strided_slice %19 {offsets = [0, 1, 0, 0], sizes = [4, 4, 16, 32], strides = [1, 1, 1, 1]} : vector<6x6x16x32xbf16> to vector<4x4x16x32xbf16>
    %22 = vector.extract_strided_slice %19 {offsets = [0, 2, 0, 0], sizes = [4, 4, 16, 32], strides = [1, 1, 1, 1]} : vector<6x6x16x32xbf16> to vector<4x4x16x32xbf16>
    %23 = vector.extract_strided_slice %19 {offsets = [1, 0, 0, 0], sizes = [4, 4, 16, 32], strides = [1, 1, 1, 1]} : vector<6x6x16x32xbf16> to vector<4x4x16x32xbf16>
    %24 = vector.extract_strided_slice %19 {offsets = [1, 1, 0, 0], sizes = [4, 4, 16, 32], strides = [1, 1, 1, 1]} : vector<6x6x16x32xbf16> to vector<4x4x16x32xbf16>
    %25 = vector.extract_strided_slice %19 {offsets = [1, 2, 0, 0], sizes = [4, 4, 16, 32], strides = [1, 1, 1, 1]} : vector<6x6x16x32xbf16> to vector<4x4x16x32xbf16>
    %26 = vector.extract_strided_slice %19 {offsets = [2, 0, 0, 0], sizes = [4, 4, 16, 32], strides = [1, 1, 1, 1]} : vector<6x6x16x32xbf16> to vector<4x4x16x32xbf16>
    %27 = vector.extract_strided_slice %19 {offsets = [2, 1, 0, 0], sizes = [4, 4, 16, 32], strides = [1, 1, 1, 1]} : vector<6x6x16x32xbf16> to vector<4x4x16x32xbf16>
    %28 = vector.extract_strided_slice %19 {offsets = [2, 2, 0, 0], sizes = [4, 4, 16, 32], strides = [1, 1, 1, 1]} : vector<6x6x16x32xbf16> to vector<4x4x16x32xbf16>
    %29 = tpu.concatenate %20, %21, %22, %23, %24, %25, %26, %27, %28 in 3 : vector<4x4x16x32xbf16>, vector<4x4x16x32xbf16>, vector<4x4x16x32xbf16>, vector<4x4x16x32xbf16>, vector<4x4x16x32xbf16>, vector<4x4x16x32xbf16>, vector<4x4x16x32xbf16>, vector<4x4x16x32xbf16>, vector<4x4x16x32xbf16> -> vector<4x4x16x288xbf16>
    %30 = vector.shape_cast %29 : vector<4x4x16x288xbf16> to vector<256x288xbf16>
    %c0_32 = arith.constant 0 : index
    %c0_33 = arith.constant 0 : index
    %31 = vector.load %arg4[%c0_32, %c0_33] : memref<288x32xbf16, #tpu.memory_space<vmem>>, vector<288x32xbf16>
    %cst_34 = arith.constant dense<0.000000e+00> : vector<256x32xf32>
    %32 = tpu.matmul %30, %31, %cst_34 {dimension_numbers = #tpu.dot_dimension_numbers<[1], [0], [0], [1], [0, 0, 1, 1], [], []>} : vector<256x288xbf16>, vector<288x32xbf16>, vector<256x32xf32> -> vector<256x32xf32>
    %c0_35 = arith.constant 0 : index
    %c0_36 = arith.constant 0 : index
    %33 = vector.load %arg5[%c0_35, %c0_36] : memref<1x32xf32, #tpu.memory_space<vmem>>, vector<1x32xf32>
    %34 = vector.broadcast %33 : vector<1x32xf32> to vector<256x32xf32>
    %35 = arith.addf %32, %34 : vector<256x32xf32>
    %cst_37 = arith.constant 0.000000e+00 : f32
    %36 = vector.broadcast %cst_37 : f32 to vector<256x32xf32>
    %37 = arith.maximumf %35, %36 : vector<256x32xf32>
    %38 = arith.truncf %37 : vector<256x32xf32> to vector<256x32xbf16>
    %c0_38 = arith.constant 0 : index
    %c0_39 = arith.constant 0 : index
    %39 = vector.load %arg8[%c0_38, %c0_39] : memref<64x128xbf16, #tpu.memory_space<vmem>>, vector<64x128xbf16>
    %cst_40 = arith.constant dense<0.000000e+00> : vector<256x128xf32>
    %40 = tpu.matmul %8, %39, %cst_40 {dimension_numbers = #tpu.dot_dimension_numbers<[1], [0], [0], [1], [0, 0, 1, 1], [], []>} : vector<256x64xbf16>, vector<64x128xbf16>, vector<256x128xf32> -> vector<256x128xf32>
    %c0_41 = arith.constant 0 : index
    %c0_42 = arith.constant 0 : index
    %41 = vector.load %arg9[%c0_41, %c0_42] : memref<1x128xf32, #tpu.memory_space<vmem>>, vector<1x128xf32>
    %42 = vector.broadcast %41 : vector<1x128xf32> to vector<256x128xf32>
    %43 = arith.addf %40, %42 : vector<256x128xf32>
    %c0_43 = arith.constant 0 : index
    %c0_44 = arith.constant 0 : index
    %44 = vector.load %arg6[%c0_43, %c0_44] : memref<32x128xbf16, #tpu.memory_space<vmem>>, vector<32x128xbf16>
    %cst_45 = arith.constant dense<0.000000e+00> : vector<256x128xf32>
    %45 = tpu.matmul %38, %44, %cst_45 {dimension_numbers = #tpu.dot_dimension_numbers<[1], [0], [0], [1], [0, 0, 1, 1], [], []>} : vector<256x32xbf16>, vector<32x128xbf16>, vector<256x128xf32> -> vector<256x128xf32>
    %c0_46 = arith.constant 0 : index
    %c0_47 = arith.constant 0 : index
    %46 = vector.load %arg7[%c0_46, %c0_47] : memref<1x128xf32, #tpu.memory_space<vmem>>, vector<1x128xf32>
    %47 = vector.broadcast %46 : vector<1x128xf32> to vector<256x128xf32>
    %48 = arith.addf %45, %47 : vector<256x128xf32>
    %49 = arith.addf %48, %43 : vector<256x128xf32>
    %cst_48 = arith.constant 0.000000e+00 : f32
    %50 = vector.broadcast %cst_48 : f32 to vector<256x128xf32>
    %51 = arith.maximumf %49, %50 : vector<256x128xf32>
    %52 = arith.truncf %51 : vector<256x128xf32> to vector<256x128xbf16>
    %c0_49 = arith.constant 0 : index
    %c0_50 = arith.constant 0 : index
    %53 = vector.load %arg10[%c0_49, %c0_50] : memref<128x32xbf16, #tpu.memory_space<vmem>>, vector<128x32xbf16>
    %cst_51 = arith.constant dense<0.000000e+00> : vector<256x32xf32>
    %54 = tpu.matmul %52, %53, %cst_51 {dimension_numbers = #tpu.dot_dimension_numbers<[1], [0], [0], [1], [0, 0, 1, 1], [], []>} : vector<256x128xbf16>, vector<128x32xbf16>, vector<256x32xf32> -> vector<256x32xf32>
    %c0_52 = arith.constant 0 : index
    %c0_53 = arith.constant 0 : index
    %55 = vector.load %arg11[%c0_52, %c0_53] : memref<1x32xf32, #tpu.memory_space<vmem>>, vector<1x32xf32>
    %56 = vector.broadcast %55 : vector<1x32xf32> to vector<256x32xf32>
    %57 = arith.addf %54, %56 : vector<256x32xf32>
    %cst_54 = arith.constant 0.000000e+00 : f32
    %58 = vector.broadcast %cst_54 : f32 to vector<256x32xf32>
    %59 = arith.maximumf %57, %58 : vector<256x32xf32>
    %60 = arith.truncf %59 : vector<256x32xf32> to vector<256x32xbf16>
    %61 = vector.shape_cast %60 : vector<256x32xbf16> to vector<4x4x16x32xbf16>
    %c1_55 = arith.constant 1 : index
    %c1_56 = arith.constant 1 : index
    %c0_57 = arith.constant 0 : index
    %c0_58 = arith.constant 0 : index
    %62 = vector.load %arg23[%c1_55, %c1_56, %c0_57, %c0_58] : memref<6x6x16x32xbf16, #tpu.memory_space<vmem>>, vector<4x4x16x32xbf16>
    tpu.vector_store %arg23[%c1_55, %c1_56, %c0_57, %c0_58], %61 {strides = array<i32>} : memref<6x6x16x32xbf16, #tpu.memory_space<vmem>>, vector<4x4x16x32xbf16>,
    %c0_59 = arith.constant 0 : index
    %c0_60 = arith.constant 0 : index
    %c0_61 = arith.constant 0 : index
    %c0_62 = arith.constant 0 : index
    %63 = vector.load %arg23[%c0_59, %c0_60, %c0_61, %c0_62] : memref<6x6x16x32xbf16, #tpu.memory_space<vmem>>, vector<6x6x16x32xbf16>
    %64 = vector.extract_strided_slice %63 {offsets = [0, 0, 0, 0], sizes = [4, 4, 16, 32], strides = [1, 1, 1, 1]} : vector<6x6x16x32xbf16> to vector<4x4x16x32xbf16>
    %65 = vector.extract_strided_slice %63 {offsets = [0, 1, 0, 0], sizes = [4, 4, 16, 32], strides = [1, 1, 1, 1]} : vector<6x6x16x32xbf16> to vector<4x4x16x32xbf16>
    %66 = vector.extract_strided_slice %63 {offsets = [0, 2, 0, 0], sizes = [4, 4, 16, 32], strides = [1, 1, 1, 1]} : vector<6x6x16x32xbf16> to vector<4x4x16x32xbf16>
    %67 = vector.extract_strided_slice %63 {offsets = [1, 0, 0, 0], sizes = [4, 4, 16, 32], strides = [1, 1, 1, 1]} : vector<6x6x16x32xbf16> to vector<4x4x16x32xbf16>
    %68 = vector.extract_strided_slice %63 {offsets = [1, 1, 0, 0], sizes = [4, 4, 16, 32], strides = [1, 1, 1, 1]} : vector<6x6x16x32xbf16> to vector<4x4x16x32xbf16>
    %69 = vector.extract_strided_slice %63 {offsets = [1, 2, 0, 0], sizes = [4, 4, 16, 32], strides = [1, 1, 1, 1]} : vector<6x6x16x32xbf16> to vector<4x4x16x32xbf16>
    %70 = vector.extract_strided_slice %63 {offsets = [2, 0, 0, 0], sizes = [4, 4, 16, 32], strides = [1, 1, 1, 1]} : vector<6x6x16x32xbf16> to vector<4x4x16x32xbf16>
    %71 = vector.extract_strided_slice %63 {offsets = [2, 1, 0, 0], sizes = [4, 4, 16, 32], strides = [1, 1, 1, 1]} : vector<6x6x16x32xbf16> to vector<4x4x16x32xbf16>
    %72 = vector.extract_strided_slice %63 {offsets = [2, 2, 0, 0], sizes = [4, 4, 16, 32], strides = [1, 1, 1, 1]} : vector<6x6x16x32xbf16> to vector<4x4x16x32xbf16>
    %73 = tpu.concatenate %64, %65, %66, %67, %68, %69, %70, %71, %72 in 3 : vector<4x4x16x32xbf16>, vector<4x4x16x32xbf16>, vector<4x4x16x32xbf16>, vector<4x4x16x32xbf16>, vector<4x4x16x32xbf16>, vector<4x4x16x32xbf16>, vector<4x4x16x32xbf16>, vector<4x4x16x32xbf16>, vector<4x4x16x32xbf16> -> vector<4x4x16x288xbf16>
    %74 = vector.shape_cast %73 : vector<4x4x16x288xbf16> to vector<256x288xbf16>
    %c0_63 = arith.constant 0 : index
    %c0_64 = arith.constant 0 : index
    %75 = vector.load %arg12[%c0_63, %c0_64] : memref<288x32xbf16, #tpu.memory_space<vmem>>, vector<288x32xbf16>
    %cst_65 = arith.constant dense<0.000000e+00> : vector<256x32xf32>
    %76 = tpu.matmul %74, %75, %cst_65 {dimension_numbers = #tpu.dot_dimension_numbers<[1], [0], [0], [1], [0, 0, 1, 1], [], []>} : vector<256x288xbf16>, vector<288x32xbf16>, vector<256x32xf32> -> vector<256x32xf32>
    %c0_66 = arith.constant 0 : index
    %c0_67 = arith.constant 0 : index
    %77 = vector.load %arg13[%c0_66, %c0_67] : memref<1x32xf32, #tpu.memory_space<vmem>>, vector<1x32xf32>
    %78 = vector.broadcast %77 : vector<1x32xf32> to vector<256x32xf32>
    %79 = arith.addf %76, %78 : vector<256x32xf32>
    %cst_68 = arith.constant 0.000000e+00 : f32
    %80 = vector.broadcast %cst_68 : f32 to vector<256x32xf32>
    %81 = arith.maximumf %79, %80 : vector<256x32xf32>
    %82 = arith.truncf %81 : vector<256x32xf32> to vector<256x32xbf16>
    %c0_69 = arith.constant 0 : index
    %c0_70 = arith.constant 0 : index
    %83 = vector.load %arg14[%c0_69, %c0_70] : memref<32x128xbf16, #tpu.memory_space<vmem>>, vector<32x128xbf16>
    %cst_71 = arith.constant dense<0.000000e+00> : vector<256x128xf32>
    %84 = tpu.matmul %82, %83, %cst_71 {dimension_numbers = #tpu.dot_dimension_numbers<[1], [0], [0], [1], [0, 0, 1, 1], [], []>} : vector<256x32xbf16>, vector<32x128xbf16>, vector<256x128xf32> -> vector<256x128xf32>
    %c0_72 = arith.constant 0 : index
    %c0_73 = arith.constant 0 : index
    %85 = vector.load %arg15[%c0_72, %c0_73] : memref<1x128xf32, #tpu.memory_space<vmem>>, vector<1x128xf32>
    %86 = vector.broadcast %85 : vector<1x128xf32> to vector<256x128xf32>
    %87 = arith.addf %84, %86 : vector<256x128xf32>
    %88 = arith.addf %87, %51 : vector<256x128xf32>
    %cst_74 = arith.constant 0.000000e+00 : f32
    %89 = vector.broadcast %cst_74 : f32 to vector<256x128xf32>
    %90 = arith.maximumf %88, %89 : vector<256x128xf32>
    %91 = arith.truncf %90 : vector<256x128xf32> to vector<256x128xbf16>
    %c0_75 = arith.constant 0 : index
    %c0_76 = arith.constant 0 : index
    %92 = vector.load %arg16[%c0_75, %c0_76] : memref<128x32xbf16, #tpu.memory_space<vmem>>, vector<128x32xbf16>
    %cst_77 = arith.constant dense<0.000000e+00> : vector<256x32xf32>
    %93 = tpu.matmul %91, %92, %cst_77 {dimension_numbers = #tpu.dot_dimension_numbers<[1], [0], [0], [1], [0, 0, 1, 1], [], []>} : vector<256x128xbf16>, vector<128x32xbf16>, vector<256x32xf32> -> vector<256x32xf32>
    %c0_78 = arith.constant 0 : index
    %c0_79 = arith.constant 0 : index
    %94 = vector.load %arg17[%c0_78, %c0_79] : memref<1x32xf32, #tpu.memory_space<vmem>>, vector<1x32xf32>
    %95 = vector.broadcast %94 : vector<1x32xf32> to vector<256x32xf32>
    %96 = arith.addf %93, %95 : vector<256x32xf32>
    %cst_80 = arith.constant 0.000000e+00 : f32
    %97 = vector.broadcast %cst_80 : f32 to vector<256x32xf32>
    %98 = arith.maximumf %96, %97 : vector<256x32xf32>
    %99 = arith.truncf %98 : vector<256x32xf32> to vector<256x32xbf16>
    %100 = vector.shape_cast %99 : vector<256x32xbf16> to vector<4x4x16x32xbf16>
    %c1_81 = arith.constant 1 : index
    %c1_82 = arith.constant 1 : index
    %c0_83 = arith.constant 0 : index
    %c0_84 = arith.constant 0 : index
    %101 = vector.load %arg23[%c1_81, %c1_82, %c0_83, %c0_84] : memref<6x6x16x32xbf16, #tpu.memory_space<vmem>>, vector<4x4x16x32xbf16>
    tpu.vector_store %arg23[%c1_81, %c1_82, %c0_83, %c0_84], %100 {strides = array<i32>} : memref<6x6x16x32xbf16, #tpu.memory_space<vmem>>, vector<4x4x16x32xbf16>,
    %c0_85 = arith.constant 0 : index
    %c0_86 = arith.constant 0 : index
    %c0_87 = arith.constant 0 : index
    %c0_88 = arith.constant 0 : index
    %102 = vector.load %arg23[%c0_85, %c0_86, %c0_87, %c0_88] : memref<6x6x16x32xbf16, #tpu.memory_space<vmem>>, vector<6x6x16x32xbf16>
    %103 = vector.extract_strided_slice %102 {offsets = [0, 0, 0, 0], sizes = [4, 4, 16, 32], strides = [1, 1, 1, 1]} : vector<6x6x16x32xbf16> to vector<4x4x16x32xbf16>
    %104 = vector.extract_strided_slice %102 {offsets = [0, 1, 0, 0], sizes = [4, 4, 16, 32], strides = [1, 1, 1, 1]} : vector<6x6x16x32xbf16> to vector<4x4x16x32xbf16>
    %105 = vector.extract_strided_slice %102 {offsets = [0, 2, 0, 0], sizes = [4, 4, 16, 32], strides = [1, 1, 1, 1]} : vector<6x6x16x32xbf16> to vector<4x4x16x32xbf16>
    %106 = vector.extract_strided_slice %102 {offsets = [1, 0, 0, 0], sizes = [4, 4, 16, 32], strides = [1, 1, 1, 1]} : vector<6x6x16x32xbf16> to vector<4x4x16x32xbf16>
    %107 = vector.extract_strided_slice %102 {offsets = [1, 1, 0, 0], sizes = [4, 4, 16, 32], strides = [1, 1, 1, 1]} : vector<6x6x16x32xbf16> to vector<4x4x16x32xbf16>
    %108 = vector.extract_strided_slice %102 {offsets = [1, 2, 0, 0], sizes = [4, 4, 16, 32], strides = [1, 1, 1, 1]} : vector<6x6x16x32xbf16> to vector<4x4x16x32xbf16>
    %109 = vector.extract_strided_slice %102 {offsets = [2, 0, 0, 0], sizes = [4, 4, 16, 32], strides = [1, 1, 1, 1]} : vector<6x6x16x32xbf16> to vector<4x4x16x32xbf16>
    %110 = vector.extract_strided_slice %102 {offsets = [2, 1, 0, 0], sizes = [4, 4, 16, 32], strides = [1, 1, 1, 1]} : vector<6x6x16x32xbf16> to vector<4x4x16x32xbf16>
    %111 = vector.extract_strided_slice %102 {offsets = [2, 2, 0, 0], sizes = [4, 4, 16, 32], strides = [1, 1, 1, 1]} : vector<6x6x16x32xbf16> to vector<4x4x16x32xbf16>
    %112 = tpu.concatenate %103, %104, %105, %106, %107, %108, %109, %110, %111 in 3 : vector<4x4x16x32xbf16>, vector<4x4x16x32xbf16>, vector<4x4x16x32xbf16>, vector<4x4x16x32xbf16>, vector<4x4x16x32xbf16>, vector<4x4x16x32xbf16>, vector<4x4x16x32xbf16>, vector<4x4x16x32xbf16>, vector<4x4x16x32xbf16> -> vector<4x4x16x288xbf16>
    %113 = vector.shape_cast %112 : vector<4x4x16x288xbf16> to vector<256x288xbf16>
    %c0_89 = arith.constant 0 : index
    %c0_90 = arith.constant 0 : index
    %114 = vector.load %arg18[%c0_89, %c0_90] : memref<288x32xbf16, #tpu.memory_space<vmem>>, vector<288x32xbf16>
    %cst_91 = arith.constant dense<0.000000e+00> : vector<256x32xf32>
    %115 = tpu.matmul %113, %114, %cst_91 {dimension_numbers = #tpu.dot_dimension_numbers<[1], [0], [0], [1], [0, 0, 1, 1], [], []>} : vector<256x288xbf16>, vector<288x32xbf16>, vector<256x32xf32> -> vector<256x32xf32>
    %c0_92 = arith.constant 0 : index
    %c0_93 = arith.constant 0 : index
    %116 = vector.load %arg19[%c0_92, %c0_93] : memref<1x32xf32, #tpu.memory_space<vmem>>, vector<1x32xf32>
    %117 = vector.broadcast %116 : vector<1x32xf32> to vector<256x32xf32>
    %118 = arith.addf %115, %117 : vector<256x32xf32>
    %cst_94 = arith.constant 0.000000e+00 : f32
    %119 = vector.broadcast %cst_94 : f32 to vector<256x32xf32>
    %120 = arith.maximumf %118, %119 : vector<256x32xf32>
    %121 = arith.truncf %120 : vector<256x32xf32> to vector<256x32xbf16>
    %c0_95 = arith.constant 0 : index
    %c0_96 = arith.constant 0 : index
    %122 = vector.load %arg20[%c0_95, %c0_96] : memref<32x128xbf16, #tpu.memory_space<vmem>>, vector<32x128xbf16>
    %cst_97 = arith.constant dense<0.000000e+00> : vector<256x128xf32>
    %123 = tpu.matmul %121, %122, %cst_97 {dimension_numbers = #tpu.dot_dimension_numbers<[1], [0], [0], [1], [0, 0, 1, 1], [], []>} : vector<256x32xbf16>, vector<32x128xbf16>, vector<256x128xf32> -> vector<256x128xf32>
    %c0_98 = arith.constant 0 : index
    %c0_99 = arith.constant 0 : index
    %124 = vector.load %arg21[%c0_98, %c0_99] : memref<1x128xf32, #tpu.memory_space<vmem>>, vector<1x128xf32>
    %125 = vector.broadcast %124 : vector<1x128xf32> to vector<256x128xf32>
    %126 = arith.addf %123, %125 : vector<256x128xf32>
    %127 = arith.addf %126, %90 : vector<256x128xf32>
    %cst_100 = arith.constant 0.000000e+00 : f32
    %128 = vector.broadcast %cst_100 : f32 to vector<256x128xf32>
    %129 = arith.maximumf %127, %128 : vector<256x128xf32>
    %130 = vector.shape_cast %129 : vector<256x128xf32> to vector<4x4x16x128xf32>
    %c0_101 = arith.constant 0 : index
    %c0_102 = arith.constant 0 : index
    %c0_103 = arith.constant 0 : index
    %c0_104 = arith.constant 0 : index
    %131 = vector.load %arg22[%c0_101, %c0_102, %c0_103, %c0_104] : memref<4x4x16x128xf32, #tpu.memory_space<vmem>>, vector<4x4x16x128xf32>
    tpu.vector_store %arg22[%c0_101, %c0_102, %c0_103, %c0_104], %130 {strides = array<i32>} : memref<4x4x16x128xf32, #tpu.memory_space<vmem>>, vector<4x4x16x128xf32>,
    return
  }
  func.func @transform_0(%arg0: i32) -> (i32, i32, i32, i32) {
    %c0_i32 = arith.constant 0 : i32
    %c0_i32_0 = arith.constant 0 : i32
    %c0_i32_1 = arith.constant 0 : i32
    %c0_i32_2 = arith.constant 0 : i32
    return %c0_i32, %c0_i32_0, %arg0, %c0_i32_1 : i32, i32, i32, i32
  }
  func.func @transform_1(%arg0: i32) -> (i32, i32) {
    %c0_i32 = arith.constant 0 : i32
    %c0_i32_0 = arith.constant 0 : i32
    %c0_i32_1 = arith.constant 0 : i32
    return %c0_i32, %c0_i32_0 : i32, i32
  }
  func.func @transform_2(%arg0: i32) -> (i32, i32) {
    %c0_i32 = arith.constant 0 : i32
    %c0_i32_0 = arith.constant 0 : i32
    %c0_i32_1 = arith.constant 0 : i32
    return %c0_i32, %c0_i32_0 : i32, i32
  }
  func.func @transform_3(%arg0: i32) -> (i32, i32) {
    %c0_i32 = arith.constant 0 : i32
    %c0_i32_0 = arith.constant 0 : i32
    %c0_i32_1 = arith.constant 0 : i32
    return %c0_i32, %c0_i32_0 : i32, i32
  }
  func.func @transform_4(%arg0: i32) -> (i32, i32) {
    %c0_i32 = arith.constant 0 : i32
    %c0_i32_0 = arith.constant 0 : i32
    %c0_i32_1 = arith.constant 0 : i32
    return %c0_i32, %c0_i32_0 : i32, i32
  }
  func.func @transform_5(%arg0: i32) -> (i32, i32) {
    %c0_i32 = arith.constant 0 : i32
    %c0_i32_0 = arith.constant 0 : i32
    %c0_i32_1 = arith.constant 0 : i32
    return %c0_i32, %c0_i32_0 : i32, i32
  }
  func.func @transform_6(%arg0: i32) -> (i32, i32) {
    %c0_i32 = arith.constant 0 : i32
    %c0_i32_0 = arith.constant 0 : i32
    %c0_i32_1 = arith.constant 0 : i32
    return %c0_i32, %c0_i32_0 : i32, i32
  }
  func.func @transform_7(%arg0: i32) -> (i32, i32) {
    %c0_i32 = arith.constant 0 : i32
    %c0_i32_0 = arith.constant 0 : i32
    %c0_i32_1 = arith.constant 0 : i32
    return %c0_i32, %c0_i32_0 : i32, i32
  }
  func.func @transform_8(%arg0: i32) -> (i32, i32) {
    %c0_i32 = arith.constant 0 : i32
    %c0_i32_0 = arith.constant 0 : i32
    %c0_i32_1 = arith.constant 0 : i32
    return %c0_i32, %c0_i32_0 : i32, i32
  }
  func.func @transform_9(%arg0: i32) -> (i32, i32) {
    %c0_i32 = arith.constant 0 : i32
    %c0_i32_0 = arith.constant 0 : i32
    %c0_i32_1 = arith.constant 0 : i32
    return %c0_i32, %c0_i32_0 : i32, i32
  }
  func.func @transform_10(%arg0: i32) -> (i32, i32) {
    %c0_i32 = arith.constant 0 : i32
    %c0_i32_0 = arith.constant 0 : i32
    %c0_i32_1 = arith.constant 0 : i32
    return %c0_i32, %c0_i32_0 : i32, i32
  }
  func.func @transform_11(%arg0: i32) -> (i32, i32) {
    %c0_i32 = arith.constant 0 : i32
    %c0_i32_0 = arith.constant 0 : i32
    %c0_i32_1 = arith.constant 0 : i32
    return %c0_i32, %c0_i32_0 : i32, i32
  }
  func.func @transform_12(%arg0: i32) -> (i32, i32) {
    %c0_i32 = arith.constant 0 : i32
    %c0_i32_0 = arith.constant 0 : i32
    %c0_i32_1 = arith.constant 0 : i32
    return %c0_i32, %c0_i32_0 : i32, i32
  }
  func.func @transform_13(%arg0: i32) -> (i32, i32) {
    %c0_i32 = arith.constant 0 : i32
    %c0_i32_0 = arith.constant 0 : i32
    %c0_i32_1 = arith.constant 0 : i32
    return %c0_i32, %c0_i32_0 : i32, i32
  }
  func.func @transform_14(%arg0: i32) -> (i32, i32) {
    %c0_i32 = arith.constant 0 : i32
    %c0_i32_0 = arith.constant 0 : i32
    %c0_i32_1 = arith.constant 0 : i32
    return %c0_i32, %c0_i32_0 : i32, i32
  }
  func.func @transform_15(%arg0: i32) -> (i32, i32) {
    %c0_i32 = arith.constant 0 : i32
    %c0_i32_0 = arith.constant 0 : i32
    %c0_i32_1 = arith.constant 0 : i32
    return %c0_i32, %c0_i32_0 : i32, i32
  }
  func.func @transform_16(%arg0: i32) -> (i32, i32) {
    %c0_i32 = arith.constant 0 : i32
    %c0_i32_0 = arith.constant 0 : i32
    %c0_i32_1 = arith.constant 0 : i32
    return %c0_i32, %c0_i32_0 : i32, i32
  }
  func.func @transform_17(%arg0: i32) -> (i32, i32) {
    %c0_i32 = arith.constant 0 : i32
    %c0_i32_0 = arith.constant 0 : i32
    %c0_i32_1 = arith.constant 0 : i32
    return %c0_i32, %c0_i32_0 : i32, i32
  }
  func.func @transform_18(%arg0: i32) -> (i32, i32) {
    %c0_i32 = arith.constant 0 : i32
    %c0_i32_0 = arith.constant 0 : i32
    %c0_i32_1 = arith.constant 0 : i32
    return %c0_i32, %c0_i32_0 : i32, i32
  }
  func.func @transform_19(%arg0: i32) -> (i32, i32) {
    %c0_i32 = arith.constant 0 : i32
    %c0_i32_0 = arith.constant 0 : i32
    %c0_i32_1 = arith.constant 0 : i32
    return %c0_i32, %c0_i32_0 : i32, i32
  }
  func.func @transform_20(%arg0: i32) -> (i32, i32) {
    %c0_i32 = arith.constant 0 : i32
    %c0_i32_0 = arith.constant 0 : i32
    %c0_i32_1 = arith.constant 0 : i32
    return %c0_i32, %c0_i32_0 : i32, i32
  }
  func.func @transform_21(%arg0: i32) -> (i32, i32, i32, i32) {
    %c0_i32 = arith.constant 0 : i32
    %c0_i32_0 = arith.constant 0 : i32
    %c0_i32_1 = arith.constant 0 : i32
    %c0_i32_2 = arith.constant 0 : i32
    return %c0_i32, %c0_i32_0, %arg0, %c0_i32_1 : i32, i32, i32, i32
  }
}

</mosaic_0001>

<llo_original>
// kernel: roi_feature_extractor.1
$region0: #{roi_feature_extractor.1}
  #allocation0 [shape = 'u32[]', space=smem, size = 0x4, offset = 0x4, fixed_abs, tag = 'smem constant byte address 0x4 - core index']
  #allocation1 [shape = 'u32[144,128]{1,0:T(1,128)}', space=vmem, size = 0x12000, scoped, tag = 'internal scratch']
  #allocation2 [shape = 'bf16[6,6,16,32]{3,2,1,0:T(16,128)(2,1)}', space=vmem, size = 0x24000, scoped, tag = 'scratch operand']
  %s0 = inlined_call_operand.vmem [shape: f32[4,4,32,64], index: 0, kind: input, shape index: {}]
  %s1 = inlined_call_operand.vmem [shape: bf16[64,32], index: 1, kind: input, shape index: {}]
  %s2 = inlined_call_operand.vmem [shape: f32[1,32], index: 2, kind: input, shape index: {}]
  %s3 = inlined_call_operand.vmem [shape: bf16[288,32], index: 3, kind: input, shape index: {}]
  %s4 = inlined_call_operand.vmem [shape: f32[1,32], index: 4, kind: input, shape index: {}]
  %s5 = inlined_call_operand.vmem [shape: bf16[32,128], index: 5, kind: input, shape index: {}]
  %s6 = inlined_call_operand.vmem [shape: f32[1,128], index: 6, kind: input, shape index: {}]
  %s7 = inlined_call_operand.vmem [shape: bf16[64,128], index: 7, kind: input, shape index: {}]
  %s8 = inlined_call_operand.vmem [shape: f32[1,128], index: 8, kind: input, shape index: {}]
  %s9 = inlined_call_operand.vmem [shape: bf16[128,32], index: 9, kind: input, shape index: {}]
  %s10 = inlined_call_operand.vmem [shape: f32[1,32], index: 10, kind: input, shape index: {}]
  %s11 = inlined_call_operand.vmem [shape: bf16[288,32], index: 11, kind: input, shape index: {}]
  %s12 = inlined_call_operand.vmem [shape: f32[1,32], index: 12, kind: input, shape index: {}]
  %s13 = inlined_call_operand.vmem [shape: bf16[32,128], index: 13, kind: input, shape index: {}]
  %s14 = inlined_call_operand.vmem [shape: f32[1,128], index: 14, kind: input, shape index: {}]
  %s15 = inlined_call_operand.vmem [shape: bf16[128,32], index: 15, kind: input, shape index: {}]
  %s16 = inlined_call_operand.vmem [shape: f32[1,32], index: 16, kind: input, shape index: {}]
  %s17 = inlined_call_operand.vmem [shape: bf16[288,32], index: 17, kind: input, shape index: {}]
  %s18 = inlined_call_operand.vmem [shape: f32[1,32], index: 18, kind: input, shape index: {}]
  %s19 = inlined_call_operand.vmem [shape: bf16[32,128], index: 19, kind: input, shape index: {}]
  %s20 = inlined_call_operand.vmem [shape: f32[1,128], index: 20, kind: input, shape index: {}]
  %s21 = inlined_call_operand.vmem [shape: f32[4,4,32,128], index: 21, kind: output, shape index: {}]
  %s22 = sld [smem:[#allocation0]]
  $region189: #{roi_feature_extractor.1} parent=0
    _
  %s24 = ssub.s32 1, %s22
  %s25 = scalar_select 0, %s24, %s22
  $region1: #{roi_feature_extractor.1} parent=0
    #allocation3 [shape = 'u8[262144]{0}', space=vmem, size = 0x40000, scoped, tag = 'input window, operand 0']
    #allocation4 [shape = 'u8[262144]{0}', space=vmem, size = 0x40000, scoped, tag = 'output window, operand 0']
    loop: start=0, step=1, limit=4
    $region2: #{roi_feature_extractor.1} parent=1 // loop_pre_header
      _
    $region3: #{roi_feature_extractor.1} parent=1 // loop_header
      %s27 = sphi 0, %s31
      %p28 = scmp.ge.s32.totalorder %s27, 4
      %s37 = sphi 0, %s39
      %s40 = sphi 0, %s37
      %s41 = sphi 0, %s40
      %s57 = sphi 0, %s41
      %s61 = sphi 0, %s61
      %s63 = sphi 0, %s61
      %s64 = sphi 0, %s63
      %s78 = sphi 0, %s64
      %s82 = sphi 0, %s82
      %s84 = sphi 0, %s82
      %s85 = sphi 0, %s84
      %s99 = sphi 0, %s85
      %s103 = sphi 0, %s103
      %s105 = sphi 0, %s103
      %s106 = sphi 0, %s105
      %s120 = sphi 0, %s106
      %s124 = sphi 0, %s124
      %s126 = sphi 0, %s124
      %s127 = sphi 0, %s126
      %s141 = sphi 0, %s127
      %s145 = sphi 0, %s145
      %s147 = sphi 0, %s145
      %s148 = sphi 0, %s147
      %s162 = sphi 0, %s148
      %s166 = sphi 0, %s166
      %s168 = sphi 0, %s166
      %s169 = sphi 0, %s168
      %s183 = sphi 0, %s169
      %s187 = sphi 0, %s187
      %s189 = sphi 0, %s187
      %s190 = sphi 0, %s189
      %s204 = sphi 0, %s190
      %s208 = sphi 0, %s208
      %s210 = sphi 0, %s208
      %s211 = sphi 0, %s210
      %s225 = sphi 0, %s211
      %s229 = sphi 0, %s229
      %s231 = sphi 0, %s229
      %s232 = sphi 0, %s231
      %s246 = sphi 0, %s232
      %s250 = sphi 0, %s250
      %s252 = sphi 0, %s250
      %s253 = sphi 0, %s252
      %s267 = sphi 0, %s253
      %s271 = sphi 0, %s271
      %s273 = sphi 0, %s271
      %s274 = sphi 0, %s273
      %s288 = sphi 0, %s274
      %s292 = sphi 0, %s292
      %s294 = sphi 0, %s292
      %s295 = sphi 0, %s294
      %s309 = sphi 0, %s295
      %s313 = sphi 0, %s313
      %s315 = sphi 0, %s313
      %s316 = sphi 0, %s315
      %s330 = sphi 0, %s316
      %s334 = sphi 0, %s334
      %s336 = sphi 0, %s334
      %s337 = sphi 0, %s336
      %s351 = sphi 0, %s337
      %s355 = sphi 0, %s355
      %s357 = sphi 0, %s355
      %s358 = sphi 0, %s357
      %s372 = sphi 0, %s358
      %s376 = sphi 0, %s376
      %s378 = sphi 0, %s376
      %s379 = sphi 0, %s378
      %s393 = sphi 0, %s379
      %s397 = sphi 0, %s397
      %s399 = sphi 0, %s397
      %s400 = sphi 0, %s399
      %s414 = sphi 0, %s400
      %s418 = sphi 0, %s418
      %s420 = sphi 0, %s418
      %s421 = sphi 0, %s420
      %s435 = sphi 0, %s421
      %s439 = sphi 0, %s439
      %s441 = sphi 0, %s439
      %s442 = sphi 0, %s441
      %s456 = sphi 0, %s442
      %s460 = sphi 0, %s460
      %s462 = sphi 0, %s460
      %s463 = sphi 0, %s462
      %s477 = sphi 0, %s463
      %s483 = sphi 0, %s485
      %s486 = sphi 0, %s483
      %s487 = sphi 0, %s486
      %s503 = sphi 0, %s487
    $region4: #{roi_feature_extractor.1} parent=1 // loop_header_branch
      %30 = sbr.rel (%p28) target = $region8
    $region5: #{roi_feature_extractor.1} parent=1 // loop_body
      %s32 = ssub.s32 %s27, 1
      %s33 = ssub.s32 %s27, 2
      %s34 = sadd.s32 %s27, 1
      %s35 = ssub.s32 %s27, %s34
      %p36 = scmp.eq.s32.totalorder %s35, 0
      %s38 = sadd.s32 %s37, 1
      %s39 = scalar_select %p36, %s37, %s38
      %p42 = pneg %p36
      %p43 = scmp.eq.s32.totalorder %s27, 1
      %p44 = por %p42, %p43
      %p45 = scmp.ne.s32.totalorder %s37, %s40
      %p46 = scmp.eq.s32.totalorder %s27, 0
      %p47 = por %p45, %p46
      %p48 = scmp.ne.s32.totalorder %s37, %s40
      %p49 = scmp.eq.s32.totalorder %s32, 1
      %p50 = por %p48, %p49
      %p51 = scmp.ne.s32.totalorder %s40, %s41
      %p52 = scmp.eq.s32.totalorder %s32, 0
      %p53 = por %p51, %p52
      %p54 = scmp.ne.s32.totalorder %s40, %s41
      %p55 = scmp.eq.s32.totalorder %s33, 1
      %p56 = por %p54, %p55
      %p58 = scmp.ne.s32.totalorder %s41, %s57
      %p59 = scmp.eq.s32.totalorder %s33, 0
      %p60 = por %p58, %p59
      %s62 = sadd.s32 %s61, 1
      %p65 = scmp.eq.s32.totalorder %s27, 1
      %p66 = scmp.ne.s32.totalorder %s61, %s63
      %p67 = scmp.eq.s32.totalorder %s27, 0
      %p68 = por %p66, %p67
      %p69 = scmp.ne.s32.totalorder %s61, %s63
      %p70 = scmp.eq.s32.totalorder %s32, 1
      %p71 = por %p69, %p70
      %p72 = scmp.ne.s32.totalorder %s63, %s64
      %p73 = scmp.eq.s32.totalorder %s32, 0
      %p74 = por %p72, %p73
      %p75 = scmp.ne.s32.totalorder %s63, %s64
      %p76 = scmp.eq.s32.totalorder %s33, 1
      %p77 = por %p75, %p76
      %p79 = scmp.ne.s32.totalorder %s64, %s78
      %p80 = scmp.eq.s32.totalorder %s33, 0
      %p81 = por %p79, %p80
      %s83 = sadd.s32 %s82, 1
      %p86 = scmp.eq.s32.totalorder %s27, 1
      %p87 = scmp.ne.s32.totalorder %s82, %s84
      %p88 = scmp.eq.s32.totalorder %s27, 0
      %p89 = por %p87, %p88
      %p90 = scmp.ne.s32.totalorder %s82, %s84
      %p91 = scmp.eq.s32.totalorder %s32, 1
      %p92 = por %p90, %p91
      %p93 = scmp.ne.s32.totalorder %s84, %s85
      %p94 = scmp.eq.s32.totalorder %s32, 0
      %p95 = por %p93, %p94
      %p96 = scmp.ne.s32.totalorder %s84, %s85
      %p97 = scmp.eq.s32.totalorder %s33, 1
      %p98 = por %p96, %p97
      %p100 = scmp.ne.s32.totalorder %s85, %s99
      %p101 = scmp.eq.s32.totalorder %s33, 0
      %p102 = por %p100, %p101
      %s104 = sadd.s32 %s103, 1
      %p107 = scmp.eq.s32.totalorder %s27, 1
      %p108 = scmp.ne.s32.totalorder %s103, %s105
      %p109 = scmp.eq.s32.totalorder %s27, 0
      %p110 = por %p108, %p109
      %p111 = scmp.ne.s32.totalorder %s103, %s105
      %p112 = scmp.eq.s32.totalorder %s32, 1
      %p113 = por %p111, %p112
      %p114 = scmp.ne.s32.totalorder %s105, %s106
      %p115 = scmp.eq.s32.totalorder %s32, 0
      %p116 = por %p114, %p115
      %p117 = scmp.ne.s32.totalorder %s105, %s106
      %p118 = scmp.eq.s32.totalorder %s33, 1
      %p119 = por %p117, %p118
      %p121 = scmp.ne.s32.totalorder %s106, %s120
      %p122 = scmp.eq.s32.totalorder %s33, 0
      %p123 = por %p121, %p122
      %s125 = sadd.s32 %s124, 1
      %p128 = scmp.eq.s32.totalorder %s27, 1
      %p129 = scmp.ne.s32.totalorder %s124, %s126
      %p130 = scmp.eq.s32.totalorder %s27, 0
      %p131 = por %p129, %p130
      %p132 = scmp.ne.s32.totalorder %s124, %s126
      %p133 = scmp.eq.s32.totalorder %s32, 1
      %p134 = por %p132, %p133
      %p135 = scmp.ne.s32.totalorder %s126, %s127
      %p136 = scmp.eq.s32.totalorder %s32, 0
      %p137 = por %p135, %p136
      %p138 = scmp.ne.s32.totalorder %s126, %s127
      %p139 = scmp.eq.s32.totalorder %s33, 1
      %p140 = por %p138, %p139
      %p142 = scmp.ne.s32.totalorder %s127, %s141
      %p143 = scmp.eq.s32.totalorder %s33, 0
      %p144 = por %p142, %p143
      %s146 = sadd.s32 %s145, 1
      %p149 = scmp.eq.s32.totalorder %s27, 1
      %p150 = scmp.ne.s32.totalorder %s145, %s147
      %p151 = scmp.eq.s32.totalorder %s27, 0
      %p152 = por %p150, %p151
      %p153 = scmp.ne.s32.totalorder %s145, %s147
      %p154 = scmp.eq.s32.totalorder %s32, 1
      %p155 = por %p153, %p154
      %p156 = scmp.ne.s32.totalorder %s147, %s148
      %p157 = scmp.eq.s32.totalorder %s32, 0
      %p158 = por %p156, %p157
      %p159 = scmp.ne.s32.totalorder %s147, %s148
      %p160 = scmp.eq.s32.totalorder %s33, 1
      %p161 = por %p159, %p160
      %p163 = scmp.ne.s32.totalorder %s148, %s162
      %p164 = scmp.eq.s32.totalorder %s33, 0
      %p165 = por %p163, %p164
      %s167 = sadd.s32 %s166, 1
      %p170 = scmp.eq.s32.totalorder %s27, 1
      %p171 = scmp.ne.s32.totalorder %s166, %s168
      %p172 = scmp.eq.s32.totalorder %s27, 0
      %p173 = por %p171, %p172
      %p174 = scmp.ne.s32.totalorder %s166, %s168
      %p175 = scmp.eq.s32.totalorder %s32, 1
      %p176 = por %p174, %p175
      %p177 = scmp.ne.s32.totalorder %s168, %s169
      %p178 = scmp.eq.s32.totalorder %s32, 0
      %p179 = por %p177, %p178
      %p180 = scmp.ne.s32.totalorder %s168, %s169
      %p181 = scmp.eq.s32.totalorder %s33, 1
      %p182 = por %p180, %p181
      %p184 = scmp.ne.s32.totalorder %s169, %s183
      %p185 = scmp.eq.s32.totalorder %s33, 0
      %p186 = por %p184, %p185
      %s188 = sadd.s32 %s187, 1
      %p191 = scmp.eq.s32.totalorder %s27, 1
      %p192 = scmp.ne.s32.totalorder %s187, %s189
      %p193 = scmp.eq.s32.totalorder %s27, 0
      %p194 = por %p192, %p193
      %p195 = scmp.ne.s32.totalorder %s187, %s189
      %p196 = scmp.eq.s32.totalorder %s32, 1
      %p197 = por %p195, %p196
      %p198 = scmp.ne.s32.totalorder %s189, %s190
      %p199 = scmp.eq.s32.totalorder %s32, 0
      %p200 = por %p198, %p199
      %p201 = scmp.ne.s32.totalorder %s189, %s190
      %p202 = scmp.eq.s32.totalorder %s33, 1
      %p203 = por %p201, %p202
      %p205 = scmp.ne.s32.totalorder %s190, %s204
      %p206 = scmp.eq.s32.totalorder %s33, 0
      %p207 = por %p205, %p206
      %s209 = sadd.s32 %s208, 1
      %p212 = scmp.eq.s32.totalorder %s27, 1
      %p213 = scmp.ne.s32.totalorder %s208, %s210
      %p214 = scmp.eq.s32.totalorder %s27, 0
      %p215 = por %p213, %p214
      %p216 = scmp.ne.s32.totalorder %s208, %s210
      %p217 = scmp.eq.s32.totalorder %s32, 1
      %p218 = por %p216, %p217
      %p219 = scmp.ne.s32.totalorder %s210, %s211
      %p220 = scmp.eq.s32.totalorder %s32, 0
      %p221 = por %p219, %p220
      %p222 = scmp.ne.s32.totalorder %s210, %s211
      %p223 = scmp.eq.s32.totalorder %s33, 1
      %p224 = por %p222, %p223
      %p226 = scmp.ne.s32.totalorder %s211, %s225
      %p227 = scmp.eq.s32.totalorder %s33, 0
      %p228 = por %p226, %p227
      %s230 = sadd.s32 %s229, 1
      %p233 = scmp.eq.s32.totalorder %s27, 1
      %p234 = scmp.ne.s32.totalorder %s229, %s231
      %p235 = scmp.eq.s32.totalorder %s27, 0
      %p236 = por %p234, %p235
      %p237 = scmp.ne.s32.totalorder %s229, %s231
      %p238 = scmp.eq.s32.totalorder %s32, 1
      %p239 = por %p237, %p238
      %p240 = scmp.ne.s32.totalorder %s231, %s232
      %p241 = scmp.eq.s32.totalorder %s32, 0
      %p242 = por %p240, %p241
      %p243 = scmp.ne.s32.totalorder %s231, %s232
      %p244 = scmp.eq.s32.totalorder %s33, 1
      %p245 = por %p243, %p244
      %p247 = scmp.ne.s32.totalorder %s232, %s246
      %p248 = scmp.eq.s32.totalorder %s33, 0
      %p249 = por %p247, %p248
      %s251 = sadd.s32 %s250, 1
      %p254 = scmp.eq.s32.totalorder %s27, 1
      %p255 = scmp.ne.s32.totalorder %s250, %s252
      %p256 = scmp.eq.s32.totalorder %s27, 0
      %p257 = por %p255, %p256
      %p258 = scmp.ne.s32.totalorder %s250, %s252
      %p259 = scmp.eq.s32.totalorder %s32, 1
      %p260 = por %p258, %p259
      %p261 = scmp.ne.s32.totalorder %s252, %s253
      %p262 = scmp.eq.s32.totalorder %s32, 0
      %p263 = por %p261, %p262
      %p264 = scmp.ne.s32.totalorder %s252, %s253
      %p265 = scmp.eq.s32.totalorder %s33, 1
      %p266 = por %p264, %p265
      %p268 = scmp.ne.s32.totalorder %s253, %s267
      %p269 = scmp.eq.s32.totalorder %s33, 0
      %p270 = por %p268, %p269
      %s272 = sadd.s32 %s271, 1
      %p275 = scmp.eq.s32.totalorder %s27, 1
      %p276 = scmp.ne.s32.totalorder %s271, %s273
      %p277 = scmp.eq.s32.totalorder %s27, 0
      %p278 = por %p276, %p277
      %p279 = scmp.ne.s32.totalorder %s271, %s273
      %p280 = scmp.eq.s32.totalorder %s32, 1
      %p281 = por %p279, %p280
      %p282 = scmp.ne.s32.totalorder %s273, %s274
      %p283 = scmp.eq.s32.totalorder %s32, 0
      %p284 = por %p282, %p283
      %p285 = scmp.ne.s32.totalorder %s273, %s274
      %p286 = scmp.eq.s32.totalorder %s33, 1
      %p287 = por %p285, %p286
      %p289 = scmp.ne.s32.totalorder %s274, %s288
      %p290 = scmp.eq.s32.totalorder %s33, 0
      %p291 = por %p289, %p290
      %s293 = sadd.s32 %s292, 1
      %p296 = scmp.eq.s32.totalorder %s27, 1
      %p297 = scmp.ne.s32.totalorder %s292, %s294
      %p298 = scmp.eq.s32.totalorder %s27, 0
      %p299 = por %p297, %p298
      %p300 = scmp.ne.s32.totalorder %s292, %s294
      %p301 = scmp.eq.s32.totalorder %s32, 1
      %p302 = por %p300, %p301
      %p303 = scmp.ne.s32.totalorder %s294, %s295
      %p304 = scmp.eq.s32.totalorder %s32, 0
      %p305 = por %p303, %p304
      %p306 = scmp.ne.s32.totalorder %s294, %s295
      %p307 = scmp.eq.s32.totalorder %s33, 1
      %p308 = por %p306, %p307
      %p310 = scmp.ne.s32.totalorder %s295, %s309
      %p311 = scmp.eq.s32.totalorder %s33, 0
      %p312 = por %p310, %p311
      %s314 = sadd.s32 %s313, 1
      %p317 = scmp.eq.s32.totalorder %s27, 1
      %p318 = scmp.ne.s32.totalorder %s313, %s315
      %p319 = scmp.eq.s32.totalorder %s27, 0
      %p320 = por %p318, %p319
      %p321 = scmp.ne.s32.totalorder %s313, %s315
      %p322 = scmp.eq.s32.totalorder %s32, 1
      %p323 = por %p321, %p322
      %p324 = scmp.ne.s32.totalorder %s315, %s316
      %p325 = scmp.eq.s32.totalorder %s32, 0
      %p326 = por %p324, %p325
      %p327 = scmp.ne.s32.totalorder %s315, %s316
      %p328 = scmp.eq.s32.totalorder %s33, 1
      %p329 = por %p327, %p328
      %p331 = scmp.ne.s32.totalorder %s316, %s330
      %p332 = scmp.eq.s32.totalorder %s33, 0
      %p333 = por %p331, %p332
      %s335 = sadd.s32 %s334, 1
      %p338 = scmp.eq.s32.totalorder %s27, 1
      %p339 = scmp.ne.s32.totalorder %s334, %s336
      %p340 = scmp.eq.s32.totalorder %s27, 0
      %p341 = por %p339, %p340
      %p342 = scmp.ne.s32.totalorder %s334, %s336
      %p343 = scmp.eq.s32.totalorder %s32, 1
      %p344 = por %p342, %p343
      %p345 = scmp.ne.s32.totalorder %s336, %s337
      %p346 = scmp.eq.s32.totalorder %s32, 0
      %p347 = por %p345, %p346
      %p348 = scmp.ne.s32.totalorder %s336, %s337
      %p349 = scmp.eq.s32.totalorder %s33, 1
      %p350 = por %p348, %p349
      %p352 = scmp.ne.s32.totalorder %s337, %s351
      %p353 = scmp.eq.s32.totalorder %s33, 0
      %p354 = por %p352, %p353
      %s356 = sadd.s32 %s355, 1
      %p359 = scmp.eq.s32.totalorder %s27, 1
      %p360 = scmp.ne.s32.totalorder %s355, %s357
      %p361 = scmp.eq.s32.totalorder %s27, 0
      %p362 = por %p360, %p361
      %p363 = scmp.ne.s32.totalorder %s355, %s357
      %p364 = scmp.eq.s32.totalorder %s32, 1
      %p365 = por %p363, %p364
      %p366 = scmp.ne.s32.totalorder %s357, %s358
      %p367 = scmp.eq.s32.totalorder %s32, 0
      %p368 = por %p366, %p367
      %p369 = scmp.ne.s32.totalorder %s357, %s358
      %p370 = scmp.eq.s32.totalorder %s33, 1
      %p371 = por %p369, %p370
      %p373 = scmp.ne.s32.totalorder %s358, %s372
      %p374 = scmp.eq.s32.totalorder %s33, 0
      %p375 = por %p373, %p374
      %s377 = sadd.s32 %s376, 1
      %p380 = scmp.eq.s32.totalorder %s27, 1
      %p381 = scmp.ne.s32.totalorder %s376, %s378
      %p382 = scmp.eq.s32.totalorder %s27, 0
      %p383 = por %p381, %p382
      %p384 = scmp.ne.s32.totalorder %s376, %s378
      %p385 = scmp.eq.s32.totalorder %s32, 1
      %p386 = por %p384, %p385
      %p387 = scmp.ne.s32.totalorder %s378, %s379
      %p388 = scmp.eq.s32.totalorder %s32, 0
      %p389 = por %p387, %p388
      %p390 = scmp.ne.s32.totalorder %s378, %s379
      %p391 = scmp.eq.s32.totalorder %s33, 1
      %p392 = por %p390, %p391
      %p394 = scmp.ne.s32.totalorder %s379, %s393
      %p395 = scmp.eq.s32.totalorder %s33, 0
      %p396 = por %p394, %p395
      %s398 = sadd.s32 %s397, 1
      %p401 = scmp.eq.s32.totalorder %s27, 1
      %p402 = scmp.ne.s32.totalorder %s397, %s399
      %p403 = scmp.eq.s32.totalorder %s27, 0
      %p404 = por %p402, %p403
      %p405 = scmp.ne.s32.totalorder %s397, %s399
      %p406 = scmp.eq.s32.totalorder %s32, 1
      %p407 = por %p405, %p406
      %p408 = scmp.ne.s32.totalorder %s399, %s400
      %p409 = scmp.eq.s32.totalorder %s32, 0
      %p410 = por %p408, %p409
      %p411 = scmp.ne.s32.totalorder %s399, %s400
      %p412 = scmp.eq.s32.totalorder %s33, 1
      %p413 = por %p411, %p412
      %p415 = scmp.ne.s32.totalorder %s400, %s414
      %p416 = scmp.eq.s32.totalorder %s33, 0
      %p417 = por %p415, %p416
      %s419 = sadd.s32 %s418, 1
      %p422 = scmp.eq.s32.totalorder %s27, 1
      %p423 = scmp.ne.s32.totalorder %s418, %s420
      %p424 = scmp.eq.s32.totalorder %s27, 0
      %p425 = por %p423, %p424
      %p426 = scmp.ne.s32.totalorder %s418, %s420
      %p427 = scmp.eq.s32.totalorder %s32, 1
      %p428 = por %p426, %p427
      %p429 = scmp.ne.s32.totalorder %s420, %s421
      %p430 = scmp.eq.s32.totalorder %s32, 0
      %p431 = por %p429, %p430
      %p432 = scmp.ne.s32.totalorder %s420, %s421
      %p433 = scmp.eq.s32.totalorder %s33, 1
      %p434 = por %p432, %p433
      %p436 = scmp.ne.s32.totalorder %s421, %s435
      %p437 = scmp.eq.s32.totalorder %s33, 0
      %p438 = por %p436, %p437
      %s440 = sadd.s32 %s439, 1
      %p443 = scmp.eq.s32.totalorder %s27, 1
      %p444 = scmp.ne.s32.totalorder %s439, %s441
      %p445 = scmp.eq.s32.totalorder %s27, 0
      %p446 = por %p444, %p445
      %p447 = scmp.ne.s32.totalorder %s439, %s441
      %p448 = scmp.eq.s32.totalorder %s32, 1
      %p449 = por %p447, %p448
      %p450 = scmp.ne.s32.totalorder %s441, %s442
      %p451 = scmp.eq.s32.totalorder %s32, 0
      %p452 = por %p450, %p451
      %p453 = scmp.ne.s32.totalorder %s441, %s442
      %p454 = scmp.eq.s32.totalorder %s33, 1
      %p455 = por %p453, %p454
      %p457 = scmp.ne.s32.totalorder %s442, %s456
      %p458 = scmp.eq.s32.totalorder %s33, 0
      %p459 = por %p457, %p458
      %s461 = sadd.s32 %s460, 1
      %p464 = scmp.eq.s32.totalorder %s27, 1
      %p465 = scmp.ne.s32.totalorder %s460, %s462
      %p466 = scmp.eq.s32.totalorder %s27, 0
      %p467 = por %p465, %p466
      %p468 = scmp.ne.s32.totalorder %s460, %s462
      %p469 = scmp.eq.s32.totalorder %s32, 1
      %p470 = por %p468, %p469
      %p471 = scmp.ne.s32.totalorder %s462, %s463
      %p472 = scmp.eq.s32.totalorder %s32, 0
      %p473 = por %p471, %p472
      %p474 = scmp.ne.s32.totalorder %s462, %s463
      %p475 = scmp.eq.s32.totalorder %s33, 1
      %p476 = por %p474, %p475
      %p478 = scmp.ne.s32.totalorder %s463, %s477
      %p479 = scmp.eq.s32.totalorder %s33, 0
      %p480 = por %p478, %p479
      %s481 = ssub.s32 %s27, %s34
      %p482 = scmp.eq.s32.totalorder %s481, 0
      %s484 = sadd.s32 %s483, 1
      %s485 = scalar_select %p482, %s483, %s484
      %p488 = pneg %p482
      %p489 = scmp.eq.s32.totalorder %s27, 1
      %p490 = por %p488, %p489
      %p491 = scmp.ne.s32.totalorder %s483, %s486
      %p492 = scmp.eq.s32.totalorder %s27, 0
      %p493 = por %p491, %p492
      %p494 = scmp.ne.s32.totalorder %s483, %s486
      %p495 = scmp.eq.s32.totalorder %s32, 1
      %p496 = por %p494, %p495
      %p497 = scmp.ne.s32.totalorder %s486, %s487
      %p498 = scmp.eq.s32.totalorder %s32, 0
      %p499 = por %p497, %p498
      %p500 = scmp.ne.s32.totalorder %s486, %s487
      %p501 = scmp.eq.s32.totalorder %s33, 1
      %p502 = por %p500, %p501
      %p504 = scmp.ne.s32.totalorder %s487, %s503
      %p505 = scmp.eq.s32.totalorder %s33, 0
      %p506 = por %p504, %p505
      %p507 = scmp.le.s32.totalorder 1, %s27
      %p508 = scmp.lt.s32.totalorder %s27, 3
      %p509 = pnand %p507, %p508
      %p510 = pneg %p509
      // Predicated region
      $region9: #{roi_feature_extractor.1} parent=5 // pred_check
        _
      $region10: #{roi_feature_extractor.1} parent=5 // pred_check_branch
        %512 = sbr.rel (%p509) target = $region12
      $region11: #{roi_feature_extractor.1} parent=5 // pred_region
        %s513 = ssub.s32 %s27, 1
        // Predicated region
        $region13: #{roi_feature_extractor.1} parent=11 // pred_check
          %p514 = pneg %p74
        $region14: #{roi_feature_extractor.1} parent=11 // pred_check_branch
          %516 = sbr.rel (%p514) target = $region16
        $region15: #{roi_feature_extractor.1} parent=11 // pred_region
          _
        $region16: #{roi_feature_extractor.1} parent=11 // pred_fallthru
          _
        // Predicated region
        $region17: #{roi_feature_extractor.1} parent=11 // pred_check
          %p517 = pneg %p95
        $region18: #{roi_feature_extractor.1} parent=11 // pred_check_branch
          %519 = sbr.rel (%p517) target = $region20
        $region19: #{roi_feature_extractor.1} parent=11 // pred_region
          _
        $region20: #{roi_feature_extractor.1} parent=11 // pred_fallthru
          _
        // Predicated region
        $region21: #{roi_feature_extractor.1} parent=11 // pred_check
          %p520 = pneg %p116
        $region22: #{roi_feature_extractor.1} parent=11 // pred_check_branch
          %522 = sbr.rel (%p520) target = $region24
        $region23: #{roi_feature_extractor.1} parent=11 // pred_region
          _
        $region24: #{roi_feature_extractor.1} parent=11 // pred_fallthru
          _
        // Predicated region
        $region25: #{roi_feature_extractor.1} parent=11 // pred_check
          %p523 = pneg %p137
        $region26: #{roi_feature_extractor.1} parent=11 // pred_check_branch
          %525 = sbr.rel (%p523) target = $region28
        $region27: #{roi_feature_extractor.1} parent=11 // pred_region
          _
        $region28: #{roi_feature_extractor.1} parent=11 // pred_fallthru
          _
        // Predicated region
        $region29: #{roi_feature_extractor.1} parent=11 // pred_check
          %p526 = pneg %p158
        $region30: #{roi_feature_extractor.1} parent=11 // pred_check_branch
          %528 = sbr.rel (%p526) target = $region32
        $region31: #{roi_feature_extractor.1} parent=11 // pred_region
          _
        $region32: #{roi_feature_extractor.1} parent=11 // pred_fallthru
          _
        // Predicated region
        $region33: #{roi_feature_extractor.1} parent=11 // pred_check
          %p529 = pneg %p179
        $region34: #{roi_feature_extractor.1} parent=11 // pred_check_branch
          %531 = sbr.rel (%p529) target = $region36
        $region35: #{roi_feature_extractor.1} parent=11 // pred_region
          _
        $region36: #{roi_feature_extractor.1} parent=11 // pred_fallthru
          _
        // Predicated region
        $region37: #{roi_feature_extractor.1} parent=11 // pred_check
          %p532 = pneg %p200
        $region38: #{roi_feature_extractor.1} parent=11 // pred_check_branch
          %534 = sbr.rel (%p532) target = $region40
        $region39: #{roi_feature_extractor.1} parent=11 // pred_region
          _
        $region40: #{roi_feature_extractor.1} parent=11 // pred_fallthru
          _
        // Predicated region
        $region41: #{roi_feature_extractor.1} parent=11 // pred_check
          %p535 = pneg %p221
        $region42: #{roi_feature_extractor.1} parent=11 // pred_check_branch
          %537 = sbr.rel (%p535) target = $region44
        $region43: #{roi_feature_extractor.1} parent=11 // pred_region
          _
        $region44: #{roi_feature_extractor.1} parent=11 // pred_fallthru
          _
        // Predicated region
        $region45: #{roi_feature_extractor.1} parent=11 // pred_check
          %p538 = pneg %p242
        $region46: #{roi_feature_extractor.1} parent=11 // pred_check_branch
          %540 = sbr.rel (%p538) target = $region48
        $region47: #{roi_feature_extractor.1} parent=11 // pred_region
          _
        $region48: #{roi_feature_extractor.1} parent=11 // pred_fallthru
          _
        // Predicated region
        $region49: #{roi_feature_extractor.1} parent=11 // pred_check
          %p541 = pneg %p263
        $region50: #{roi_feature_extractor.1} parent=11 // pred_check_branch
          %543 = sbr.rel (%p541) target = $region52
        $region51: #{roi_feature_extractor.1} parent=11 // pred_region
          _
        $region52: #{roi_feature_extractor.1} parent=11 // pred_fallthru
          _
        // Predicated region
        $region53: #{roi_feature_extractor.1} parent=11 // pred_check
          %p544 = pneg %p284
        $region54: #{roi_feature_extractor.1} parent=11 // pred_check_branch
          %546 = sbr.rel (%p544) target = $region56
        $region55: #{roi_feature_extractor.1} parent=11 // pred_region
          _
        $region56: #{roi_feature_extractor.1} parent=11 // pred_fallthru
          _
        // Predicated region
        $region57: #{roi_feature_extractor.1} parent=11 // pred_check
          %p547 = pneg %p305
        $region58: #{roi_feature_extractor.1} parent=11 // pred_check_branch
          %549 = sbr.rel (%p547) target = $region60
        $region59: #{roi_feature_extractor.1} parent=11 // pred_region
          _
        $region60: #{roi_feature_extractor.1} parent=11 // pred_fallthru
          _
        // Predicated region
        $region61: #{roi_feature_extractor.1} parent=11 // pred_check
          %p550 = pneg %p326
        $region62: #{roi_feature_extractor.1} parent=11 // pred_check_branch
          %552 = sbr.rel (%p550) target = $region64
        $region63: #{roi_feature_extractor.1} parent=11 // pred_region
          _
        $region64: #{roi_feature_extractor.1} parent=11 // pred_fallthru
          _
        // Predicated region
        $region65: #{roi_feature_extractor.1} parent=11 // pred_check
          %p553 = pneg %p347
        $region66: #{roi_feature_extractor.1} parent=11 // pred_check_branch
          %555 = sbr.rel (%p553) target = $region68
        $region67: #{roi_feature_extractor.1} parent=11 // pred_region
          _
        $region68: #{roi_feature_extractor.1} parent=11 // pred_fallthru
          _
        // Predicated region
        $region69: #{roi_feature_extractor.1} parent=11 // pred_check
          %p556 = pneg %p368
        $region70: #{roi_feature_extractor.1} parent=11 // pred_check_branch
          %558 = sbr.rel (%p556) target = $region72
        $region71: #{roi_feature_extractor.1} parent=11 // pred_region
          _
        $region72: #{roi_feature_extractor.1} parent=11 // pred_fallthru
          _
        // Predicated region
        $region73: #{roi_feature_extractor.1} parent=11 // pred_check
          %p559 = pneg %p389
        $region74: #{roi_feature_extractor.1} parent=11 // pred_check_branch
          %561 = sbr.rel (%p559) target = $region76
        $region75: #{roi_feature_extractor.1} parent=11 // pred_region
          _
        $region76: #{roi_feature_extractor.1} parent=11 // pred_fallthru
          _
        // Predicated region
        $region77: #{roi_feature_extractor.1} parent=11 // pred_check
          %p562 = pneg %p410
        $region78: #{roi_feature_extractor.1} parent=11 // pred_check_branch
          %564 = sbr.rel (%p562) target = $region80
        $region79: #{roi_feature_extractor.1} parent=11 // pred_region
          _
        $region80: #{roi_feature_extractor.1} parent=11 // pred_fallthru
          _
        // Predicated region
        $region81: #{roi_feature_extractor.1} parent=11 // pred_check
          %p565 = pneg %p431
        $region82: #{roi_feature_extractor.1} parent=11 // pred_check_branch
          %567 = sbr.rel (%p565) target = $region84
        $region83: #{roi_feature_extractor.1} parent=11 // pred_region
          _
        $region84: #{roi_feature_extractor.1} parent=11 // pred_fallthru
          _
        // Predicated region
        $region85: #{roi_feature_extractor.1} parent=11 // pred_check
          %p568 = pneg %p452
        $region86: #{roi_feature_extractor.1} parent=11 // pred_check_branch
          %570 = sbr.rel (%p568) target = $region88
        $region87: #{roi_feature_extractor.1} parent=11 // pred_region
          _
        $region88: #{roi_feature_extractor.1} parent=11 // pred_fallthru
          _
        // Predicated region
        $region89: #{roi_feature_extractor.1} parent=11 // pred_check
          %p571 = pneg %p473
        $region90: #{roi_feature_extractor.1} parent=11 // pred_check_branch
          %573 = sbr.rel (%p571) target = $region92
        $region91: #{roi_feature_extractor.1} parent=11 // pred_region
          _
        $region92: #{roi_feature_extractor.1} parent=11 // pred_fallthru
          _
      $region12: #{roi_feature_extractor.1} parent=5 // pred_fallthru
        _
      %p574 = scmp.lt.s32.totalorder %s27, 2
      // Predicated region
      $region93: #{roi_feature_extractor.1} parent=5 // pred_check
        %p575 = pneg %p574
      $region94: #{roi_feature_extractor.1} parent=5 // pred_check_branch
        %577 = sbr.rel (%p575) target = $region96
      $region95: #{roi_feature_extractor.1} parent=5 // pred_region
        // Predicated region
        $region97: #{roi_feature_extractor.1} parent=95 // pred_check
          %p578 = pneg %p47
        $region98: #{roi_feature_extractor.1} parent=95 // pred_check_branch
          %580 = sbr.rel (%p578) target = $region100
        $region99: #{roi_feature_extractor.1} parent=95 // pred_region
          %s581 = sand.u32 %s37, 1
          %s582 = sand.u32 %s37, 1
          %s583 = smul.addr %s582, 256
          %s584 = scalar_lea.vmem [#allocation3], %s583
          %s585 = smul.u32 2, %s27
          %s586 = smul.addr %s585, 8
          %s587 = scalar_lea.vmem %s0, %s586
          // Predicated region
          $region101: #{roi_feature_extractor.1} parent=99 // pred_check
            _
          $region102: #{roi_feature_extractor.1} parent=99 // pred_check_branch
            %589 = sbr.rel (0) target = $region104
          $region103: #{roi_feature_extractor.1} parent=99 // pred_region
            // Predicated region
            $region105: #{roi_feature_extractor.1} parent=103 // pred_check
              _
            $region106: #{roi_feature_extractor.1} parent=103 // pred_check_branch
              %591 = sbr.rel (0) target = $region108
            $region107: #{roi_feature_extractor.1} parent=103 // pred_region
              // Predicated region
              $region120: #{roi_feature_extractor.1} parent=107 // pred_check
                _
              $region121: #{roi_feature_extractor.1} parent=107 // pred_check_branch
                %668 = sbr.rel (0) target = $region123
              $region122: #{roi_feature_extractor.1} parent=107 // pred_region
                loop: start=0, step=1, limit=1
                $region124: #{roi_feature_extractor.1} parent=122 // loop_pre_header
                  _
                $region125: #{roi_feature_extractor.1} parent=122 // loop_header
                  %s670 = sphi 0, %s674
                  %p671 = scmp.ge.s32.totalorder %s670, 1
                  %s675 = sphi %s587, %s587
                  %s676 = sphi %s584, %s584
                $region126: #{roi_feature_extractor.1} parent=122 // loop_header_branch
                  %673 = sbr.rel (%p671) target = $region130
                $region127: #{roi_feature_extractor.1} parent=122 // loop_body
                  %v677 = vld [vmem:[%s675] sm:$0xff]
                  %678 = vst [vmem:[%s676] sm:$0xff] %v677
                  %v679 = vld [vmem:[%s675 + $0x8] sm:$0xff]
                  %680 = vst [vmem:[%s676 + $0x8] sm:$0xff] %v679
                  %v681 = vld [vmem:[%s675 + $0x20] sm:$0xff]
                  %682 = vst [vmem:[%s676 + $0x10] sm:$0xff] %v681
                  %v683 = vld [vmem:[%s675 + $0x28] sm:$0xff]
                  %684 = vst [vmem:[%s676 + $0x18] sm:$0xff] %v683
                  %v685 = vld [vmem:[%s675 + $0x40] sm:$0xff]
                  %686 = vst [vmem:[%s676 + $0x20] sm:$0xff] %v685
                  %v687 = vld [vmem:[%s675 + $0x48] sm:$0xff]
                  %688 = vst [vmem:[%s676 + $0x28] sm:$0xff] %v687
                  %v689 = vld [vmem:[%s675 + $0x60] sm:$0xff]
                  %690 = vst [vmem:[%s676 + $0x30] sm:$0xff] %v689
                  %v691 = vld [vmem:[%s675 + $0x68] sm:$0xff]
                  %692 = vst [vmem:[%s676 + $0x38] sm:$0xff] %v691
                  %v693 = vld [vmem:[%s675 + $0x80] sm:$0xff]
                  %694 = vst [vmem:[%s676 + $0x40] sm:$0xff] %v693
                  %v695 = vld [vmem:[%s675 + $0x88] sm:$0xff]
                  %696 = vst [vmem:[%s676 + $0x48] sm:$0xff] %v695
                  %v697 = vld [vmem:[%s675 + $0xa0] sm:$0xff]
                  %698 = vst [vmem:[%s676 + $0x50] sm:$0xff] %v697
                  %v699 = vld [vmem:[%s675 + $0xa8] sm:$0xff]
                  %700 = vst [vmem:[%s676 + $0x58] sm:$0xff] %v699
                  %v701 = vld [vmem:[%s675 + $0xc0] sm:$0xff]
                  %702 = vst [vmem:[%s676 + $0x60] sm:$0xff] %v701
                  %v703 = vld [vmem:[%s675 + $0xc8] sm:$0xff]
                  %704 = vst [vmem:[%s676 + $0x68] sm:$0xff] %v703
                  %v705 = vld [vmem:[%s675 + $0xe0] sm:$0xff]
                  %706 = vst [vmem:[%s676 + $0x70] sm:$0xff] %v705
                  %v707 = vld [vmem:[%s675 + $0xe8] sm:$0xff]
                  %708 = vst [vmem:[%s676 + $0x78] sm:$0xff] %v707
                  %v709 = vld [vmem:[%s675 + $0x100] sm:$0xff]
                  %710 = vst [vmem:[%s676 + $0x80] sm:$0xff] %v709
                  %v711 = vld [vmem:[%s675 + $0x108] sm:$0xff]
                  %712 = vst [vmem:[%s676 + $0x88] sm:$0xff] %v711
                  %v713 = vld [vmem:[%s675 + $0x120] sm:$0xff]
                  %714 = vst [vmem:[%s676 + $0x90] sm:$0xff] %v713
                  %v715 = vld [vmem:[%s675 + $0x128] sm:$0xff]
                  %716 = vst [vmem:[%s676 + $0x98] sm:$0xff] %v715
                  %v717 = vld [vmem:[%s675 + $0x140] sm:$0xff]
                  %718 = vst [vmem:[%s676 + $0xa0] sm:$0xff] %v717
                  %v719 = vld [vmem:[%s675 + $0x148] sm:$0xff]
                  %720 = vst [vmem:[%s676 + $0xa8] sm:$0xff] %v719
                  %v721 = vld [vmem:[%s675 + $0x160] sm:$0xff]
                  %722 = vst [vmem:[%s676 + $0xb0] sm:$0xff] %v721
                  %v723 = vld [vmem:[%s675 + $0x168] sm:$0xff]
                  %724 = vst [vmem:[%s676 + $0xb8] sm:$0xff] %v723
                  %v725 = vld [vmem:[%s675 + $0x180] sm:$0xff]
                  %726 = vst [vmem:[%s676 + $0xc0] sm:$0xff] %v725
                  %v727 = vld [vmem:[%s675 + $0x188] sm:$0xff]
                  %728 = vst [vmem:[%s676 + $0xc8] sm:$0xff] %v727
                  %v729 = vld [vmem:[%s675 + $0x1a0] sm:$0xff]
                  %730 = vst [vmem:[%s676 + $0xd0] sm:$0xff] %v729
                  %v731 = vld [vmem:[%s675 + $0x1a8] sm:$0xff]
                  %732 = vst [vmem:[%s676 + $0xd8] sm:$0xff] %v731
                  %v733 = vld [vmem:[%s675 + $0x1c0] sm:$0xff]
                  %734 = vst [vmem:[%s676 + $0xe0] sm:$0xff] %v733
                  %v735 = vld [vmem:[%s675 + $0x1c8] sm:$0xff]
                  %736 = vst [vmem:[%s676 + $0xe8] sm:$0xff] %v735
                  %v737 = vld [vmem:[%s675 + $0x1e0] sm:$0xff]
                  %738 = vst [vmem:[%s676 + $0xf0] sm:$0xff] %v737
                  %v739 = vld [vmem:[%s675 + $0x1e8] sm:$0xff]
                  %740 = vst [vmem:[%s676 + $0xf8] sm:$0xff] %v739
                $region128: #{roi_feature_extractor.1} parent=122 // loop_footer
                  %s674 = sadd.s32 1, %s670
                $region129: #{roi_feature_extractor.1} parent=122 // loop_footer_branch
                  %669 = sbr.rel target = $region125
                $region130: #{roi_feature_extractor.1} parent=122 // loop_exit
                  _
              $region123: #{roi_feature_extractor.1} parent=107 // pred_fallthru
                _
              // Predicated region
              $region131: #{roi_feature_extractor.1} parent=107 // pred_check
                _
              $region132: #{roi_feature_extractor.1} parent=107 // pred_check_branch
                %742 = sbr.rel target = $region134
              $region133: #{roi_feature_extractor.1} parent=107 // pred_region
                _
              $region134: #{roi_feature_extractor.1} parent=107 // pred_fallthru
                _
            $region108: #{roi_feature_extractor.1} parent=103 // pred_fallthru
              _
            // Predicated region
            $region109: #{roi_feature_extractor.1} parent=103 // pred_check
              _
            $region110: #{roi_feature_extractor.1} parent=103 // pred_check_branch
              %593 = sbr.rel target = $region112
            $region111: #{roi_feature_extractor.1} parent=103 // pred_region
              loop: start=0, step=1, limit=1
              $region113: #{roi_feature_extractor.1} parent=111 // loop_pre_header
                _
              $region114: #{roi_feature_extractor.1} parent=111 // loop_header
                %s596 = sphi 0, %s600
                %p597 = scmp.ge.s32.totalorder %s596, 1
                %s601 = sphi %s587, %s587
                %s602 = sphi %s584, %s584
              $region115: #{roi_feature_extractor.1} parent=111 // loop_header_branch
                %599 = sbr.rel (%p597) target = $region119
              $region116: #{roi_feature_extractor.1} parent=111 // loop_body
                %v603 = vld [vmem:[%s601] sm:$0xff]
                %604 = vst [vmem:[%s602] sm:$0xff] %v603
                %v605 = vld [vmem:[%s601 + $0x8] sm:$0xff]
                %606 = vst [vmem:[%s602 + $0x8] sm:$0xff] %v605
                %v607 = vld [vmem:[%s601 + $0x20] sm:$0xff]
                %608 = vst [vmem:[%s602 + $0x10] sm:$0xff] %v607
                %v609 = vld [vmem:[%s601 + $0x28] sm:$0xff]
                %610 = vst [vmem:[%s602 + $0x18] sm:$0xff] %v609
                %v611 = vld [vmem:[%s601 + $0x40] sm:$0xff]
                %612 = vst [vmem:[%s602 + $0x20] sm:$0xff] %v611
                %v613 = vld [vmem:[%s601 + $0x48] sm:$0xff]
                %614 = vst [vmem:[%s602 + $0x28] sm:$0xff] %v613
                %v615 = vld [vmem:[%s601 + $0x60] sm:$0xff]
                %616 = vst [vmem:[%s602 + $0x30] sm:$0xff] %v615
                %v617 = vld [vmem:[%s601 + $0x68] sm:$0xff]
                %618 = vst [vmem:[%s602 + $0x38] sm:$0xff] %v617
                %v619 = vld [vmem:[%s601 + $0x80] sm:$0xff]
                %620 = vst [vmem:[%s602 + $0x40] sm:$0xff] %v619
                %v621 = vld [vmem:[%s601 + $0x88] sm:$0xff]
                %622 = vst [vmem:[%s602 + $0x48] sm:$0xff] %v621
                %v623 = vld [vmem:[%s601 + $0xa0] sm:$0xff]
                %624 = vst [vmem:[%s602 + $0x50] sm:$0xff] %v623
                %v625 = vld [vmem:[%s601 + $0xa8] sm:$0xff]
                %626 = vst [vmem:[%s602 + $0x58] sm:$0xff] %v625
                %v627 = vld [vmem:[%s601 + $0xc0] sm:$0xff]
                %628 = vst [vmem:[%s602 + $0x60] sm:$0xff] %v627
                %v629 = vld [vmem:[%s601 + $0xc8] sm:$0xff]
                %630 = vst [vmem:[%s602 + $0x68] sm:$0xff] %v629
                %v631 = vld [vmem:[%s601 + $0xe0] sm:$0xff]
                %632 = vst [vmem:[%s602 + $0x70] sm:$0xff] %v631
                %v633 = vld [vmem:[%s601 + $0xe8] sm:$0xff]
                %634 = vst [vmem:[%s602 + $0x78] sm:$0xff] %v633
                %v635 = vld [vmem:[%s601 + $0x100] sm:$0xff]
                %636 = vst [vmem:[%s602 + $0x80] sm:$0xff] %v635
                %v637 = vld [vmem:[%s601 + $0x108] sm:$0xff]
                %638 = vst [vmem:[%s602 + $0x88] sm:$0xff] %v637
                %v639 = vld [vmem:[%s601 + $0x120] sm:$0xff]
                %640 = vst [vmem:[%s602 + $0x90] sm:$0xff] %v639
                %v641 = vld [vmem:[%s601 + $0x128] sm:$0xff]
                %642 = vst [vmem:[%s602 + $0x98] sm:$0xff] %v641
                %v643 = vld [vmem:[%s601 + $0x140] sm:$0xff]
                %644 = vst [vmem:[%s602 + $0xa0] sm:$0xff] %v643
                %v645 = vld [vmem:[%s601 + $0x148] sm:$0xff]
                %646 = vst [vmem:[%s602 + $0xa8] sm:$0xff] %v645
                %v647 = vld [vmem:[%s601 + $0x160] sm:$0xff]
                %648 = vst [vmem:[%s602 + $0xb0] sm:$0xff] %v647
                %v649 = vld [vmem:[%s601 + $0x168] sm:$0xff]
                %650 = vst [vmem:[%s602 + $0xb8] sm:$0xff] %v649
                %v651 = vld [vmem:[%s601 + $0x180] sm:$0xff]
                %652 = vst [vmem:[%s602 + $0xc0] sm:$0xff] %v651
                %v653 = vld [vmem:[%s601 + $0x188] sm:$0xff]
                %654 = vst [vmem:[%s602 + $0xc8] sm:$0xff] %v653
                %v655 = vld [vmem:[%s601 + $0x1a0] sm:$0xff]
                %656 = vst [vmem:[%s602 + $0xd0] sm:$0xff] %v655
                %v657 = vld [vmem:[%s601 + $0x1a8] sm:$0xff]
                %658 = vst [vmem:[%s602 + $0xd8] sm:$0xff] %v657
                %v659 = vld [vmem:[%s601 + $0x1c0] sm:$0xff]
                %660 = vst [vmem:[%s602 + $0xe0] sm:$0xff] %v659
                %v661 = vld [vmem:[%s601 + $0x1c8] sm:$0xff]
                %662 = vst [vmem:[%s602 + $0xe8] sm:$0xff] %v661
                %v663 = vld [vmem:[%s601 + $0x1e0] sm:$0xff]
                %664 = vst [vmem:[%s602 + $0xf0] sm:$0xff] %v663
                %v665 = vld [vmem:[%s601 + $0x1e8] sm:$0xff]
                %666 = vst [vmem:[%s602 + $0xf8] sm:$0xff] %v665
              $region117: #{roi_feature_extractor.1} parent=111 // loop_footer
                %s600 = sadd.s32 1, %s596
              $region118: #{roi_feature_extractor.1} parent=111 // loop_footer_branch
                %595 = sbr.rel target = $region114
              $region119: #{roi_feature_extractor.1} parent=111 // loop_exit
                _
            $region112: #{roi_feature_extractor.1} parent=103 // pred_fallthru
              _
          $region104: #{roi_feature_extractor.1} parent=99 // pred_fallthru
            _
          %743 = vnop
        $region100: #{roi_feature_extractor.1} parent=95 // pred_fallthru
          _
      $region96: #{roi_feature_extractor.1} parent=5 // pred_fallthru
        _
      %p744 = scmp.le.s32.totalorder 1, %s27
      %p745 = scmp.lt.s32.totalorder %s27, 3
      %p746 = pnand %p744, %p745
      %p747 = pneg %p746
      // Predicated region
      $region135: #{roi_feature_extractor.1} parent=5 // pred_check
        _
      $region136: #{roi_feature_extractor.1} parent=5 // pred_check_branch
        %749 = sbr.rel (%p746) target = $region138
      $region137: #{roi_feature_extractor.1} parent=5 // pred_region
        %s750 = ssub.s32 %s27, 1
        %s751 = sand.u32 %s40, 1
        %s752 = sand.u32 %s40, 1
        %s753 = smul.addr %s752, 256
        %s754 = scalar_lea.vmem [#allocation3], %s753
        // Predicated region
        $region139: #{roi_feature_extractor.1} parent=137 // pred_check
          %p755 = pneg %p53
        $region140: #{roi_feature_extractor.1} parent=137 // pred_check_branch
          %757 = sbr.rel (%p755) target = $region142
        $region141: #{roi_feature_extractor.1} parent=137 // pred_region
          _
        $region142: #{roi_feature_extractor.1} parent=137 // pred_fallthru
          _
        %s758 = sand.u32 %s40, 1
        %s759 = sand.u32 %s40, 1
        %s760 = smul.addr %s759, 256
        %s761 = scalar_lea.vmem [#allocation3], %s760
        %p762 = pneg %p53
        %p763 = pneg %p50
        %p764 = pneg %p74
        %p765 = pneg %p71
        %p766 = pneg %p95
        %p767 = pneg %p92
        %p768 = pneg %p116
        %p769 = pneg %p113
        %p770 = pneg %p137
        %p771 = pneg %p134
        %p772 = pneg %p158
        %p773 = pneg %p155
        %p774 = pneg %p179
        %p775 = pneg %p176
        %p776 = pneg %p200
        %p777 = pneg %p197
        %p778 = pneg %p221
        %p779 = pneg %p218
        %p780 = pneg %p242
        %p781 = pneg %p239
        %p782 = pneg %p263
        %p783 = pneg %p260
        %p784 = pneg %p284
        %p785 = pneg %p281
        %p786 = pneg %p305
        %p787 = pneg %p302
        %p788 = pneg %p326
        %p789 = pneg %p323
        %p790 = pneg %p347
        %p791 = pneg %p344
        %p792 = pneg %p368
        %p793 = pneg %p365
        %p794 = pneg %p389
        %p795 = pneg %p386
        %p796 = pneg %p410
        %p797 = pneg %p407
        %p798 = pneg %p431
        %p799 = pneg %p428
        %p800 = pneg %p452
        %p801 = pneg %p449
        %p802 = pneg %p473
        %p803 = pneg %p470
        %p804 = pneg %p499
        %p805 = pneg %p496
        %s806 = sand.u32 %s486, 1
        %s807 = sand.u32 %s486, 1
        %s808 = smul.addr %s807, 256
        %s809 = scalar_lea.vmem [#allocation4], %s808
        %s810 = smul.u32 2, %s32
        %s811 = smul.u32 2, %s32
        %vm813 = vcmask 261120
        %814 = vst.msk [vmem:[#allocation2] sm:$0xff] %vm813, 0
        %815 = vst.msk [vmem:[#allocation2 + $0x8] sm:$0xff] %vm813, 0
        %816 = vst.msk [vmem:[#allocation2 + $0x10] sm:$0xff] %vm813, 0
        %817 = vst.msk [vmem:[#allocation2 + $0x18] sm:$0xff] %vm813, 0
        %818 = vst.msk [vmem:[#allocation2 + $0x20] sm:$0xff] %vm813, 0
        %819 = vst.msk [vmem:[#allocation2 + $0x28] sm:$0xff] %vm813, 0
        %s820 = scalar_lea.vmem [#allocation2], 240
        %821 = vst.msk [vmem:[%s820] sm:$0xff] %vm813, 0
        %822 = vst.msk [vmem:[%s820 + $0x8] sm:$0xff] %vm813, 0
        %823 = vst.msk [vmem:[%s820 + $0x10] sm:$0xff] %vm813, 0
        %824 = vst.msk [vmem:[%s820 + $0x18] sm:$0xff] %vm813, 0
        %825 = vst.msk [vmem:[%s820 + $0x20] sm:$0xff] %vm813, 0
        %826 = vst.msk [vmem:[%s820 + $0x28] sm:$0xff] %vm813, 0
        %s827 = scalar_lea.vmem [#allocation2], 48
        %828 = vst.msk [vmem:[%s827] sm:$0xff] %vm813, 0
        %829 = vst.msk [vmem:[%s827 + $0x30] sm:$0xff] %vm813, 0
        %830 = vst.msk [vmem:[%s827 + $0x60] sm:$0xff] %vm813, 0
        %831 = vst.msk [vmem:[%s827 + $0x90] sm:$0xff] %vm813, 0
        %s832 = scalar_lea.vmem [#allocation2], 88
        %833 = vst.msk [vmem:[%s832] sm:$0xff] %vm813, 0
        %834 = vst.msk [vmem:[%s832 + $0x30] sm:$0xff] %vm813, 0
        %835 = vst.msk [vmem:[%s832 + $0x60] sm:$0xff] %vm813, 0
        %836 = vst.msk [vmem:[%s832 + $0x90] sm:$0xff] %vm813, 0
        %v837 = vld [vmem:[%s754] sm:$0xff]
        %v838 = vld [vmem:[%s754 + $0x8] sm:$0xff]
        %v839 = vld [vmem:[%s754 + $0x10] sm:$0xff]
        %v840 = vld [vmem:[%s754 + $0x18] sm:$0xff]
        %v841 = vld [vmem:[%s754 + $0x20] sm:$0xff]
        %v842 = vld [vmem:[%s754 + $0x28] sm:$0xff]
        %v843 = vld [vmem:[%s754 + $0x30] sm:$0xff]
        %v844 = vld [vmem:[%s754 + $0x38] sm:$0xff]
        %v845 = vld [vmem:[%s754 + $0x40] sm:$0xff]
        %v846 = vld [vmem:[%s754 + $0x48] sm:$0xff]
        %v847 = vld [vmem:[%s754 + $0x50] sm:$0xff]
        %v848 = vld [vmem:[%s754 + $0x58] sm:$0xff]
        %v849 = vld [vmem:[%s754 + $0x60] sm:$0xff]
        %v850 = vld [vmem:[%s754 + $0x68] sm:$0xff]
        %v851 = vld [vmem:[%s754 + $0x70] sm:$0xff]
        %v852 = vld [vmem:[%s754 + $0x78] sm:$0xff]
        %v853 = vld [vmem:[%s754 + $0x80] sm:$0xff]
        %v854 = vld [vmem:[%s754 + $0x88] sm:$0xff]
        %v855 = vld [vmem:[%s754 + $0x90] sm:$0xff]
        %v856 = vld [vmem:[%s754 + $0x98] sm:$0xff]
        %v857 = vld [vmem:[%s754 + $0xa0] sm:$0xff]
        %v858 = vld [vmem:[%s754 + $0xa8] sm:$0xff]
        %v859 = vld [vmem:[%s754 + $0xb0] sm:$0xff]
        %v860 = vld [vmem:[%s754 + $0xb8] sm:$0xff]
        %v861 = vld [vmem:[%s754 + $0xc0] sm:$0xff]
        %v862 = vld [vmem:[%s754 + $0xc8] sm:$0xff]
        %v863 = vld [vmem:[%s754 + $0xd0] sm:$0xff]
        %v864 = vld [vmem:[%s754 + $0xd8] sm:$0xff]
        %v865 = vld [vmem:[%s754 + $0xe0] sm:$0xff]
        %v866 = vld [vmem:[%s754 + $0xe8] sm:$0xff]
        %v867 = vld [vmem:[%s754 + $0xf0] sm:$0xff]
        %v868 = vld [vmem:[%s754 + $0xf8] sm:$0xff]
        %v869 = vpack.c.bf16 %v838, %v837
        %v870 = vpack.c.bf16 %v840, %v839
        %v871 = vpack.c.bf16 %v842, %v841
        %v872 = vpack.c.bf16 %v844, %v843
        %v873 = vpack.c.bf16 %v846, %v845
        %v874 = vpack.c.bf16 %v848, %v847
        %v875 = vpack.c.bf16 %v850, %v849
        %v876 = vpack.c.bf16 %v852, %v851
        %v877 = vpack.c.bf16 %v854, %v853
        %v878 = vpack.c.bf16 %v856, %v855
        %v879 = vpack.c.bf16 %v858, %v857
        %v880 = vpack.c.bf16 %v860, %v859
        %v881 = vpack.c.bf16 %v862, %v861
        %v882 = vpack.c.bf16 %v864, %v863
        %v883 = vpack.c.bf16 %v866, %v865
        %v884 = vpack.c.bf16 %v868, %v867
        %v885 = vld [vmem:[%s1] sm:$0xf]
        %v886 = vld [vmem:[%s1 + $0x4] sm:$0xf]
        %v887 = vld [vmem:[%s1 + $0x8] sm:$0xf]
        %v888 = vld [vmem:[%s1 + $0xc] sm:$0xf]
        %v889 = vld [vmem:[%s1 + $0x10] sm:$0xf]
        %v890 = vld [vmem:[%s1 + $0x14] sm:$0xf]
        %v891 = vld [vmem:[%s1 + $0x18] sm:$0xf]
        %v892 = vld [vmem:[%s1 + $0x1c] sm:$0xf]
        %v893 = vld [vmem:[%s2] sm:$0x1]
        %v895 = vlaneseq
        %v896 = vshrl.u32 %v895, 7
        %v897 = vsub.s32 0, %v896
        %v898 = vrot.slane %v893, %v897
        %v908 = vunpack.c.l.b16 %v885
        %v909 = vunpack.c.l.b16 %v886
        %v910 = vunpack.c.l.b16 %v887
        %v911 = vunpack.c.l.b16 %v888
        %v912 = vunpack.c.l.b16 %v889
        %v913 = vunpack.c.l.b16 %v890
        %v914 = vunpack.c.l.b16 %v891
        %v915 = vunpack.c.l.b16 %v892
        %v916 = vpack.c.b16 %v909, %v908
        %v917 = vpack.c.b16 %v911, %v910
        %v918 = vpack.c.b16 %v913, %v912
        %v919 = vpack.c.b16 %v915, %v914
        %vm924 = vcmask 523264
        %v926 = vsel %vm924, %v869, 0
        %v929 = vsel %vm924, %v870, 0
        %v932 = vsel %vm924, %v871, 0
        %v935 = vsel %vm924, %v872, 0
        %v938 = vsel %vm924, %v873, 0
        %v941 = vsel %vm924, %v874, 0
        %v944 = vsel %vm924, %v875, 0
        %v947 = vsel %vm924, %v876, 0
        %v950 = vsel %vm924, %v877, 0
        %v953 = vsel %vm924, %v878, 0
        %v956 = vsel %vm924, %v879, 0
        %v959 = vsel %vm924, %v880, 0
        %v962 = vsel %vm924, %v881, 0
        %v965 = vsel %vm924, %v882, 0
        %v968 = vsel %vm924, %v883, 0
        %v971 = vsel %vm924, %v884, 0
        %973 = vmatprep.subr.bf16.mxu0 0
        %974 = vmatpush1.bf16.msra.mxu0 %v916
        %975 = vmatprep.subr.bf16.mxu0 0
        %976 = vmatpush1.bf16.msra.mxu0 %v917
        %977 = vmatprep.subr.bf16.mxu0 0
        %978 = vmatpush1.bf16.msra.mxu0 %v918
        %979 = vmatprep.subr.bf16.mxu0 0
        %980 = vmatpush1.bf16.msra.mxu0 %v919
        %981 = vmatprep.subr.bf16.mxu0 0
        %982 = vmatpush1.bf16.msra.mxu0 0
        %983 = vmatprep.subr.bf16.mxu0 0
        %984 = vmatpush1.bf16.msra.mxu0 0
        %985 = vmatprep.subr.bf16.mxu0 0
        %986 = vmatpush1.bf16.msra.mxu0 0
        %987 = vmatprep.subr.bf16.mxu0 0
        %988 = vmatpush1.bf16.msra.mxu0 0
        %989 = vmatprep.subr.bf16.mxu0 0
        %990 = vmatpush1.bf16.msra.mxu0 0
        %991 = vmatprep.subr.bf16.mxu0 0
        %992 = vmatpush1.bf16.msra.mxu0 0
        %993 = vmatprep.subr.bf16.mxu0 0
        %994 = vmatpush1.bf16.msra.mxu0 0
        %995 = vmatprep.subr.bf16.mxu0 0
        %996 = vmatpush1.bf16.msra.mxu0 0
        %997 = vmatprep.subr.bf16.mxu0 0
        %998 = vmatpush1.bf16.msra.mxu0 0
        %999 = vmatprep.subr.bf16.mxu0 0
        %1000 = vmatpush1.bf16.msra.mxu0 0
        %1001 = vmatprep.subr.bf16.mxu0 0
        %1002 = vmatpush1.bf16.msra.mxu0 0
        %1003 = vmatprep.subr.bf16.mxu0 0
        %1004 = vmatpush1.bf16.msra.mxu0 0
        %1005 = vmatprep.mubr.bf16.mxu0 0
        %1006 = vmatmul.mubr.bf16.gmra.mrb[0].mxu0 %v926
        %v1007 = vpop.f32.mrb[0].mxu0
        %v1008 = vadd.f32 %v898, %v1007
        %v1009 = vpop.f32.mrb[0].mxu0
        %v1010 = vpop.f32.mrb[0].mxu0
        %v1011 = vadd.f32 %v898, %v1010
        %v1012 = vpop.f32.mrb[0].mxu0
        %1013 = vmatprep.mubr.bf16.mxu0 0
        %1014 = vmatmul.mubr.bf16.gmra.mrb[0].mxu0 %v929
        %v1015 = vpop.f32.mrb[0].mxu0
        %v1016 = vadd.f32 %v898, %v1015
        %v1017 = vpop.f32.mrb[0].mxu0
        %v1018 = vpop.f32.mrb[0].mxu0
        %v1019 = vadd.f32 %v898, %v1018
        %v1020 = vpop.f32.mrb[0].mxu0
        %1021 = vmatprep.mubr.bf16.mxu0 0
        %1022 = vmatmul.mubr.bf16.gmra.mrb[0].mxu0 %v932
        %v1023 = vpop.f32.mrb[0].mxu0
        %v1024 = vadd.f32 %v898, %v1023
        %v1025 = vpop.f32.mrb[0].mxu0
        %v1026 = vpop.f32.mrb[0].mxu0
        %v1027 = vadd.f32 %v898, %v1026
        %v1028 = vpop.f32.mrb[0].mxu0
        %1029 = vmatprep.mubr.bf16.mxu0 0
        %1030 = vmatmul.mubr.bf16.gmra.mrb[0].mxu0 %v935
        %v1031 = vpop.f32.mrb[0].mxu0
        %v1032 = vadd.f32 %v898, %v1031
        %v1033 = vpop.f32.mrb[0].mxu0
        %v1034 = vpop.f32.mrb[0].mxu0
        %v1035 = vadd.f32 %v898, %v1034
        %v1036 = vpop.f32.mrb[0].mxu0
        %1037 = vmatprep.mubr.bf16.mxu0 0
        %1038 = vmatmul.mubr.bf16.gmra.mrb[0].mxu0 %v938
        %v1039 = vpop.f32.mrb[0].mxu0
        %v1040 = vadd.f32 %v898, %v1039
        %v1041 = vpop.f32.mrb[0].mxu0
        %v1042 = vpop.f32.mrb[0].mxu0
        %v1043 = vadd.f32 %v898, %v1042
        %v1044 = vpop.f32.mrb[0].mxu0
        %1045 = vmatprep.mubr.bf16.mxu0 0
        %1046 = vmatmul.mubr.bf16.gmra.mrb[0].mxu0 %v941
        %v1047 = vpop.f32.mrb[0].mxu0
        %v1048 = vadd.f32 %v898, %v1047
        %v1049 = vpop.f32.mrb[0].mxu0
        %v1050 = vpop.f32.mrb[0].mxu0
        %v1051 = vadd.f32 %v898, %v1050
        %v1052 = vpop.f32.mrb[0].mxu0
        %1053 = vmatprep.mubr.bf16.mxu0 0
        %1054 = vmatmul.mubr.bf16.gmra.mrb[0].mxu0 %v944
        %v1055 = vpop.f32.mrb[0].mxu0
        %v1056 = vadd.f32 %v898, %v1055
        %v1057 = vpop.f32.mrb[0].mxu0
        %v1058 = vpop.f32.mrb[0].mxu0
        %v1059 = vadd.f32 %v898, %v1058
        %v1060 = vpop.f32.mrb[0].mxu0
        %1061 = vmatprep.mubr.bf16.mxu0 0
        %1062 = vmatmul.mubr.bf16.gmra.mrb[0].mxu0 %v947
        %v1063 = vpop.f32.mrb[0].mxu0
        %v1064 = vadd.f32 %v898, %v1063
        %v1065 = vpop.f32.mrb[0].mxu0
        %v1066 = vpop.f32.mrb[0].mxu0
        %v1067 = vadd.f32 %v898, %v1066
        %v1068 = vpop.f32.mrb[0].mxu0
        %1069 = vmatprep.mubr.bf16.mxu0 0
        %1070 = vmatmul.mubr.bf16.gmra.mrb[0].mxu0 %v950
        %v1071 = vpop.f32.mrb[0].mxu0
        %v1072 = vadd.f32 %v898, %v1071
        %v1073 = vpop.f32.mrb[0].mxu0
        %v1074 = vpop.f32.mrb[0].mxu0
        %v1075 = vadd.f32 %v898, %v1074
        %v1076 = vpop.f32.mrb[0].mxu0
        %1077 = vmatprep.mubr.bf16.mxu0 0
        %1078 = vmatmul.mubr.bf16.gmra.mrb[0].mxu0 %v953
        %v1079 = vpop.f32.mrb[0].mxu0
        %v1080 = vadd.f32 %v898, %v1079
        %v1081 = vpop.f32.mrb[0].mxu0
        %v1082 = vpop.f32.mrb[0].mxu0
        %v1083 = vadd.f32 %v898, %v1082
        %v1084 = vpop.f32.mrb[0].mxu0
        %1085 = vmatprep.mubr.bf16.mxu0 0
        %1086 = vmatmul.mubr.bf16.gmra.mrb[0].mxu0 %v956
        %v1087 = vpop.f32.mrb[0].mxu0
        %v1088 = vadd.f32 %v898, %v1087
        %v1089 = vpop.f32.mrb[0].mxu0
        %v1090 = vpop.f32.mrb[0].mxu0
        %v1091 = vadd.f32 %v898, %v1090
        %v1092 = vpop.f32.mrb[0].mxu0
        %1093 = vmatprep.mubr.bf16.mxu0 0
        %1094 = vmatmul.mubr.bf16.gmra.mrb[0].mxu0 %v959
        %v1095 = vpop.f32.mrb[0].mxu0
        %v1096 = vadd.f32 %v898, %v1095
        %v1097 = vpop.f32.mrb[0].mxu0
        %v1098 = vpop.f32.mrb[0].mxu0
        %v1099 = vadd.f32 %v898, %v1098
        %v1100 = vpop.f32.mrb[0].mxu0
        %1101 = vmatprep.mubr.bf16.mxu0 0
        %1102 = vmatmul.mubr.bf16.gmra.mrb[0].mxu0 %v962
        %v1103 = vpop.f32.mrb[0].mxu0
        %v1104 = vadd.f32 %v898, %v1103
        %v1105 = vpop.f32.mrb[0].mxu0
        %v1106 = vpop.f32.mrb[0].mxu0
        %v1107 = vadd.f32 %v898, %v1106
        %v1108 = vpop.f32.mrb[0].mxu0
        %1109 = vmatprep.mubr.bf16.mxu0 0
        %1110 = vmatmul.mubr.bf16.gmra.mrb[0].mxu0 %v965
        %v1111 = vpop.f32.mrb[0].mxu0
        %v1112 = vadd.f32 %v898, %v1111
        %v1113 = vpop.f32.mrb[0].mxu0
        %v1114 = vpop.f32.mrb[0].mxu0
        %v1115 = vadd.f32 %v898, %v1114
        %v1116 = vpop.f32.mrb[0].mxu0
        %1117 = vmatprep.mubr.bf16.mxu0 0
        %1118 = vmatmul.mubr.bf16.gmra.mrb[0].mxu0 %v968
        %v1119 = vpop.f32.mrb[0].mxu0
        %v1120 = vadd.f32 %v898, %v1119
        %v1121 = vpop.f32.mrb[0].mxu0
        %v1122 = vpop.f32.mrb[0].mxu0
        %v1123 = vadd.f32 %v898, %v1122
        %v1124 = vpop.f32.mrb[0].mxu0
        %1125 = vmatprep.mubr.bf16.mxu0 0
        %1126 = vmatmul.mubr.bf16.gmra.mrb[0].mxu0 %v971
        %v1127 = vpop.f32.mrb[0].mxu0
        %v1128 = vadd.f32 %v898, %v1127
        %v1129 = vpop.f32.mrb[0].mxu0
        %v1130 = vpop.f32.mrb[0].mxu0
        %v1131 = vadd.f32 %v898, %v1130
        %v1132 = vpop.f32.mrb[0].mxu0
        %1133 = vdwg.mxu0
        %v1134 = vmax.f32 %v1008, 0.0
        %v1135 = vmax.f32 %v1011, 0.0
        %v1136 = vmax.f32 %v1016, 0.0
        %v1137 = vmax.f32 %v1019, 0.0
        %v1138 = vmax.f32 %v1024, 0.0
        %v1139 = vmax.f32 %v1027, 0.0
        %v1140 = vmax.f32 %v1032, 0.0
        %v1141 = vmax.f32 %v1035, 0.0
        %v1142 = vmax.f32 %v1040, 0.0
        %v1143 = vmax.f32 %v1043, 0.0
        %v1144 = vmax.f32 %v1048, 0.0
        %v1145 = vmax.f32 %v1051, 0.0
        %v1146 = vmax.f32 %v1056, 0.0
        %v1147 = vmax.f32 %v1059, 0.0
        %v1148 = vmax.f32 %v1064, 0.0
        %v1149 = vmax.f32 %v1067, 0.0
        %v1150 = vmax.f32 %v1072, 0.0
        %v1151 = vmax.f32 %v1075, 0.0
        %v1152 = vmax.f32 %v1080, 0.0
        %v1153 = vmax.f32 %v1083, 0.0
        %v1154 = vmax.f32 %v1088, 0.0
        %v1155 = vmax.f32 %v1091, 0.0
        %v1156 = vmax.f32 %v1096, 0.0
        %v1157 = vmax.f32 %v1099, 0.0
        %v1158 = vmax.f32 %v1104, 0.0
        %v1159 = vmax.f32 %v1107, 0.0
        %v1160 = vmax.f32 %v1112, 0.0
        %v1161 = vmax.f32 %v1115, 0.0
        %v1162 = vmax.f32 %v1120, 0.0
        %v1163 = vmax.f32 %v1123, 0.0
        %v1164 = vmax.f32 %v1128, 0.0
        %v1165 = vmax.f32 %v1131, 0.0
        %v1166 = vpack.c.bf16 %v1135, %v1134
        %v1167 = vpack.c.bf16 %v1137, %v1136
        %v1168 = vpack.c.bf16 %v1139, %v1138
        %v1169 = vpack.c.bf16 %v1141, %v1140
        %v1170 = vpack.c.bf16 %v1143, %v1142
        %v1171 = vpack.c.bf16 %v1145, %v1144
        %v1172 = vpack.c.bf16 %v1147, %v1146
        %v1173 = vpack.c.bf16 %v1149, %v1148
        %v1174 = vpack.c.bf16 %v1151, %v1150
        %v1175 = vpack.c.bf16 %v1153, %v1152
        %v1176 = vpack.c.bf16 %v1155, %v1154
        %v1177 = vpack.c.bf16 %v1157, %v1156
        %v1178 = vpack.c.bf16 %v1159, %v1158
        %v1179 = vpack.c.bf16 %v1161, %v1160
        %v1180 = vpack.c.bf16 %v1163, %v1162
        %v1181 = vpack.c.bf16 %v1165, %v1164
        %s1182 = scalar_lea.vmem [#allocation2], 56
        %1183 = vst.msk [vmem:[%s1182] sm:$0xff] %vm813, %v1166
        %1184 = vst.msk [vmem:[%s1182 + $0x8] sm:$0xff] %vm813, %v1167
        %1185 = vst.msk [vmem:[%s1182 + $0x10] sm:$0xff] %vm813, %v1168
        %1186 = vst.msk [vmem:[%s1182 + $0x18] sm:$0xff] %vm813, %v1169
        %1187 = vst.msk [vmem:[%s1182 + $0x30] sm:$0xff] %vm813, %v1170
        %1188 = vst.msk [vmem:[%s1182 + $0x38] sm:$0xff] %vm813, %v1171
        %1189 = vst.msk [vmem:[%s1182 + $0x40] sm:$0xff] %vm813, %v1172
        %1190 = vst.msk [vmem:[%s1182 + $0x48] sm:$0xff] %vm813, %v1173
        %1191 = vst.msk [vmem:[%s1182 + $0x60] sm:$0xff] %vm813, %v1174
        %1192 = vst.msk [vmem:[%s1182 + $0x68] sm:$0xff] %vm813, %v1175
        %1193 = vst.msk [vmem:[%s1182 + $0x70] sm:$0xff] %vm813, %v1176
        %1194 = vst.msk [vmem:[%s1182 + $0x78] sm:$0xff] %vm813, %v1177
        %1195 = vst.msk [vmem:[%s1182 + $0x90] sm:$0xff] %vm813, %v1178
        %1196 = vst.msk [vmem:[%s1182 + $0x98] sm:$0xff] %vm813, %v1179
        %1197 = vst.msk [vmem:[%s1182 + $0xa0] sm:$0xff] %vm813, %v1180
        %1198 = vst.msk [vmem:[%s1182 + $0xa8] sm:$0xff] %vm813, %v1181
        %v1199 = vld [vmem:[#allocation2] sm:$0xff]
        %v1200 = vld [vmem:[#allocation2 + $0x8] sm:$0xff]
        %v1201 = vld [vmem:[#allocation2 + $0x10] sm:$0xff]
        %v1202 = vld [vmem:[#allocation2 + $0x18] sm:$0xff]
        %v1203 = vld [vmem:[#allocation2 + $0x20] sm:$0xff]
        %v1204 = vld [vmem:[#allocation2 + $0x28] sm:$0xff]
        %v1205 = vld [vmem:[#allocation2 + $0x30] sm:$0xff]
        %v1206 = vld [vmem:[#allocation2 + $0x38] sm:$0xff]
        %v1207 = vld [vmem:[#allocation2 + $0x40] sm:$0xff]
        %v1208 = vld [vmem:[#allocation2 + $0x48] sm:$0xff]
        %v1209 = vld [vmem:[#allocation2 + $0x50] sm:$0xff]
        %v1210 = vld [vmem:[#allocation2 + $0x58] sm:$0xff]
        %v1211 = vld [vmem:[#allocation2 + $0x60] sm:$0xff]
        %v1212 = vld [vmem:[#allocation2 + $0x68] sm:$0xff]
        %v1213 = vld [vmem:[#allocation2 + $0x70] sm:$0xff]
        %v1214 = vld [vmem:[#allocation2 + $0x78] sm:$0xff]
        %v1215 = vld [vmem:[#allocation2 + $0x80] sm:$0xff]
        %v1216 = vld [vmem:[#allocation2 + $0x88] sm:$0xff]
        %v1217 = vld [vmem:[#allocation2 + $0x90] sm:$0xff]
        %v1218 = vld [vmem:[#allocation2 + $0x98] sm:$0xff]
        %v1219 = vld [vmem:[#allocation2 + $0xa0] sm:$0xff]
        %v1220 = vld [vmem:[#allocation2 + $0xa8] sm:$0xff]
        %v1221 = vld [vmem:[#allocation2 + $0xb0] sm:$0xff]
        %v1222 = vld [vmem:[#allocation2 + $0xb8] sm:$0xff]
        %v1223 = vld [vmem:[#allocation2 + $0xc0] sm:$0xff]
        %v1224 = vld [vmem:[#allocation2 + $0xc8] sm:$0xff]
        %v1225 = vld [vmem:[#allocation2 + $0xd0] sm:$0xff]
        %v1226 = vld [vmem:[#allocation2 + $0xd8] sm:$0xff]
        %v1227 = vld [vmem:[#allocation2 + $0xe0] sm:$0xff]
        %v1228 = vld [vmem:[#allocation2 + $0xe8] sm:$0xff]
        %v1229 = vld [vmem:[#allocation2 + $0xf0] sm:$0xff]
        %v1230 = vld [vmem:[#allocation2 + $0xf8] sm:$0xff]
        %v1231 = vld [vmem:[#allocation2 + $0x100] sm:$0xff]
        %v1232 = vld [vmem:[#allocation2 + $0x108] sm:$0xff]
        %v1233 = vld [vmem:[#allocation2 + $0x110] sm:$0xff]
        %v1234 = vld [vmem:[#allocation2 + $0x118] sm:$0xff]
        %1251 = vrot.lane.b32.xlu0 %v1200, 32
        %v1252 = vpop.permute.xlu0 %1251
        %1253 = vrot.lane.b32.xlu0 %v1201, 32
        %v1254 = vpop.permute.xlu0 %1253
        %1255 = vrot.lane.b32.xlu0 %v1202, 32
        %v1256 = vpop.permute.xlu0 %1255
        %1257 = vrot.lane.b32.xlu0 %v1203, 32
        %v1258 = vpop.permute.xlu0 %1257
        %1259 = vrot.lane.b32.xlu0 %v1206, 32
        %v1260 = vpop.permute.xlu0 %1259
        %1261 = vrot.lane.b32.xlu0 %v1207, 32
        %v1262 = vpop.permute.xlu0 %1261
        %1263 = vrot.lane.b32.xlu0 %v1208, 32
        %v1264 = vpop.permute.xlu0 %1263
        %1265 = vrot.lane.b32.xlu0 %v1209, 32
        %v1266 = vpop.permute.xlu0 %1265
        %1267 = vrot.lane.b32.xlu0 %v1212, 32
        %v1268 = vpop.permute.xlu0 %1267
        %1269 = vrot.lane.b32.xlu0 %v1213, 32
        %v1270 = vpop.permute.xlu0 %1269
        %1271 = vrot.lane.b32.xlu0 %v1214, 32
        %v1272 = vpop.permute.xlu0 %1271
        %1273 = vrot.lane.b32.xlu0 %v1215, 32
        %v1274 = vpop.permute.xlu0 %1273
        %1275 = vrot.lane.b32.xlu0 %v1218, 32
        %v1276 = vpop.permute.xlu0 %1275
        %1277 = vrot.lane.b32.xlu0 %v1219, 32
        %v1278 = vpop.permute.xlu0 %1277
        %1279 = vrot.lane.b32.xlu0 %v1220, 32
        %v1280 = vpop.permute.xlu0 %1279
        %1281 = vrot.lane.b32.xlu0 %v1221, 32
        %v1282 = vpop.permute.xlu0 %1281
        %1287 = vrot.lane.b32.xlu0 %v1201, 64
        %v1288 = vpop.permute.xlu0 %1287
        %1289 = vrot.lane.b32.xlu0 %v1202, 64
        %v1290 = vpop.permute.xlu0 %1289
        %1291 = vrot.lane.b32.xlu0 %v1203, 64
        %v1292 = vpop.permute.xlu0 %1291
        %1293 = vrot.lane.b32.xlu0 %v1204, 64
        %v1294 = vpop.permute.xlu0 %1293
        %1295 = vrot.lane.b32.xlu0 %v1207, 64
        %v1296 = vpop.permute.xlu0 %1295
        %1297 = vrot.lane.b32.xlu0 %v1208, 64
        %v1298 = vpop.permute.xlu0 %1297
        %1299 = vrot.lane.b32.xlu0 %v1209, 64
        %v1300 = vpop.permute.xlu0 %1299
        %1301 = vrot.lane.b32.xlu0 %v1210, 64
        %v1302 = vpop.permute.xlu0 %1301
        %1303 = vrot.lane.b32.xlu0 %v1213, 64
        %v1304 = vpop.permute.xlu0 %1303
        %1305 = vrot.lane.b32.xlu0 %v1214, 64
        %v1306 = vpop.permute.xlu0 %1305
        %1307 = vrot.lane.b32.xlu0 %v1215, 64
        %v1308 = vpop.permute.xlu0 %1307
        %1309 = vrot.lane.b32.xlu0 %v1216, 64
        %v1310 = vpop.permute.xlu0 %1309
        %1311 = vrot.lane.b32.xlu0 %v1219, 64
        %v1312 = vpop.permute.xlu0 %1311
        %1313 = vrot.lane.b32.xlu0 %v1220, 64
        %v1314 = vpop.permute.xlu0 %1313
        %1315 = vrot.lane.b32.xlu0 %v1221, 64
        %v1316 = vpop.permute.xlu0 %1315
        %1317 = vrot.lane.b32.xlu0 %v1222, 64
        %v1318 = vpop.permute.xlu0 %1317
        %1326 = vrot.lane.b32.xlu0 %v1205, 96
        %v1327 = vpop.permute.xlu0 %1326
        %1328 = vrot.lane.b32.xlu0 %v1206, 96
        %v1329 = vpop.permute.xlu0 %1328
        %1330 = vrot.lane.b32.xlu0 %v1207, 96
        %v1331 = vpop.permute.xlu0 %1330
        %1332 = vrot.lane.b32.xlu0 %v1208, 96
        %v1333 = vpop.permute.xlu0 %1332
        %1334 = vrot.lane.b32.xlu0 %v1211, 96
        %v1335 = vpop.permute.xlu0 %1334
        %1336 = vrot.lane.b32.xlu0 %v1212, 96
        %v1337 = vpop.permute.xlu0 %1336
        %1338 = vrot.lane.b32.xlu0 %v1213, 96
        %v1339 = vpop.permute.xlu0 %1338
        %1340 = vrot.lane.b32.xlu0 %v1214, 96
        %v1341 = vpop.permute.xlu0 %1340
        %1342 = vrot.lane.b32.xlu0 %v1217, 96
        %v1343 = vpop.permute.xlu0 %1342
        %1344 = vrot.lane.b32.xlu0 %v1218, 96
        %v1345 = vpop.permute.xlu0 %1344
        %1346 = vrot.lane.b32.xlu0 %v1219, 96
        %v1347 = vpop.permute.xlu0 %1346
        %1348 = vrot.lane.b32.xlu0 %v1220, 96
        %v1349 = vpop.permute.xlu0 %1348
        %1350 = vrot.lane.b32.xlu0 %v1223, 96
        %v1351 = vpop.permute.xlu0 %1350
        %1352 = vrot.lane.b32.xlu0 %v1224, 96
        %v1353 = vpop.permute.xlu0 %1352
        %1354 = vrot.lane.b32.xlu0 %v1225, 96
        %v1355 = vpop.permute.xlu0 %1354
        %1356 = vrot.lane.b32.xlu0 %v1226, 96
        %v1357 = vpop.permute.xlu0 %1356
        %1360 = vrot.lane.b32.xlu0 %v1210, 32
        %v1361 = vpop.permute.xlu0 %1360
        %1362 = vrot.lane.b32.xlu0 %v1216, 32
        %v1363 = vpop.permute.xlu0 %1362
        %1364 = vrot.lane.b32.xlu0 %v1222, 32
        %v1365 = vpop.permute.xlu0 %1364
        %1366 = vrot.lane.b32.xlu0 %v1225, 32
        %v1367 = vpop.permute.xlu0 %1366
        %1368 = vrot.lane.b32.xlu0 %v1226, 32
        %v1369 = vpop.permute.xlu0 %1368
        %1370 = vrot.lane.b32.xlu0 %v1227, 32
        %v1371 = vpop.permute.xlu0 %1370
        %1372 = vrot.lane.b32.xlu0 %v1228, 32
        %v1373 = vpop.permute.xlu0 %1372
        %1378 = vrot.lane.b32.xlu0 %v1211, 64
        %v1379 = vpop.permute.xlu0 %1378
        %1380 = vrot.lane.b32.xlu0 %v1212, 64
        %v1381 = vpop.permute.xlu0 %1380
        %1382 = vrot.lane.b32.xlu0 %v1217, 64
        %v1383 = vpop.permute.xlu0 %1382
        %1384 = vrot.lane.b32.xlu0 %v1218, 64
        %v1385 = vpop.permute.xlu0 %1384
        %1386 = vrot.lane.b32.xlu0 %v1223, 64
        %v1387 = vpop.permute.xlu0 %1386
        %1388 = vrot.lane.b32.xlu0 %v1224, 64
        %v1389 = vpop.permute.xlu0 %1388
        %1390 = vrot.lane.b32.xlu0 %v1225, 64
        %v1391 = vpop.permute.xlu0 %1390
        %1392 = vrot.lane.b32.xlu0 %v1226, 64
        %v1393 = vpop.permute.xlu0 %1392
        %1394 = vrot.lane.b32.xlu0 %v1229, 64
        %v1395 = vpop.permute.xlu0 %1394
        %1396 = vrot.lane.b32.xlu0 %v1230, 64
        %v1397 = vpop.permute.xlu0 %1396
        %1398 = vrot.lane.b32.xlu0 %v1231, 64
        %v1399 = vpop.permute.xlu0 %1398
        %1400 = vrot.lane.b32.xlu0 %v1232, 64
        %v1401 = vpop.permute.xlu0 %1400
        %1403 = vrot.lane.b32.xlu0 %v1215, 96
        %v1404 = vpop.permute.xlu0 %1403
        %1405 = vrot.lane.b32.xlu0 %v1221, 96
        %v1406 = vpop.permute.xlu0 %1405
        %1407 = vrot.lane.b32.xlu0 %v1227, 96
        %v1408 = vpop.permute.xlu0 %1407
        %1409 = vrot.lane.b32.xlu0 %v1230, 96
        %v1410 = vpop.permute.xlu0 %1409
        %1411 = vrot.lane.b32.xlu0 %v1231, 96
        %v1412 = vpop.permute.xlu0 %1411
        %1413 = vrot.lane.b32.xlu0 %v1232, 96
        %v1414 = vpop.permute.xlu0 %1413
        %1415 = vrot.lane.b32.xlu0 %v1233, 96
        %v1416 = vpop.permute.xlu0 %1415
        %v1419 = vsel %vm813, %v1199, %v1252
        %v1422 = vsel %vm813, %v1200, %v1254
        %v1425 = vsel %vm813, %v1201, %v1256
        %v1428 = vsel %vm813, %v1202, %v1258
        %v1431 = vsel %vm813, %v1205, %v1260
        %v1434 = vsel %vm813, %v1206, %v1262
        %v1437 = vsel %vm813, %v1207, %v1264
        %v1440 = vsel %vm813, %v1208, %v1266
        %v1443 = vsel %vm813, %v1211, %v1268
        %v1446 = vsel %vm813, %v1212, %v1270
        %v1449 = vsel %vm813, %v1213, %v1272
        %v1452 = vsel %vm813, %v1214, %v1274
        %v1455 = vsel %vm813, %v1217, %v1276
        %v1458 = vsel %vm813, %v1218, %v1278
        %v1461 = vsel %vm813, %v1219, %v1280
        %v1464 = vsel %vm813, %v1220, %v1282
        %v1466 = vsel %vm924, %v1419, %v1288
        %v1468 = vsel %vm924, %v1422, %v1290
        %v1470 = vsel %vm924, %v1425, %v1292
        %v1472 = vsel %vm924, %v1428, %v1294
        %v1474 = vsel %vm924, %v1431, %v1296
        %v1476 = vsel %vm924, %v1434, %v1298
        %v1478 = vsel %vm924, %v1437, %v1300
        %v1480 = vsel %vm924, %v1440, %v1302
        %v1482 = vsel %vm924, %v1443, %v1304
        %v1484 = vsel %vm924, %v1446, %v1306
        %v1486 = vsel %vm924, %v1449, %v1308
        %v1488 = vsel %vm924, %v1452, %v1310
        %v1490 = vsel %vm924, %v1455, %v1312
        %v1492 = vsel %vm924, %v1458, %v1314
        %v1494 = vsel %vm924, %v1461, %v1316
        %v1496 = vsel %vm924, %v1464, %v1318
        %vm1497 = vcmask 785408
        %v1499 = vsel %vm1497, %v1466, %v1327
        %v1502 = vsel %vm1497, %v1468, %v1329
        %v1505 = vsel %vm1497, %v1470, %v1331
        %v1508 = vsel %vm1497, %v1472, %v1333
        %v1511 = vsel %vm1497, %v1474, %v1335
        %v1514 = vsel %vm1497, %v1476, %v1337
        %v1517 = vsel %vm1497, %v1478, %v1339
        %v1520 = vsel %vm1497, %v1480, %v1341
        %v1523 = vsel %vm1497, %v1482, %v1343
        %v1526 = vsel %vm1497, %v1484, %v1345
        %v1529 = vsel %vm1497, %v1486, %v1347
        %v1532 = vsel %vm1497, %v1488, %v1349
        %v1535 = vsel %vm1497, %v1490, %v1351
        %v1538 = vsel %vm1497, %v1492, %v1353
        %v1541 = vsel %vm1497, %v1494, %v1355
        %v1544 = vsel %vm1497, %v1496, %v1357
        %v1548 = vsel %vm813, %v1209, %v1361
        %v1551 = vsel %vm813, %v1215, %v1363
        %v1554 = vsel %vm813, %v1221, %v1365
        %v1557 = vsel %vm813, %v1224, %v1367
        %v1560 = vsel %vm813, %v1225, %v1369
        %v1563 = vsel %vm813, %v1226, %v1371
        %v1566 = vsel %vm813, %v1227, %v1373
        %v1568 = vsel %vm924, %v1434, %v1379
        %v1570 = vsel %vm924, %v1437, %v1381
        %v1571 = vsel %vm924, %v1440, %v1304
        %v1572 = vsel %vm924, %v1548, %v1306
        %v1574 = vsel %vm924, %v1446, %v1383
        %v1576 = vsel %vm924, %v1449, %v1385
        %v1577 = vsel %vm924, %v1452, %v1312
        %v1578 = vsel %vm924, %v1551, %v1314
        %v1580 = vsel %vm924, %v1458, %v1387
        %v1582 = vsel %vm924, %v1461, %v1389
        %v1584 = vsel %vm924, %v1464, %v1391
        %v1586 = vsel %vm924, %v1554, %v1393
        %v1588 = vsel %vm924, %v1557, %v1395
        %v1590 = vsel %vm924, %v1560, %v1397
        %v1592 = vsel %vm924, %v1563, %v1399
        %v1594 = vsel %vm924, %v1566, %v1401
        %v1595 = vsel %vm1497, %v1568, %v1337
        %v1597 = vsel %vm1497, %v1570, %v1339
        %v1599 = vsel %vm1497, %v1571, %v1341
        %v1602 = vsel %vm1497, %v1572, %v1404
        %v1604 = vsel %vm1497, %v1574, %v1345
        %v1606 = vsel %vm1497, %v1576, %v1347
        %v1608 = vsel %vm1497, %v1577, %v1349
        %v1611 = vsel %vm1497, %v1578, %v1406
        %v1613 = vsel %vm1497, %v1580, %v1353
        %v1615 = vsel %vm1497, %v1582, %v1355
        %v1617 = vsel %vm1497, %v1584, %v1357
        %v1620 = vsel %vm1497, %v1586, %v1408
        %v1623 = vsel %vm1497, %v1588, %v1410
        %v1626 = vsel %vm1497, %v1590, %v1412
        %v1629 = vsel %vm1497, %v1592, %v1414
        %v1632 = vsel %vm1497, %v1594, %v1416
        %v1634 = vld [vmem:[%s3] sm:$0xf]
        %v1635 = vld [vmem:[%s3 + $0x4] sm:$0xf]
        %v1636 = vld [vmem:[%s3 + $0x8] sm:$0xf]
        %v1637 = vld [vmem:[%s3 + $0xc] sm:$0xf]
        %v1638 = vld [vmem:[%s3 + $0x10] sm:$0xf]
        %v1639 = vld [vmem:[%s3 + $0x14] sm:$0xf]
        %v1640 = vld [vmem:[%s3 + $0x18] sm:$0xf]
        %v1641 = vld [vmem:[%s3 + $0x1c] sm:$0xf]
        %v1642 = vld [vmem:[%s3 + $0x20] sm:$0xf]
        %v1643 = vld [vmem:[%s3 + $0x24] sm:$0xf]
        %v1644 = vld [vmem:[%s3 + $0x28] sm:$0xf]
        %v1645 = vld [vmem:[%s3 + $0x2c] sm:$0xf]
        %v1646 = vld [vmem:[%s3 + $0x30] sm:$0xf]
        %v1647 = vld [vmem:[%s3 + $0x34] sm:$0xf]
        %v1648 = vld [vmem:[%s3 + $0x38] sm:$0xf]
        %v1649 = vld [vmem:[%s3 + $0x3c] sm:$0xf]
        %v1650 = vld [vmem:[%s3 + $0x40] sm:$0xf]
        %v1651 = vld [vmem:[%s3 + $0x44] sm:$0xf]
        %v1652 = vld [vmem:[%s3 + $0x48] sm:$0xf]
        %v1653 = vld [vmem:[%s3 + $0x4c] sm:$0xf]
        %v1654 = vld [vmem:[%s3 + $0x50] sm:$0xf]
        %v1655 = vld [vmem:[%s3 + $0x54] sm:$0xf]
        %v1656 = vld [vmem:[%s3 + $0x58] sm:$0xf]
        %v1657 = vld [vmem:[%s3 + $0x5c] sm:$0xf]
        %v1658 = vld [vmem:[%s3 + $0x60] sm:$0xf]
        %v1659 = vld [vmem:[%s3 + $0x64] sm:$0xf]
        %v1660 = vld [vmem:[%s3 + $0x68] sm:$0xf]
        %v1661 = vld [vmem:[%s3 + $0x6c] sm:$0xf]
        %v1662 = vld [vmem:[%s3 + $0x70] sm:$0xf]
        %v1663 = vld [vmem:[%s3 + $0x74] sm:$0xf]
        %v1664 = vld [vmem:[%s3 + $0x78] sm:$0xf]
        %v1665 = vld [vmem:[%s3 + $0x7c] sm:$0xf]
        %v1666 = vld [vmem:[%s3 + $0x80] sm:$0xf]
        %v1667 = vld [vmem:[%s3 + $0x84] sm:$0xf]
        %v1668 = vld [vmem:[%s3 + $0x88] sm:$0xf]
        %v1669 = vld [vmem:[%s3 + $0x8c] sm:$0xf]
        %v1670 = vld [vmem:[%s4] sm:$0x1]
        %v1672 = vlaneseq
        %v1673 = vshrl.u32 %v1672, 7
        %v1674 = vsub.s32 0, %v1673
        %v1675 = vrot.slane %v1670, %v1674
        %v1713 = vunpack.c.l.b16 %v1634
        %v1714 = vunpack.c.l.b16 %v1635
        %v1715 = vunpack.c.l.b16 %v1636
        %v1716 = vunpack.c.l.b16 %v1637
        %v1717 = vunpack.c.l.b16 %v1638
        %v1718 = vunpack.c.l.b16 %v1639
        %v1719 = vunpack.c.l.b16 %v1640
        %v1720 = vunpack.c.l.b16 %v1641
        %v1721 = vunpack.c.l.b16 %v1642
        %v1722 = vunpack.c.l.b16 %v1643
        %v1723 = vunpack.c.l.b16 %v1644
        %v1724 = vunpack.c.l.b16 %v1645
        %v1725 = vunpack.c.l.b16 %v1646
        %v1726 = vunpack.c.l.b16 %v1647
        %v1727 = vunpack.c.l.b16 %v1648
        %v1728 = vunpack.c.l.b16 %v1649
        %v1729 = vunpack.c.l.b16 %v1650
        %v1730 = vunpack.c.l.b16 %v1651
        %v1731 = vunpack.c.l.b16 %v1652
        %v1732 = vunpack.c.l.b16 %v1653
        %v1733 = vunpack.c.l.b16 %v1654
        %v1734 = vunpack.c.l.b16 %v1655
        %v1735 = vunpack.c.l.b16 %v1656
        %v1736 = vunpack.c.l.b16 %v1657
        %v1737 = vunpack.c.l.b16 %v1658
        %v1738 = vunpack.c.l.b16 %v1659
        %v1739 = vunpack.c.l.b16 %v1660
        %v1740 = vunpack.c.l.b16 %v1661
        %v1741 = vunpack.c.l.b16 %v1662
        %v1742 = vunpack.c.l.b16 %v1663
        %v1743 = vunpack.c.l.b16 %v1664
        %v1744 = vunpack.c.l.b16 %v1665
        %v1745 = vunpack.c.l.b16 %v1666
        %v1746 = vunpack.c.l.b16 %v1667
        %v1747 = vunpack.c.l.b16 %v1668
        %v1748 = vunpack.c.l.b16 %v1669
        %v1749 = vpack.c.b16 %v1714, %v1713
        %v1750 = vpack.c.b16 %v1716, %v1715
        %v1751 = vpack.c.b16 %v1718, %v1717
        %v1752 = vpack.c.b16 %v1720, %v1719
        %v1753 = vpack.c.b16 %v1722, %v1721
        %v1754 = vpack.c.b16 %v1724, %v1723
        %v1755 = vpack.c.b16 %v1726, %v1725
        %v1756 = vpack.c.b16 %v1728, %v1727
        %v1757 = vpack.c.b16 %v1730, %v1729
        %v1758 = vpack.c.b16 %v1732, %v1731
        %v1759 = vpack.c.b16 %v1734, %v1733
        %v1760 = vpack.c.b16 %v1736, %v1735
        %v1761 = vpack.c.b16 %v1738, %v1737
        %v1762 = vpack.c.b16 %v1740, %v1739
        %v1763 = vpack.c.b16 %v1742, %v1741
        %v1764 = vpack.c.b16 %v1744, %v1743
        %v1765 = vpack.c.b16 %v1746, %v1745
        %v1766 = vpack.c.b16 %v1748, %v1747
        %v1785 = vsel %vm813, %v1213, 0
        %v1787 = vsel %vm813, %v1214, 0
        %v1789 = vsel %vm813, %v1215, 0
        %v1792 = vsel %vm813, %v1216, 0
        %v1794 = vsel %vm813, %v1219, 0
        %v1796 = vsel %vm813, %v1220, 0
        %v1798 = vsel %vm813, %v1221, 0
        %v1801 = vsel %vm813, %v1222, 0
        %v1803 = vsel %vm813, %v1225, 0
        %v1805 = vsel %vm813, %v1226, 0
        %v1807 = vsel %vm813, %v1227, 0
        %v1810 = vsel %vm813, %v1228, 0
        %v1813 = vsel %vm813, %v1231, 0
        %v1816 = vsel %vm813, %v1232, 0
        %v1819 = vsel %vm813, %v1233, 0
        %v1822 = vsel %vm813, %v1234, 0
        %1824 = vmatprep.subr.bf16.mxu0 0
        %1825 = vmatpush1.bf16.msra.mxu0 %v1749
        %1826 = vmatprep.subr.bf16.mxu0 0
        %1827 = vmatpush1.bf16.msra.mxu0 %v1750
        %1828 = vmatprep.subr.bf16.mxu0 0
        %1829 = vmatpush1.bf16.msra.mxu0 %v1751
        %1830 = vmatprep.subr.bf16.mxu0 0
        %1831 = vmatpush1.bf16.msra.mxu0 %v1752
        %1832 = vmatprep.subr.bf16.mxu0 0
        %1833 = vmatpush1.bf16.msra.mxu0 %v1753
        %1834 = vmatprep.subr.bf16.mxu0 0
        %1835 = vmatpush1.bf16.msra.mxu0 %v1754
        %1836 = vmatprep.subr.bf16.mxu0 0
        %1837 = vmatpush1.bf16.msra.mxu0 %v1755
        %1838 = vmatprep.subr.bf16.mxu0 0
        %1839 = vmatpush1.bf16.msra.mxu0 %v1756
        %1840 = vmatprep.subr.bf16.mxu0 0
        %1841 = vmatpush1.bf16.msra.mxu0 %v1757
        %1842 = vmatprep.subr.bf16.mxu0 0
        %1843 = vmatpush1.bf16.msra.mxu0 %v1758
        %1844 = vmatprep.subr.bf16.mxu0 0
        %1845 = vmatpush1.bf16.msra.mxu0 %v1759
        %1846 = vmatprep.subr.bf16.mxu0 0
        %1847 = vmatpush1.bf16.msra.mxu0 %v1760
        %1848 = vmatprep.subr.bf16.mxu0 0
        %1849 = vmatpush1.bf16.msra.mxu0 %v1761
        %1850 = vmatprep.subr.bf16.mxu0 0
        %1851 = vmatpush1.bf16.msra.mxu0 %v1762
        %1852 = vmatprep.subr.bf16.mxu0 0
        %1853 = vmatpush1.bf16.msra.mxu0 %v1763
        %1854 = vmatprep.subr.bf16.mxu0 0
        %1855 = vmatpush1.bf16.msra.mxu0 %v1764
        %1856 = vmatprep.mubr.bf16.mxu0 %v1595
        %1857 = vmatmul.mubr.bf16.gmra.mrb[0].mxu0 %v1499
        %v1858 = vpop.f32.mrb[0].mxu0
        %v1859 = vadd.f32 %v1675, %v1858
        %v1860 = vpop.f32.mrb[0].mxu0
        %v1861 = vpop.f32.mrb[0].mxu0
        %v1862 = vadd.f32 %v1675, %v1861
        %v1863 = vpop.f32.mrb[0].mxu0
        %1864 = vmatprep.mubr.bf16.mxu0 %v1597
        %1865 = vmatmul.mubr.bf16.gmra.mrb[0].mxu0 %v1502
        %v1866 = vpop.f32.mrb[0].mxu0
        %v1867 = vadd.f32 %v1675, %v1866
        %v1868 = vpop.f32.mrb[0].mxu0
        %v1869 = vpop.f32.mrb[0].mxu0
        %v1870 = vadd.f32 %v1675, %v1869
        %v1871 = vpop.f32.mrb[0].mxu0
        %1872 = vmatprep.mubr.bf16.mxu0 %v1599
        %1873 = vmatmul.mubr.bf16.gmra.mrb[0].mxu0 %v1505
        %v1874 = vpop.f32.mrb[0].mxu0
        %v1875 = vadd.f32 %v1675, %v1874
        %v1876 = vpop.f32.mrb[0].mxu0
        %v1877 = vpop.f32.mrb[0].mxu0
        %v1878 = vadd.f32 %v1675, %v1877
        %v1879 = vpop.f32.mrb[0].mxu0
        %1880 = vmatprep.mubr.bf16.mxu0 %v1602
        %1881 = vmatmul.mubr.bf16.gmra.mrb[0].mxu0 %v1508
        %v1882 = vpop.f32.mrb[0].mxu0
        %v1883 = vadd.f32 %v1675, %v1882
        %v1884 = vpop.f32.mrb[0].mxu0
        %v1885 = vpop.f32.mrb[0].mxu0
        %v1886 = vadd.f32 %v1675, %v1885
        %v1887 = vpop.f32.mrb[0].mxu0
        %1888 = vmatprep.mubr.bf16.mxu0 %v1604
        %1889 = vmatmul.mubr.bf16.gmra.mrb[0].mxu0 %v1511
        %v1890 = vpop.f32.mrb[0].mxu0
        %v1891 = vadd.f32 %v1675, %v1890
        %v1892 = vpop.f32.mrb[0].mxu0
        %v1893 = vpop.f32.mrb[0].mxu0
        %v1894 = vadd.f32 %v1675, %v1893
        %v1895 = vpop.f32.mrb[0].mxu0
        %1896 = vmatprep.mubr.bf16.mxu0 %v1606
        %1897 = vmatmul.mubr.bf16.gmra.mrb[0].mxu0 %v1514
        %v1898 = vpop.f32.mrb[0].mxu0
        %v1899 = vadd.f32 %v1675, %v1898
        %v1900 = vpop.f32.mrb[0].mxu0
        %v1901 = vpop.f32.mrb[0].mxu0
        %v1902 = vadd.f32 %v1675, %v1901
        %v1903 = vpop.f32.mrb[0].mxu0
        %1904 = vmatprep.mubr.bf16.mxu0 %v1608
        %1905 = vmatmul.mubr.bf16.gmra.mrb[0].mxu0 %v1517
        %v1906 = vpop.f32.mrb[0].mxu0
        %v1907 = vadd.f32 %v1675, %v1906
        %v1908 = vpop.f32.mrb[0].mxu0
        %v1909 = vpop.f32.mrb[0].mxu0
        %v1910 = vadd.f32 %v1675, %v1909
        %v1911 = vpop.f32.mrb[0].mxu0
        %1912 = vmatprep.mubr.bf16.mxu0 %v1611
        %1913 = vmatmul.mubr.bf16.gmra.mrb[0].mxu0 %v1520
        %v1914 = vpop.f32.mrb[0].mxu0
        %v1915 = vadd.f32 %v1675, %v1914
        %v1916 = vpop.f32.mrb[0].mxu0
        %v1917 = vpop.f32.mrb[0].mxu0
        %v1918 = vadd.f32 %v1675, %v1917
        %v1919 = vpop.f32.mrb[0].mxu0
        %1920 = vmatprep.mubr.bf16.mxu0 %v1613
        %1921 = vmatmul.mubr.bf16.gmra.mrb[0].mxu0 %v1523
        %v1922 = vpop.f32.mrb[0].mxu0
        %v1923 = vadd.f32 %v1675, %v1922
        %v1924 = vpop.f32.mrb[0].mxu0
        %v1925 = vpop.f32.mrb[0].mxu0
        %v1926 = vadd.f32 %v1675, %v1925
        %v1927 = vpop.f32.mrb[0].mxu0
        %1928 = vmatprep.mubr.bf16.mxu0 %v1615
        %1929 = vmatmul.mubr.bf16.gmra.mrb[0].mxu0 %v1526
        %v1930 = vpop.f32.mrb[0].mxu0
        %v1931 = vadd.f32 %v1675, %v1930
        %v1932 = vpop.f32.mrb[0].mxu0
        %v1933 = vpop.f32.mrb[0].mxu0
        %v1934 = vadd.f32 %v1675, %v1933
        %v1935 = vpop.f32.mrb[0].mxu0
        %1936 = vmatprep.mubr.bf16.mxu0 %v1617
        %1937 = vmatmul.mubr.bf16.gmra.mrb[0].mxu0 %v1529
        %v1938 = vpop.f32.mrb[0].mxu0
        %v1939 = vadd.f32 %v1675, %v1938
        %v1940 = vpop.f32.mrb[0].mxu0
        %v1941 = vpop.f32.mrb[0].mxu0
        %v1942 = vadd.f32 %v1675, %v1941
        %v1943 = vpop.f32.mrb[0].mxu0
        %1944 = vmatprep.mubr.bf16.mxu0 %v1620
        %1945 = vmatmul.mubr.bf16.gmra.mrb[0].mxu0 %v1532
        %v1946 = vpop.f32.mrb[0].mxu0
        %v1947 = vadd.f32 %v1675, %v1946
        %v1948 = vpop.f32.mrb[0].mxu0
        %v1949 = vpop.f32.mrb[0].mxu0
        %v1950 = vadd.f32 %v1675, %v1949
        %v1951 = vpop.f32.mrb[0].mxu0
        %1952 = vmatprep.mubr.bf16.mxu0 %v1623
        %1953 = vmatmul.mubr.bf16.gmra.mrb[0].mxu0 %v1535
        %v1954 = vpop.f32.mrb[0].mxu0
        %v1955 = vadd.f32 %v1675, %v1954
        %v1956 = vpop.f32.mrb[0].mxu0
        %v1957 = vpop.f32.mrb[0].mxu0
        %v1958 = vadd.f32 %v1675, %v1957
        %v1959 = vpop.f32.mrb[0].mxu0
        %1960 = vmatprep.mubr.bf16.mxu0 %v1626
        %1961 = vmatmul.mubr.bf16.gmra.mrb[0].mxu0 %v1538
        %v1962 = vpop.f32.mrb[0].mxu0
        %v1963 = vadd.f32 %v1675, %v1962
        %v1964 = vpop.f32.mrb[0].mxu0
        %v1965 = vpop.f32.mrb[0].mxu0
        %v1966 = vadd.f32 %v1675, %v1965
        %v1967 = vpop.f32.mrb[0].mxu0
        %1968 = vmatprep.mubr.bf16.mxu0 %v1629
        %1969 = vmatmul.mubr.bf16.gmra.mrb[0].mxu0 %v1541
        %v1970 = vpop.f32.mrb[0].mxu0
        %v1971 = vadd.f32 %v1675, %v1970
        %v1972 = vpop.f32.mrb[0].mxu0
        %v1973 = vpop.f32.mrb[0].mxu0
        %v1974 = vadd.f32 %v1675, %v1973
        %v1975 = vpop.f32.mrb[0].mxu0
        %1976 = vmatprep.mubr.bf16.mxu0 %v1632
        %1977 = vmatmul.mubr.bf16.gmra.mrb[0].mxu0 %v1544
        %v1978 = vpop.f32.mrb[0].mxu0
        %v1979 = vadd.f32 %v1675, %v1978
        %v1980 = vpop.f32.mrb[0].mxu0
        %v1981 = vpop.f32.mrb[0].mxu0
        %v1982 = vadd.f32 %v1675, %v1981
        %v1983 = vpop.f32.mrb[0].mxu0
        %1984 = vdwg.mxu0
        %1985 = vmatprep.subr.bf16.mxu0 0
        %1986 = vmatpush1.bf16.msra.mxu0 %v1765
        %1987 = vmatprep.subr.bf16.mxu0 0
        %1988 = vmatpush1.bf16.msra.mxu0 %v1766
        %1989 = vmatprep.subr.bf16.mxu0 0
        %1990 = vmatpush1.bf16.msra.mxu0 0
        %1991 = vmatprep.subr.bf16.mxu0 0
        %1992 = vmatpush1.bf16.msra.mxu0 0
        %1993 = vmatprep.subr.bf16.mxu0 0
        %1994 = vmatpush1.bf16.msra.mxu0 0
        %1995 = vmatprep.subr.bf16.mxu0 0
        %1996 = vmatpush1.bf16.msra.mxu0 0
        %1997 = vmatprep.subr.bf16.mxu0 0
        %1998 = vmatpush1.bf16.msra.mxu0 0
        %1999 = vmatprep.subr.bf16.mxu0 0
        %2000 = vmatpush1.bf16.msra.mxu0 0
        %2001 = vmatprep.subr.bf16.mxu0 0
        %2002 = vmatpush1.bf16.msra.mxu0 0
        %2003 = vmatprep.subr.bf16.mxu0 0
        %2004 = vmatpush1.bf16.msra.mxu0 0
        %2005 = vmatprep.subr.bf16.mxu0 0
        %2006 = vmatpush1.bf16.msra.mxu0 0
        %2007 = vmatprep.subr.bf16.mxu0 0
        %2008 = vmatpush1.bf16.msra.mxu0 0
        %2009 = vmatprep.subr.bf16.mxu0 0
        %2010 = vmatpush1.bf16.msra.mxu0 0
        %2011 = vmatprep.subr.bf16.mxu0 0
        %2012 = vmatpush1.bf16.msra.mxu0 0
        %2013 = vmatprep.subr.bf16.mxu0 0
        %2014 = vmatpush1.bf16.msra.mxu0 0
        %2015 = vmatprep.subr.bf16.mxu0 0
        %2016 = vmatpush1.bf16.msra.mxu0 0
        %2017 = vmatprep.mubr.bf16.mxu0 0
        %2018 = vmatmul.mubr.bf16.gmra.mrb[0].mxu0 %v1785
        %v2019 = vpop.f32.mrb[0].mxu0
        %v2020 = vadd.f32 %v1859, %v2019
        %v2021 = vpop.f32.mrb[0].mxu0
        %v2022 = vpop.f32.mrb[0].mxu0
        %v2023 = vadd.f32 %v1862, %v2022
        %v2024 = vpop.f32.mrb[0].mxu0
        %2025 = vmatprep.mubr.bf16.mxu0 0
        %2026 = vmatmul.mubr.bf16.gmra.mrb[0].mxu0 %v1787
        %v2027 = vpop.f32.mrb[0].mxu0
        %v2028 = vadd.f32 %v1867, %v2027
        %v2029 = vpop.f32.mrb[0].mxu0
        %v2030 = vpop.f32.mrb[0].mxu0
        %v2031 = vadd.f32 %v1870, %v2030
        %v2032 = vpop.f32.mrb[0].mxu0
        %2033 = vmatprep.mubr.bf16.mxu0 0
        %2034 = vmatmul.mubr.bf16.gmra.mrb[0].mxu0 %v1789
        %v2035 = vpop.f32.mrb[0].mxu0
        %v2036 = vadd.f32 %v1875, %v2035
        %v2037 = vpop.f32.mrb[0].mxu0
        %v2038 = vpop.f32.mrb[0].mxu0
        %v2039 = vadd.f32 %v1878, %v2038
        %v2040 = vpop.f32.mrb[0].mxu0
        %2041 = vmatprep.mubr.bf16.mxu0 0
        %2042 = vmatmul.mubr.bf16.gmra.mrb[0].mxu0 %v1792
        %v2043 = vpop.f32.mrb[0].mxu0
        %v2044 = vadd.f32 %v1883, %v2043
        %v2045 = vpop.f32.mrb[0].mxu0
        %v2046 = vpop.f32.mrb[0].mxu0
        %v2047 = vadd.f32 %v1886, %v2046
        %v2048 = vpop.f32.mrb[0].mxu0
        %2049 = vmatprep.mubr.bf16.mxu0 0
        %2050 = vmatmul.mubr.bf16.gmra.mrb[0].mxu0 %v1794
        %v2051 = vpop.f32.mrb[0].mxu0
        %v2052 = vadd.f32 %v1891, %v2051
        %v2053 = vpop.f32.mrb[0].mxu0
        %v2054 = vpop.f32.mrb[0].mxu0
        %v2055 = vadd.f32 %v1894, %v2054
        %v2056 = vpop.f32.mrb[0].mxu0
        %2057 = vmatprep.mubr.bf16.mxu0 0
        %2058 = vmatmul.mubr.bf16.gmra.mrb[0].mxu0 %v1796
        %v2059 = vpop.f32.mrb[0].mxu0
        %v2060 = vadd.f32 %v1899, %v2059
        %v2061 = vpop.f32.mrb[0].mxu0
        %v2062 = vpop.f32.mrb[0].mxu0
        %v2063 = vadd.f32 %v1902, %v2062
        %v2064 = vpop.f32.mrb[0].mxu0
        %2065 = vmatprep.mubr.bf16.mxu0 0
        %2066 = vmatmul.mubr.bf16.gmra.mrb[0].mxu0 %v1798
        %v2067 = vpop.f32.mrb[0].mxu0
        %v2068 = vadd.f32 %v1907, %v2067
        %v2069 = vpop.f32.mrb[0].mxu0
        %v2070 = vpop.f32.mrb[0].mxu0
        %v2071 = vadd.f32 %v1910, %v2070
        %v2072 = vpop.f32.mrb[0].mxu0
        %2073 = vmatprep.mubr.bf16.mxu0 0
        %2074 = vmatmul.mubr.bf16.gmra.mrb[0].mxu0 %v1801
        %v2075 = vpop.f32.mrb[0].mxu0
        %v2076 = vadd.f32 %v1915, %v2075
        %v2077 = vpop.f32.mrb[0].mxu0
        %v2078 = vpop.f32.mrb[0].mxu0
        %v2079 = vadd.f32 %v1918, %v2078
        %v2080 = vpop.f32.mrb[0].mxu0
        %2081 = vmatprep.mubr.bf16.mxu0 0
        %2082 = vmatmul.mubr.bf16.gmra.mrb[0].mxu0 %v1803
        %v2083 = vpop.f32.mrb[0].mxu0
        %v2084 = vadd.f32 %v1923, %v2083
        %v2085 = vpop.f32.mrb[0].mxu0
        %v2086 = vpop.f32.mrb[0].mxu0
        %v2087 = vadd.f32 %v1926, %v2086
        %v2088 = vpop.f32.mrb[0].mxu0
        %2089 = vmatprep.mubr.bf16.mxu0 0
        %2090 = vmatmul.mubr.bf16.gmra.mrb[0].mxu0 %v1805
        %v2091 = vpop.f32.mrb[0].mxu0
        %v2092 = vadd.f32 %v1931, %v2091
        %v2093 = vpop.f32.mrb[0].mxu0
        %v2094 = vpop.f32.mrb[0].mxu0
        %v2095 = vadd.f32 %v1934, %v2094
        %v2096 = vpop.f32.mrb[0].mxu0
        %2097 = vmatprep.mubr.bf16.mxu0 0
        %2098 = vmatmul.mubr.bf16.gmra.mrb[0].mxu0 %v1807
        %v2099 = vpop.f32.mrb[0].mxu0
        %v2100 = vadd.f32 %v1939, %v2099
        %v2101 = vpop.f32.mrb[0].mxu0
        %v2102 = vpop.f32.mrb[0].mxu0
        %v2103 = vadd.f32 %v1942, %v2102
        %v2104 = vpop.f32.mrb[0].mxu0
        %2105 = vmatprep.mubr.bf16.mxu0 0
        %2106 = vmatmul.mubr.bf16.gmra.mrb[0].mxu0 %v1810
        %v2107 = vpop.f32.mrb[0].mxu0
        %v2108 = vadd.f32 %v1947, %v2107
        %v2109 = vpop.f32.mrb[0].mxu0
        %v2110 = vpop.f32.mrb[0].mxu0
        %v2111 = vadd.f32 %v1950, %v2110
        %v2112 = vpop.f32.mrb[0].mxu0
        %2113 = vmatprep.mubr.bf16.mxu0 0
        %2114 = vmatmul.mubr.bf16.gmra.mrb[0].mxu0 %v1813
        %v2115 = vpop.f32.mrb[0].mxu0
        %v2116 = vadd.f32 %v1955, %v2115
        %v2117 = vpop.f32.mrb[0].mxu0
        %v2118 = vpop.f32.mrb[0].mxu0
        %v2119 = vadd.f32 %v1958, %v2118
        %v2120 = vpop.f32.mrb[0].mxu0
        %2121 = vmatprep.mubr.bf16.mxu0 0
        %2122 = vmatmul.mubr.bf16.gmra.mrb[0].mxu0 %v1816
        %v2123 = vpop.f32.mrb[0].mxu0
        %v2124 = vadd.f32 %v1963, %v2123
        %v2125 = vpop.f32.mrb[0].mxu0
        %v2126 = vpop.f32.mrb[0].mxu0
        %v2127 = vadd.f32 %v1966, %v2126
        %v2128 = vpop.f32.mrb[0].mxu0
        %2129 = vmatprep.mubr.bf16.mxu0 0
        %2130 = vmatmul.mubr.bf16.gmra.mrb[0].mxu0 %v1819
        %v2131 = vpop.f32.mrb[0].mxu0
        %v2132 = vadd.f32 %v1971, %v2131
        %v2133 = vpop.f32.mrb[0].mxu0
        %v2134 = vpop.f32.mrb[0].mxu0
        %v2135 = vadd.f32 %v1974, %v2134
        %v2136 = vpop.f32.mrb[0].mxu0
        %2137 = vmatprep.mubr.bf16.mxu0 0
        %2138 = vmatmul.mubr.bf16.gmra.mrb[0].mxu0 %v1822
        %v2139 = vpop.f32.mrb[0].mxu0
        %v2140 = vadd.f32 %v1979, %v2139
        %v2141 = vpop.f32.mrb[0].mxu0
        %v2142 = vpop.f32.mrb[0].mxu0
        %v2143 = vadd.f32 %v1982, %v2142
        %v2144 = vpop.f32.mrb[0].mxu0
        %2145 = vdwg.mxu0
        %v2146 = vmax.f32 %v2020, 0.0
        %v2147 = vmax.f32 %v2023, 0.0
        %v2148 = vmax.f32 %v2028, 0.0
        %v2149 = vmax.f32 %v2031, 0.0
        %v2150 = vmax.f32 %v2036, 0.0
        %v2151 = vmax.f32 %v2039, 0.0
        %v2152 = vmax.f32 %v2044, 0.0
        %v2153 = vmax.f32 %v2047, 0.0
        %v2154 = vmax.f32 %v2052, 0.0
        %v2155 = vmax.f32 %v2055, 0.0
        %v2156 = vmax.f32 %v2060, 0.0
        %v2157 = vmax.f32 %v2063, 0.0
        %v2158 = vmax.f32 %v2068, 0.0
        %v2159 = vmax.f32 %v2071, 0.0
        %v2160 = vmax.f32 %v2076, 0.0
        %v2161 = vmax.f32 %v2079, 0.0
        %v2162 = vmax.f32 %v2084, 0.0
        %v2163 = vmax.f32 %v2087, 0.0
        %v2164 = vmax.f32 %v2092, 0.0
        %v2165 = vmax.f32 %v2095, 0.0
        %v2166 = vmax.f32 %v2100, 0.0
        %v2167 = vmax.f32 %v2103, 0.0
        %v2168 = vmax.f32 %v2108, 0.0
        %v2169 = vmax.f32 %v2111, 0.0
        %v2170 = vmax.f32 %v2116, 0.0
        %v2171 = vmax.f32 %v2119, 0.0
        %v2172 = vmax.f32 %v2124, 0.0
        %v2173 = vmax.f32 %v2127, 0.0
        %v2174 = vmax.f32 %v2132, 0.0
        %v2175 = vmax.f32 %v2135, 0.0
        %v2176 = vmax.f32 %v2140, 0.0
        %v2177 = vmax.f32 %v2143, 0.0
        %v2178 = vpack.c.bf16 %v2147, %v2146
        %v2179 = vpack.c.bf16 %v2149, %v2148
        %v2180 = vpack.c.bf16 %v2151, %v2150
        %v2181 = vpack.c.bf16 %v2153, %v2152
        %v2182 = vpack.c.bf16 %v2155, %v2154
        %v2183 = vpack.c.bf16 %v2157, %v2156
        %v2184 = vpack.c.bf16 %v2159, %v2158
        %v2185 = vpack.c.bf16 %v2161, %v2160
        %v2186 = vpack.c.bf16 %v2163, %v2162
        %v2187 = vpack.c.bf16 %v2165, %v2164
        %v2188 = vpack.c.bf16 %v2167, %v2166
        %v2189 = vpack.c.bf16 %v2169, %v2168
        %v2190 = vpack.c.bf16 %v2171, %v2170
        %v2191 = vpack.c.bf16 %v2173, %v2172
        %v2192 = vpack.c.bf16 %v2175, %v2174
        %v2193 = vpack.c.bf16 %v2177, %v2176
        %v2194 = vld [vmem:[%s7] sm:$0xf]
        %v2195 = vld [vmem:[%s7 + $0x4] sm:$0xf]
        %v2196 = vld [vmem:[%s7 + $0x8] sm:$0xf]
        %v2197 = vld [vmem:[%s7 + $0xc] sm:$0xf]
        %v2198 = vld [vmem:[%s7 + $0x10] sm:$0xf]
        %v2199 = vld [vmem:[%s7 + $0x14] sm:$0xf]
        %v2200 = vld [vmem:[%s7 + $0x18] sm:$0xf]
        %v2201 = vld [vmem:[%s7 + $0x1c] sm:$0xf]
        %v2202 = vld [vmem:[%s8] sm:$0x1]
        %v2204 = vlaneseq
        %v2205 = vshrl.u32 %v2204, 7
        %v2206 = vsub.s32 0, %v2205
        %v2207 = vrot.slane %v2202, %v2206
        %v2217 = vunpack.c.l.b16 %v2194
        %v2218 = vunpack.c.l.b16 %v2195
        %v2219 = vunpack.c.l.b16 %v2196
        %v2220 = vunpack.c.l.b16 %v2197
        %v2221 = vunpack.c.l.b16 %v2198
        %v2222 = vunpack.c.l.b16 %v2199
        %v2223 = vunpack.c.l.b16 %v2200
        %v2224 = vunpack.c.l.b16 %v2201
        %v2225 = vpack.c.b16 %v2218, %v2217
        %v2226 = vpack.c.b16 %v2220, %v2219
        %v2227 = vpack.c.b16 %v2222, %v2221
        %v2228 = vpack.c.b16 %v2224, %v2223
        %2233 = vmatprep.subr.bf16.mxu0 0
        %2234 = vmatpush1.bf16.msra.mxu0 %v2225
        %2235 = vmatprep.subr.bf16.mxu0 0
        %2236 = vmatpush1.bf16.msra.mxu0 %v2226
        %2237 = vmatprep.subr.bf16.mxu0 0
        %2238 = vmatpush1.bf16.msra.mxu0 %v2227
        %2239 = vmatprep.subr.bf16.mxu0 0
        %2240 = vmatpush1.bf16.msra.mxu0 %v2228
        %2241 = vmatprep.subr.bf16.mxu0 0
        %2242 = vmatpush1.bf16.msra.mxu0 0
        %2243 = vmatprep.subr.bf16.mxu0 0
        %2244 = vmatpush1.bf16.msra.mxu0 0
        %2245 = vmatprep.subr.bf16.mxu0 0
        %2246 = vmatpush1.bf16.msra.mxu0 0
        %2247 = vmatprep.subr.bf16.mxu0 0
        %2248 = vmatpush1.bf16.msra.mxu0 0
        %2249 = vmatprep.subr.bf16.mxu0 0
        %2250 = vmatpush1.bf16.msra.mxu0 0
        %2251 = vmatprep.subr.bf16.mxu0 0
        %2252 = vmatpush1.bf16.msra.mxu0 0
        %2253 = vmatprep.subr.bf16.mxu0 0
        %2254 = vmatpush1.bf16.msra.mxu0 0
        %2255 = vmatprep.subr.bf16.mxu0 0
        %2256 = vmatpush1.bf16.msra.mxu0 0
        %2257 = vmatprep.subr.bf16.mxu0 0
        %2258 = vmatpush1.bf16.msra.mxu0 0
        %2259 = vmatprep.subr.bf16.mxu0 0
        %2260 = vmatpush1.bf16.msra.mxu0 0
        %2261 = vmatprep.subr.bf16.mxu0 0
        %2262 = vmatpush1.bf16.msra.mxu0 0
        %2263 = vmatprep.subr.bf16.mxu0 0
        %2264 = vmatpush1.bf16.msra.mxu0 0
        %2265 = vmatprep.mubr.bf16.mxu0 0
        %2266 = vmatmul.mubr.bf16.gmra.mrb[0].mxu0 %v926
        %v2267 = vpop.f32.mrb[0].mxu0
        %v2268 = vadd.f32 %v2207, %v2267
        %v2269 = vpop.f32.mrb[0].mxu0
        %v2270 = vpop.f32.mrb[0].mxu0
        %v2271 = vadd.f32 %v2207, %v2270
        %v2272 = vpop.f32.mrb[0].mxu0
        %2273 = vmatprep.mubr.bf16.mxu0 0
        %2274 = vmatmul.mubr.bf16.gmra.mrb[0].mxu0 %v929
        %v2275 = vpop.f32.mrb[0].mxu0
        %v2276 = vadd.f32 %v2207, %v2275
        %v2277 = vpop.f32.mrb[0].mxu0
        %v2278 = vpop.f32.mrb[0].mxu0
        %v2279 = vadd.f32 %v2207, %v2278
        %v2280 = vpop.f32.mrb[0].mxu0
        %2281 = vmatprep.mubr.bf16.mxu0 0
        %2282 = vmatmul.mubr.bf16.gmra.mrb[0].mxu0 %v932
        %v2283 = vpop.f32.mrb[0].mxu0
        %v2284 = vadd.f32 %v2207, %v2283
        %v2285 = vpop.f32.mrb[0].mxu0
        %v2286 = vpop.f32.mrb[0].mxu0
        %v2287 = vadd.f32 %v2207, %v2286
        %v2288 = vpop.f32.mrb[0].mxu0
        %2289 = vmatprep.mubr.bf16.mxu0 0
        %2290 = vmatmul.mubr.bf16.gmra.mrb[0].mxu0 %v935
        %v2291 = vpop.f32.mrb[0].mxu0
        %v2292 = vadd.f32 %v2207, %v2291
        %v2293 = vpop.f32.mrb[0].mxu0
        %v2294 = vpop.f32.mrb[0].mxu0
        %v2295 = vadd.f32 %v2207, %v2294
        %v2296 = vpop.f32.mrb[0].mxu0
        %2297 = vmatprep.mubr.bf16.mxu0 0
        %2298 = vmatmul.mubr.bf16.gmra.mrb[0].mxu0 %v938
        %v2299 = vpop.f32.mrb[0].mxu0
        %v2300 = vadd.f32 %v2207, %v2299
        %v2301 = vpop.f32.mrb[0].mxu0
        %v2302 = vpop.f32.mrb[0].mxu0
        %v2303 = vadd.f32 %v2207, %v2302
        %v2304 = vpop.f32.mrb[0].mxu0
        %2305 = vmatprep.mubr.bf16.mxu0 0
        %2306 = vmatmul.mubr.bf16.gmra.mrb[0].mxu0 %v941
        %v2307 = vpop.f32.mrb[0].mxu0
        %v2308 = vadd.f32 %v2207, %v2307
        %v2309 = vpop.f32.mrb[0].mxu0
        %v2310 = vpop.f32.mrb[0].mxu0
        %v2311 = vadd.f32 %v2207, %v2310
        %v2312 = vpop.f32.mrb[0].mxu0
        %2313 = vmatprep.mubr.bf16.mxu0 0
        %2314 = vmatmul.mubr.bf16.gmra.mrb[0].mxu0 %v944
        %v2315 = vpop.f32.mrb[0].mxu0
        %v2316 = vadd.f32 %v2207, %v2315
        %v2317 = vpop.f32.mrb[0].mxu0
        %v2318 = vpop.f32.mrb[0].mxu0
        %v2319 = vadd.f32 %v2207, %v2318
        %v2320 = vpop.f32.mrb[0].mxu0
        %2321 = vmatprep.mubr.bf16.mxu0 0
        %2322 = vmatmul.mubr.bf16.gmra.mrb[0].mxu0 %v947
        %v2323 = vpop.f32.mrb[0].mxu0
        %v2324 = vadd.f32 %v2207, %v2323
        %v2325 = vpop.f32.mrb[0].mxu0
        %v2326 = vpop.f32.mrb[0].mxu0
        %v2327 = vadd.f32 %v2207, %v2326
        %v2328 = vpop.f32.mrb[0].mxu0
        %2329 = vmatprep.mubr.bf16.mxu0 0
        %2330 = vmatmul.mubr.bf16.gmra.mrb[0].mxu0 %v950
        %v2331 = vpop.f32.mrb[0].mxu0
        %v2332 = vadd.f32 %v2207, %v2331
        %v2333 = vpop.f32.mrb[0].mxu0
        %v2334 = vpop.f32.mrb[0].mxu0
        %v2335 = vadd.f32 %v2207, %v2334
        %v2336 = vpop.f32.mrb[0].mxu0
        %2337 = vmatprep.mubr.bf16.mxu0 0
        %2338 = vmatmul.mubr.bf16.gmra.mrb[0].mxu0 %v953
        %v2339 = vpop.f32.mrb[0].mxu0
        %v2340 = vadd.f32 %v2207, %v2339
        %v2341 = vpop.f32.mrb[0].mxu0
        %v2342 = vpop.f32.mrb[0].mxu0
        %v2343 = vadd.f32 %v2207, %v2342
        %v2344 = vpop.f32.mrb[0].mxu0
        %2345 = vmatprep.mubr.bf16.mxu0 0
        %2346 = vmatmul.mubr.bf16.gmra.mrb[0].mxu0 %v956
        %v2347 = vpop.f32.mrb[0].mxu0
        %v2348 = vadd.f32 %v2207, %v2347
        %v2349 = vpop.f32.mrb[0].mxu0
        %v2350 = vpop.f32.mrb[0].mxu0
        %v2351 = vadd.f32 %v2207, %v2350
        %v2352 = vpop.f32.mrb[0].mxu0
        %2353 = vmatprep.mubr.bf16.mxu0 0
        %2354 = vmatmul.mubr.bf16.gmra.mrb[0].mxu0 %v959
        %v2355 = vpop.f32.mrb[0].mxu0
        %v2356 = vadd.f32 %v2207, %v2355
        %v2357 = vpop.f32.mrb[0].mxu0
        %v2358 = vpop.f32.mrb[0].mxu0
        %v2359 = vadd.f32 %v2207, %v2358
        %v2360 = vpop.f32.mrb[0].mxu0
        %2361 = vmatprep.mubr.bf16.mxu0 0
        %2362 = vmatmul.mubr.bf16.gmra.mrb[0].mxu0 %v962
        %v2363 = vpop.f32.mrb[0].mxu0
        %v2364 = vadd.f32 %v2207, %v2363
        %v2365 = vpop.f32.mrb[0].mxu0
        %v2366 = vpop.f32.mrb[0].mxu0
        %v2367 = vadd.f32 %v2207, %v2366
        %v2368 = vpop.f32.mrb[0].mxu0
        %2369 = vmatprep.mubr.bf16.mxu0 0
        %2370 = vmatmul.mubr.bf16.gmra.mrb[0].mxu0 %v965
        %v2371 = vpop.f32.mrb[0].mxu0
        %v2372 = vadd.f32 %v2207, %v2371
        %v2373 = vpop.f32.mrb[0].mxu0
        %v2374 = vpop.f32.mrb[0].mxu0
        %v2375 = vadd.f32 %v2207, %v2374
        %v2376 = vpop.f32.mrb[0].mxu0
        %2377 = vmatprep.mubr.bf16.mxu0 0
        %2378 = vmatmul.mubr.bf16.gmra.mrb[0].mxu0 %v968
        %v2379 = vpop.f32.mrb[0].mxu0
        %v2380 = vadd.f32 %v2207, %v2379
        %v2381 = vpop.f32.mrb[0].mxu0
        %v2382 = vpop.f32.mrb[0].mxu0
        %v2383 = vadd.f32 %v2207, %v2382
        %v2384 = vpop.f32.mrb[0].mxu0
        %2385 = vmatprep.mubr.bf16.mxu0 0
        %2386 = vmatmul.mubr.bf16.gmra.mrb[0].mxu0 %v971
        %v2387 = vpop.f32.mrb[0].mxu0
        %v2388 = vadd.f32 %v2207, %v2387
        %v2389 = vpop.f32.mrb[0].mxu0
        %v2390 = vpop.f32.mrb[0].mxu0
        %v2391 = vadd.f32 %v2207, %v2390
        %v2392 = vpop.f32.mrb[0].mxu0
        %2393 = vdwg.mxu0
        %v2394 = vld [vmem:[%s5] sm:$0xf]
        %v2395 = vld [vmem:[%s5 + $0x4] sm:$0xf]
        %v2396 = vld [vmem:[%s5 + $0x8] sm:$0xf]
        %v2397 = vld [vmem:[%s5 + $0xc] sm:$0xf]
        %v2398 = vld [vmem:[%s6] sm:$0x1]
        %v2400 = vlaneseq
        %v2401 = vshrl.u32 %v2400, 7
        %v2402 = vsub.s32 0, %v2401
        %v2403 = vrot.slane %v2398, %v2402
        %v2409 = vunpack.c.l.b16 %v2394
        %v2410 = vunpack.c.l.b16 %v2395
        %v2411 = vunpack.c.l.b16 %v2396
        %v2412 = vunpack.c.l.b16 %v2397
        %v2413 = vpack.c.b16 %v2410, %v2409
        %v2414 = vpack.c.b16 %v2412, %v2411
        %v2418 = vsel %vm813, %v2178, 0
        %v2421 = vsel %vm813, %v2179, 0
        %v2424 = vsel %vm813, %v2180, 0
        %v2427 = vsel %vm813, %v2181, 0
        %v2430 = vsel %vm813, %v2182, 0
        %v2433 = vsel %vm813, %v2183, 0
        %v2436 = vsel %vm813, %v2184, 0
        %v2439 = vsel %vm813, %v2185, 0
        %v2442 = vsel %vm813, %v2186, 0
        %v2445 = vsel %vm813, %v2187, 0
        %v2448 = vsel %vm813, %v2188, 0
        %v2451 = vsel %vm813, %v2189, 0
        %v2454 = vsel %vm813, %v2190, 0
        %v2457 = vsel %vm813, %v2191, 0
        %v2460 = vsel %vm813, %v2192, 0
        %v2463 = vsel %vm813, %v2193, 0
        %2465 = vmatprep.subr.bf16.mxu0 0
        %2466 = vmatpush1.bf16.msra.mxu0 %v2413
        %2467 = vmatprep.subr.bf16.mxu0 0
        %2468 = vmatpush1.bf16.msra.mxu0 %v2414
        %2469 = vmatprep.subr.bf16.mxu0 0
        %2470 = vmatpush1.bf16.msra.mxu0 0
        %2471 = vmatprep.subr.bf16.mxu0 0
        %2472 = vmatpush1.bf16.msra.mxu0 0
        %2473 = vmatprep.subr.bf16.mxu0 0
        %2474 = vmatpush1.bf16.msra.mxu0 0
        %2475 = vmatprep.subr.bf16.mxu0 0
        %2476 = vmatpush1.bf16.msra.mxu0 0
        %2477 = vmatprep.subr.bf16.mxu0 0
        %2478 = vmatpush1.bf16.msra.mxu0 0
        %2479 = vmatprep.subr.bf16.mxu0 0
        %2480 = vmatpush1.bf16.msra.mxu0 0
        %2481 = vmatprep.subr.bf16.mxu0 0
        %2482 = vmatpush1.bf16.msra.mxu0 0
        %2483 = vmatprep.subr.bf16.mxu0 0
        %2484 = vmatpush1.bf16.msra.mxu0 0
        %2485 = vmatprep.subr.bf16.mxu0 0
        %2486 = vmatpush1.bf16.msra.mxu0 0
        %2487 = vmatprep.subr.bf16.mxu0 0
        %2488 = vmatpush1.bf16.msra.mxu0 0
        %2489 = vmatprep.subr.bf16.mxu0 0
        %2490 = vmatpush1.bf16.msra.mxu0 0
        %2491 = vmatprep.subr.bf16.mxu0 0
        %2492 = vmatpush1.bf16.msra.mxu0 0
        %2493 = vmatprep.subr.bf16.mxu0 0
        %2494 = vmatpush1.bf16.msra.mxu0 0
        %2495 = vmatprep.subr.bf16.mxu0 0
        %2496 = vmatpush1.bf16.msra.mxu0 0
        %2497 = vmatprep.mubr.bf16.mxu0 0
        %2498 = vmatmul.mubr.bf16.gmra.mrb[0].mxu0 %v2418
        %v2499 = vpop.f32.mrb[0].mxu0
        %v2500 = vadd.f32 %v2403, %v2499
        %v2501 = vpop.f32.mrb[0].mxu0
        %v2502 = vpop.f32.mrb[0].mxu0
        %v2503 = vadd.f32 %v2403, %v2502
        %v2504 = vpop.f32.mrb[0].mxu0
        %2505 = vmatprep.mubr.bf16.mxu0 0
        %2506 = vmatmul.mubr.bf16.gmra.mrb[0].mxu0 %v2421
        %v2507 = vpop.f32.mrb[0].mxu0
        %v2508 = vadd.f32 %v2403, %v2507
        %v2509 = vpop.f32.mrb[0].mxu0
        %v2510 = vpop.f32.mrb[0].mxu0
        %v2511 = vadd.f32 %v2403, %v2510
        %v2512 = vpop.f32.mrb[0].mxu0
        %2513 = vmatprep.mubr.bf16.mxu0 0
        %2514 = vmatmul.mubr.bf16.gmra.mrb[0].mxu0 %v2424
        %v2515 = vpop.f32.mrb[0].mxu0
        %v2516 = vadd.f32 %v2403, %v2515
        %v2517 = vpop.f32.mrb[0].mxu0
        %v2518 = vpop.f32.mrb[0].mxu0
        %v2519 = vadd.f32 %v2403, %v2518
        %v2520 = vpop.f32.mrb[0].mxu0
        %2521 = vmatprep.mubr.bf16.mxu0 0
        %2522 = vmatmul.mubr.bf16.gmra.mrb[0].mxu0 %v2427
        %v2523 = vpop.f32.mrb[0].mxu0
        %v2524 = vadd.f32 %v2403, %v2523
        %v2525 = vpop.f32.mrb[0].mxu0
        %v2526 = vpop.f32.mrb[0].mxu0
        %v2527 = vadd.f32 %v2403, %v2526
        %v2528 = vpop.f32.mrb[0].mxu0
        %2529 = vmatprep.mubr.bf16.mxu0 0
        %2530 = vmatmul.mubr.bf16.gmra.mrb[0].mxu0 %v2430
        %v2531 = vpop.f32.mrb[0].mxu0
        %v2532 = vadd.f32 %v2403, %v2531
        %v2533 = vpop.f32.mrb[0].mxu0
        %v2534 = vpop.f32.mrb[0].mxu0
        %v2535 = vadd.f32 %v2403, %v2534
        %v2536 = vpop.f32.mrb[0].mxu0
        %2537 = vmatprep.mubr.bf16.mxu0 0
        %2538 = vmatmul.mubr.bf16.gmra.mrb[0].mxu0 %v2433
        %v2539 = vpop.f32.mrb[0].mxu0
        %v2540 = vadd.f32 %v2403, %v2539
        %v2541 = vpop.f32.mrb[0].mxu0
        %v2542 = vpop.f32.mrb[0].mxu0
        %v2543 = vadd.f32 %v2403, %v2542
        %v2544 = vpop.f32.mrb[0].mxu0
        %2545 = vmatprep.mubr.bf16.mxu0 0
        %2546 = vmatmul.mubr.bf16.gmra.mrb[0].mxu0 %v2436
        %v2547 = vpop.f32.mrb[0].mxu0
        %v2548 = vadd.f32 %v2403, %v2547
        %v2549 = vpop.f32.mrb[0].mxu0
        %v2550 = vpop.f32.mrb[0].mxu0
        %v2551 = vadd.f32 %v2403, %v2550
        %v2552 = vpop.f32.mrb[0].mxu0
        %2553 = vmatprep.mubr.bf16.mxu0 0
        %2554 = vmatmul.mubr.bf16.gmra.mrb[0].mxu0 %v2439
        %v2555 = vpop.f32.mrb[0].mxu0
        %v2556 = vadd.f32 %v2403, %v2555
        %v2557 = vpop.f32.mrb[0].mxu0
        %v2558 = vpop.f32.mrb[0].mxu0
        %v2559 = vadd.f32 %v2403, %v2558
        %v2560 = vpop.f32.mrb[0].mxu0
        %2561 = vmatprep.mubr.bf16.mxu0 0
        %2562 = vmatmul.mubr.bf16.gmra.mrb[0].mxu0 %v2442
        %v2563 = vpop.f32.mrb[0].mxu0
        %v2564 = vadd.f32 %v2403, %v2563
        %v2565 = vpop.f32.mrb[0].mxu0
        %v2566 = vpop.f32.mrb[0].mxu0
        %v2567 = vadd.f32 %v2403, %v2566
        %v2568 = vpop.f32.mrb[0].mxu0
        %2569 = vmatprep.mubr.bf16.mxu0 0
        %2570 = vmatmul.mubr.bf16.gmra.mrb[0].mxu0 %v2445
        %v2571 = vpop.f32.mrb[0].mxu0
        %v2572 = vadd.f32 %v2403, %v2571
        %v2573 = vpop.f32.mrb[0].mxu0
        %v2574 = vpop.f32.mrb[0].mxu0
        %v2575 = vadd.f32 %v2403, %v2574
        %v2576 = vpop.f32.mrb[0].mxu0
        %2577 = vmatprep.mubr.bf16.mxu0 0
        %2578 = vmatmul.mubr.bf16.gmra.mrb[0].mxu0 %v2448
        %v2579 = vpop.f32.mrb[0].mxu0
        %v2580 = vadd.f32 %v2403, %v2579
        %v2581 = vpop.f32.mrb[0].mxu0
        %v2582 = vpop.f32.mrb[0].mxu0
        %v2583 = vadd.f32 %v2403, %v2582
        %v2584 = vpop.f32.mrb[0].mxu0
        %2585 = vmatprep.mubr.bf16.mxu0 0
        %2586 = vmatmul.mubr.bf16.gmra.mrb[0].mxu0 %v2451
        %v2587 = vpop.f32.mrb[0].mxu0
        %v2588 = vadd.f32 %v2403, %v2587
        %v2589 = vpop.f32.mrb[0].mxu0
        %v2590 = vpop.f32.mrb[0].mxu0
        %v2591 = vadd.f32 %v2403, %v2590
        %v2592 = vpop.f32.mrb[0].mxu0
        %2593 = vmatprep.mubr.bf16.mxu0 0
        %2594 = vmatmul.mubr.bf16.gmra.mrb[0].mxu0 %v2454
        %v2595 = vpop.f32.mrb[0].mxu0
        %v2596 = vadd.f32 %v2403, %v2595
        %v2597 = vpop.f32.mrb[0].mxu0
        %v2598 = vpop.f32.mrb[0].mxu0
        %v2599 = vadd.f32 %v2403, %v2598
        %v2600 = vpop.f32.mrb[0].mxu0
        %2601 = vmatprep.mubr.bf16.mxu0 0
        %2602 = vmatmul.mubr.bf16.gmra.mrb[0].mxu0 %v2457
        %v2603 = vpop.f32.mrb[0].mxu0
        %v2604 = vadd.f32 %v2403, %v2603
        %v2605 = vpop.f32.mrb[0].mxu0
        %v2606 = vpop.f32.mrb[0].mxu0
        %v2607 = vadd.f32 %v2403, %v2606
        %v2608 = vpop.f32.mrb[0].mxu0
        %2609 = vmatprep.mubr.bf16.mxu0 0
        %2610 = vmatmul.mubr.bf16.gmra.mrb[0].mxu0 %v2460
        %v2611 = vpop.f32.mrb[0].mxu0
        %v2612 = vadd.f32 %v2403, %v2611
        %v2613 = vpop.f32.mrb[0].mxu0
        %v2614 = vpop.f32.mrb[0].mxu0
        %v2615 = vadd.f32 %v2403, %v2614
        %v2616 = vpop.f32.mrb[0].mxu0
        %2617 = vmatprep.mubr.bf16.mxu0 0
        %2618 = vmatmul.mubr.bf16.gmra.mrb[0].mxu0 %v2463
        %v2619 = vpop.f32.mrb[0].mxu0
        %v2620 = vadd.f32 %v2403, %v2619
        %v2621 = vpop.f32.mrb[0].mxu0
        %v2622 = vpop.f32.mrb[0].mxu0
        %v2623 = vadd.f32 %v2403, %v2622
        %v2624 = vpop.f32.mrb[0].mxu0
        %2625 = vdwg.mxu0
        %v2626 = vadd.f32 %v2500, %v2268
        %v2627 = vadd.f32 %v2503, %v2271
        %v2628 = vadd.f32 %v2508, %v2276
        %v2629 = vadd.f32 %v2511, %v2279
        %v2630 = vadd.f32 %v2516, %v2284
        %v2631 = vadd.f32 %v2519, %v2287
        %v2632 = vadd.f32 %v2524, %v2292
        %v2633 = vadd.f32 %v2527, %v2295
        %v2634 = vadd.f32 %v2532, %v2300
        %v2635 = vadd.f32 %v2535, %v2303
        %v2636 = vadd.f32 %v2540, %v2308
        %v2637 = vadd.f32 %v2543, %v2311
        %v2638 = vadd.f32 %v2548, %v2316
        %v2639 = vadd.f32 %v2551, %v2319
        %v2640 = vadd.f32 %v2556, %v2324
        %v2641 = vadd.f32 %v2559, %v2327
        %v2642 = vadd.f32 %v2564, %v2332
        %v2643 = vadd.f32 %v2567, %v2335
        %v2644 = vadd.f32 %v2572, %v2340
        %v2645 = vadd.f32 %v2575, %v2343
        %v2646 = vadd.f32 %v2580, %v2348
        %v2647 = vadd.f32 %v2583, %v2351
        %v2648 = vadd.f32 %v2588, %v2356
        %v2649 = vadd.f32 %v2591, %v2359
        %v2650 = vadd.f32 %v2596, %v2364
        %v2651 = vadd.f32 %v2599, %v2367
        %v2652 = vadd.f32 %v2604, %v2372
        %v2653 = vadd.f32 %v2607, %v2375
        %v2654 = vadd.f32 %v2612, %v2380
        %v2655 = vadd.f32 %v2615, %v2383
        %v2656 = vadd.f32 %v2620, %v2388
        %v2657 = vadd.f32 %v2623, %v2391
        %v2658 = vmax.f32 %v2626, 0.0
        %v2659 = vmax.f32 %v2627, 0.0
        %v2660 = vmax.f32 %v2628, 0.0
        %v2661 = vmax.f32 %v2629, 0.0
        %v2662 = vmax.f32 %v2630, 0.0
        %v2663 = vmax.f32 %v2631, 0.0
        %v2664 = vmax.f32 %v2632, 0.0
        %v2665 = vmax.f32 %v2633, 0.0
        %v2666 = vmax.f32 %v2634, 0.0
        %v2667 = vmax.f32 %v2635, 0.0
        %v2668 = vmax.f32 %v2636, 0.0
        %v2669 = vmax.f32 %v2637, 0.0
        %v2670 = vmax.f32 %v2638, 0.0
        %v2671 = vmax.f32 %v2639, 0.0
        %v2672 = vmax.f32 %v2640, 0.0
        %v2673 = vmax.f32 %v2641, 0.0
        %v2674 = vmax.f32 %v2642, 0.0
        %v2675 = vmax.f32 %v2643, 0.0
        %v2676 = vmax.f32 %v2644, 0.0
        %v2677 = vmax.f32 %v2645, 0.0
        %v2678 = vmax.f32 %v2646, 0.0
        %v2679 = vmax.f32 %v2647, 0.0
        %v2680 = vmax.f32 %v2648, 0.0
        %v2681 = vmax.f32 %v2649, 0.0
        %v2682 = vmax.f32 %v2650, 0.0
        %v2683 = vmax.f32 %v2651, 0.0
        %v2684 = vmax.f32 %v2652, 0.0
        %v2685 = vmax.f32 %v2653, 0.0
        %v2686 = vmax.f32 %v2654, 0.0
        %v2687 = vmax.f32 %v2655, 0.0
        %v2688 = vmax.f32 %v2656, 0.0
        %v2689 = vmax.f32 %v2657, 0.0
        %v2690 = vpack.c.bf16 %v2659, %v2658
        %v2691 = vpack.c.bf16 %v2661, %v2660
        %v2692 = vpack.c.bf16 %v2663, %v2662
        %v2693 = vpack.c.bf16 %v2665, %v2664
        %v2694 = vpack.c.bf16 %v2667, %v2666
        %v2695 = vpack.c.bf16 %v2669, %v2668
        %v2696 = vpack.c.bf16 %v2671, %v2670
        %v2697 = vpack.c.bf16 %v2673, %v2672
        %v2698 = vpack.c.bf16 %v2675, %v2674
        %v2699 = vpack.c.bf16 %v2677, %v2676
        %v2700 = vpack.c.bf16 %v2679, %v2678
        %v2701 = vpack.c.bf16 %v2681, %v2680
        %v2702 = vpack.c.bf16 %v2683, %v2682
        %v2703 = vpack.c.bf16 %v2685, %v2684
        %v2704 = vpack.c.bf16 %v2687, %v2686
        %v2705 = vpack.c.bf16 %v2689, %v2688
        %v2706 = vld [vmem:[%s9] sm:$0xf]
        %v2707 = vld [vmem:[%s9 + $0x4] sm:$0xf]
        %v2708 = vld [vmem:[%s9 + $0x8] sm:$0xf]
        %v2709 = vld [vmem:[%s9 + $0xc] sm:$0xf]
        %v2710 = vld [vmem:[%s9 + $0x10] sm:$0xf]
        %v2711 = vld [vmem:[%s9 + $0x14] sm:$0xf]
        %v2712 = vld [vmem:[%s9 + $0x18] sm:$0xf]
        %v2713 = vld [vmem:[%s9 + $0x1c] sm:$0xf]
        %v2714 = vld [vmem:[%s9 + $0x20] sm:$0xf]
        %v2715 = vld [vmem:[%s9 + $0x24] sm:$0xf]
        %v2716 = vld [vmem:[%s9 + $0x28] sm:$0xf]
        %v2717 = vld [vmem:[%s9 + $0x2c] sm:$0xf]
        %v2718 = vld [vmem:[%s9 + $0x30] sm:$0xf]
        %v2719 = vld [vmem:[%s9 + $0x34] sm:$0xf]
        %v2720 = vld [vmem:[%s9 + $0x38] sm:$0xf]
        %v2721 = vld [vmem:[%s9 + $0x3c] sm:$0xf]
        %v2722 = vld [vmem:[%s10] sm:$0x1]
        %v2724 = vlaneseq
        %v2725 = vshrl.u32 %v2724, 7
        %v2726 = vsub.s32 0, %v2725
        %v2727 = vrot.slane %v2722, %v2726
        %v2745 = vunpack.c.l.b16 %v2706
        %v2746 = vunpack.c.l.b16 %v2707
        %v2747 = vunpack.c.l.b16 %v2708
        %v2748 = vunpack.c.l.b16 %v2709
        %v2749 = vunpack.c.l.b16 %v2710
        %v2750 = vunpack.c.l.b16 %v2711
        %v2751 = vunpack.c.l.b16 %v2712
        %v2752 = vunpack.c.l.b16 %v2713
        %v2753 = vunpack.c.l.b16 %v2714
        %v2754 = vunpack.c.l.b16 %v2715
        %v2755 = vunpack.c.l.b16 %v2716
        %v2756 = vunpack.c.l.b16 %v2717
        %v2757 = vunpack.c.l.b16 %v2718
        %v2758 = vunpack.c.l.b16 %v2719
        %v2759 = vunpack.c.l.b16 %v2720
        %v2760 = vunpack.c.l.b16 %v2721
        %v2761 = vpack.c.b16 %v2746, %v2745
        %v2762 = vpack.c.b16 %v2748, %v2747
        %v2763 = vpack.c.b16 %v2750, %v2749
        %v2764 = vpack.c.b16 %v2752, %v2751
        %v2765 = vpack.c.b16 %v2754, %v2753
        %v2766 = vpack.c.b16 %v2756, %v2755
        %v2767 = vpack.c.b16 %v2758, %v2757
        %v2768 = vpack.c.b16 %v2760, %v2759
        %2777 = vmatprep.subr.bf16.mxu0 0
        %2778 = vmatpush1.bf16.msra.mxu0 %v2761
        %2779 = vmatprep.subr.bf16.mxu0 0
        %2780 = vmatpush1.bf16.msra.mxu0 %v2762
        %2781 = vmatprep.subr.bf16.mxu0 0
        %2782 = vmatpush1.bf16.msra.mxu0 %v2763
        %2783 = vmatprep.subr.bf16.mxu0 0
        %2784 = vmatpush1.bf16.msra.mxu0 %v2764
        %2785 = vmatprep.subr.bf16.mxu0 0
        %2786 = vmatpush1.bf16.msra.mxu0 %v2765
        %2787 = vmatprep.subr.bf16.mxu0 0
        %2788 = vmatpush1.bf16.msra.mxu0 %v2766
        %2789 = vmatprep.subr.bf16.mxu0 0
        %2790 = vmatpush1.bf16.msra.mxu0 %v2767
        %2791 = vmatprep.subr.bf16.mxu0 0
        %2792 = vmatpush1.bf16.msra.mxu0 %v2768
        %2793 = vmatprep.subr.bf16.mxu0 0
        %2794 = vmatpush1.bf16.msra.mxu0 0
        %2795 = vmatprep.subr.bf16.mxu0 0
        %2796 = vmatpush1.bf16.msra.mxu0 0
        %2797 = vmatprep.subr.bf16.mxu0 0
        %2798 = vmatpush1.bf16.msra.mxu0 0
        %2799 = vmatprep.subr.bf16.mxu0 0
        %2800 = vmatpush1.bf16.msra.mxu0 0
        %2801 = vmatprep.subr.bf16.mxu0 0
        %2802 = vmatpush1.bf16.msra.mxu0 0
        %2803 = vmatprep.subr.bf16.mxu0 0
        %2804 = vmatpush1.bf16.msra.mxu0 0
        %2805 = vmatprep.subr.bf16.mxu0 0
        %2806 = vmatpush1.bf16.msra.mxu0 0
        %2807 = vmatprep.subr.bf16.mxu0 0
        %2808 = vmatpush1.bf16.msra.mxu0 0
        %2809 = vmatprep.mubr.bf16.mxu0 0
        %2810 = vmatmul.mubr.bf16.gmra.mrb[0].mxu0 %v2690
        %v2811 = vpop.f32.mrb[0].mxu0
        %v2812 = vadd.f32 %v2727, %v2811
        %v2813 = vpop.f32.mrb[0].mxu0
        %v2814 = vpop.f32.mrb[0].mxu0
        %v2815 = vadd.f32 %v2727, %v2814
        %v2816 = vpop.f32.mrb[0].mxu0
        %2817 = vmatprep.mubr.bf16.mxu0 0
        %2818 = vmatmul.mubr.bf16.gmra.mrb[0].mxu0 %v2691
        %v2819 = vpop.f32.mrb[0].mxu0
        %v2820 = vadd.f32 %v2727, %v2819
        %v2821 = vpop.f32.mrb[0].mxu0
        %v2822 = vpop.f32.mrb[0].mxu0
        %v2823 = vadd.f32 %v2727, %v2822
        %v2824 = vpop.f32.mrb[0].mxu0
        %2825 = vmatprep.mubr.bf16.mxu0 0
        %2826 = vmatmul.mubr.bf16.gmra.mrb[0].mxu0 %v2692
        %v2827 = vpop.f32.mrb[0].mxu0
        %v2828 = vadd.f32 %v2727, %v2827
        %v2829 = vpop.f32.mrb[0].mxu0
        %v2830 = vpop.f32.mrb[0].mxu0
        %v2831 = vadd.f32 %v2727, %v2830
        %v2832 = vpop.f32.mrb[0].mxu0
        %2833 = vmatprep.mubr.bf16.mxu0 0
        %2834 = vmatmul.mubr.bf16.gmra.mrb[0].mxu0 %v2693
        %v2835 = vpop.f32.mrb[0].mxu0
        %v2836 = vadd.f32 %v2727, %v2835
        %v2837 = vpop.f32.mrb[0].mxu0
        %v2838 = vpop.f32.mrb[0].mxu0
        %v2839 = vadd.f32 %v2727, %v2838
        %v2840 = vpop.f32.mrb[0].mxu0
        %2841 = vmatprep.mubr.bf16.mxu0 0
        %2842 = vmatmul.mubr.bf16.gmra.mrb[0].mxu0 %v2694
        %v2843 = vpop.f32.mrb[0].mxu0
        %v2844 = vadd.f32 %v2727, %v2843
        %v2845 = vpop.f32.mrb[0].mxu0
        %v2846 = vpop.f32.mrb[0].mxu0
        %v2847 = vadd.f32 %v2727, %v2846
        %v2848 = vpop.f32.mrb[0].mxu0
        %2849 = vmatprep.mubr.bf16.mxu0 0
        %2850 = vmatmul.mubr.bf16.gmra.mrb[0].mxu0 %v2695
        %v2851 = vpop.f32.mrb[0].mxu0
        %v2852 = vadd.f32 %v2727, %v2851
        %v2853 = vpop.f32.mrb[0].mxu0
        %v2854 = vpop.f32.mrb[0].mxu0
        %v2855 = vadd.f32 %v2727, %v2854
        %v2856 = vpop.f32.mrb[0].mxu0
        %2857 = vmatprep.mubr.bf16.mxu0 0
        %2858 = vmatmul.mubr.bf16.gmra.mrb[0].mxu0 %v2696
        %v2859 = vpop.f32.mrb[0].mxu0
        %v2860 = vadd.f32 %v2727, %v2859
        %v2861 = vpop.f32.mrb[0].mxu0
        %v2862 = vpop.f32.mrb[0].mxu0
        %v2863 = vadd.f32 %v2727, %v2862
        %v2864 = vpop.f32.mrb[0].mxu0
        %2865 = vmatprep.mubr.bf16.mxu0 0
        %2866 = vmatmul.mubr.bf16.gmra.mrb[0].mxu0 %v2697
        %v2867 = vpop.f32.mrb[0].mxu0
        %v2868 = vadd.f32 %v2727, %v2867
        %v2869 = vpop.f32.mrb[0].mxu0
        %v2870 = vpop.f32.mrb[0].mxu0
        %v2871 = vadd.f32 %v2727, %v2870
        %v2872 = vpop.f32.mrb[0].mxu0
        %2873 = vmatprep.mubr.bf16.mxu0 0
        %2874 = vmatmul.mubr.bf16.gmra.mrb[0].mxu0 %v2698
        %v2875 = vpop.f32.mrb[0].mxu0
        %v2876 = vadd.f32 %v2727, %v2875
        %v2877 = vpop.f32.mrb[0].mxu0
        %v2878 = vpop.f32.mrb[0].mxu0
        %v2879 = vadd.f32 %v2727, %v2878
        %v2880 = vpop.f32.mrb[0].mxu0
        %2881 = vmatprep.mubr.bf16.mxu0 0
        %2882 = vmatmul.mubr.bf16.gmra.mrb[0].mxu0 %v2699
        %v2883 = vpop.f32.mrb[0].mxu0
        %v2884 = vadd.f32 %v2727, %v2883
        %v2885 = vpop.f32.mrb[0].mxu0
        %v2886 = vpop.f32.mrb[0].mxu0
        %v2887 = vadd.f32 %v2727, %v2886
        %v2888 = vpop.f32.mrb[0].mxu0
        %2889 = vmatprep.mubr.bf16.mxu0 0
        %2890 = vmatmul.mubr.bf16.gmra.mrb[0].mxu0 %v2700
        %v2891 = vpop.f32.mrb[0].mxu0
        %v2892 = vadd.f32 %v2727, %v2891
        %v2893 = vpop.f32.mrb[0].mxu0
        %v2894 = vpop.f32.mrb[0].mxu0
        %v2895 = vadd.f32 %v2727, %v2894
        %v2896 = vpop.f32.mrb[0].mxu0
        %2897 = vmatprep.mubr.bf16.mxu0 0
        %2898 = vmatmul.mubr.bf16.gmra.mrb[0].mxu0 %v2701
        %v2899 = vpop.f32.mrb[0].mxu0
        %v2900 = vadd.f32 %v2727, %v2899
        %v2901 = vpop.f32.mrb[0].mxu0
        %v2902 = vpop.f32.mrb[0].mxu0
        %v2903 = vadd.f32 %v2727, %v2902
        %v2904 = vpop.f32.mrb[0].mxu0
        %2905 = vmatprep.mubr.bf16.mxu0 0
        %2906 = vmatmul.mubr.bf16.gmra.mrb[0].mxu0 %v2702
        %v2907 = vpop.f32.mrb[0].mxu0
        %v2908 = vadd.f32 %v2727, %v2907
        %v2909 = vpop.f32.mrb[0].mxu0
        %v2910 = vpop.f32.mrb[0].mxu0
        %v2911 = vadd.f32 %v2727, %v2910
        %v2912 = vpop.f32.mrb[0].mxu0
        %2913 = vmatprep.mubr.bf16.mxu0 0
        %2914 = vmatmul.mubr.bf16.gmra.mrb[0].mxu0 %v2703
        %v2915 = vpop.f32.mrb[0].mxu0
        %v2916 = vadd.f32 %v2727, %v2915
        %v2917 = vpop.f32.mrb[0].mxu0
        %v2918 = vpop.f32.mrb[0].mxu0
        %v2919 = vadd.f32 %v2727, %v2918
        %v2920 = vpop.f32.mrb[0].mxu0
        %2921 = vmatprep.mubr.bf16.mxu0 0
        %2922 = vmatmul.mubr.bf16.gmra.mrb[0].mxu0 %v2704
        %v2923 = vpop.f32.mrb[0].mxu0
        %v2924 = vadd.f32 %v2727, %v2923
        %v2925 = vpop.f32.mrb[0].mxu0
        %v2926 = vpop.f32.mrb[0].mxu0
        %v2927 = vadd.f32 %v2727, %v2926
        %v2928 = vpop.f32.mrb[0].mxu0
        %2929 = vmatprep.mubr.bf16.mxu0 0
        %2930 = vmatmul.mubr.bf16.gmra.mrb[0].mxu0 %v2705
        %v2931 = vpop.f32.mrb[0].mxu0
        %v2932 = vadd.f32 %v2727, %v2931
        %v2933 = vpop.f32.mrb[0].mxu0
        %v2934 = vpop.f32.mrb[0].mxu0
        %v2935 = vadd.f32 %v2727, %v2934
        %v2936 = vpop.f32.mrb[0].mxu0
        %2937 = vdwg.mxu0
        %v2938 = vmax.f32 %v2812, 0.0
        %v2939 = vmax.f32 %v2815, 0.0
        %v2940 = vmax.f32 %v2820, 0.0
        %v2941 = vmax.f32 %v2823, 0.0
        %v2942 = vmax.f32 %v2828, 0.0
        %v2943 = vmax.f32 %v2831, 0.0
        %v2944 = vmax.f32 %v2836, 0.0
        %v2945 = vmax.f32 %v2839, 0.0
        %v2946 = vmax.f32 %v2844, 0.0
        %v2947 = vmax.f32 %v2847, 0.0
        %v2948 = vmax.f32 %v2852, 0.0
        %v2949 = vmax.f32 %v2855, 0.0
        %v2950 = vmax.f32 %v2860, 0.0
        %v2951 = vmax.f32 %v2863, 0.0
        %v2952 = vmax.f32 %v2868, 0.0
        %v2953 = vmax.f32 %v2871, 0.0
        %v2954 = vmax.f32 %v2876, 0.0
        %v2955 = vmax.f32 %v2879, 0.0
        %v2956 = vmax.f32 %v2884, 0.0
        %v2957 = vmax.f32 %v2887, 0.0
        %v2958 = vmax.f32 %v2892, 0.0
        %v2959 = vmax.f32 %v2895, 0.0
        %v2960 = vmax.f32 %v2900, 0.0
        %v2961 = vmax.f32 %v2903, 0.0
        %v2962 = vmax.f32 %v2908, 0.0
        %v2963 = vmax.f32 %v2911, 0.0
        %v2964 = vmax.f32 %v2916, 0.0
        %v2965 = vmax.f32 %v2919, 0.0
        %v2966 = vmax.f32 %v2924, 0.0
        %v2967 = vmax.f32 %v2927, 0.0
        %v2968 = vmax.f32 %v2932, 0.0
        %v2969 = vmax.f32 %v2935, 0.0
        %v2970 = vpack.c.bf16 %v2939, %v2938
        %v2971 = vpack.c.bf16 %v2941, %v2940
        %v2972 = vpack.c.bf16 %v2943, %v2942
        %v2973 = vpack.c.bf16 %v2945, %v2944
        %v2974 = vpack.c.bf16 %v2947, %v2946
        %v2975 = vpack.c.bf16 %v2949, %v2948
        %v2976 = vpack.c.bf16 %v2951, %v2950
        %v2977 = vpack.c.bf16 %v2953, %v2952
        %v2978 = vpack.c.bf16 %v2955, %v2954
        %v2979 = vpack.c.bf16 %v2957, %v2956
        %v2980 = vpack.c.bf16 %v2959, %v2958
        %v2981 = vpack.c.bf16 %v2961, %v2960
        %v2982 = vpack.c.bf16 %v2963, %v2962
        %v2983 = vpack.c.bf16 %v2965, %v2964
        %v2984 = vpack.c.bf16 %v2967, %v2966
        %v2985 = vpack.c.bf16 %v2969, %v2968
        %2986 = vst.msk [vmem:[%s1182] sm:$0xff] %vm813, %v2970
        %2987 = vst.msk [vmem:[%s1182 + $0x8] sm:$0xff] %vm813, %v2971
        %2988 = vst.msk [vmem:[%s1182 + $0x10] sm:$0xff] %vm813, %v2972
        %2989 = vst.msk [vmem:[%s1182 + $0x18] sm:$0xff] %vm813, %v2973
        %2990 = vst.msk [vmem:[%s1182 + $0x30] sm:$0xff] %vm813, %v2974
        %2991 = vst.msk [vmem:[%s1182 + $0x38] sm:$0xff] %vm813, %v2975
        %2992 = vst.msk [vmem:[%s1182 + $0x40] sm:$0xff] %vm813, %v2976
        %2993 = vst.msk [vmem:[%s1182 + $0x48] sm:$0xff] %vm813, %v2977
        %2994 = vst.msk [vmem:[%s1182 + $0x60] sm:$0xff] %vm813, %v2978
        %2995 = vst.msk [vmem:[%s1182 + $0x68] sm:$0xff] %vm813, %v2979
        %2996 = vst.msk [vmem:[%s1182 + $0x70] sm:$0xff] %vm813, %v2980
        %2997 = vst.msk [vmem:[%s1182 + $0x78] sm:$0xff] %vm813, %v2981
        %2998 = vst.msk [vmem:[%s1182 + $0x90] sm:$0xff] %vm813, %v2982
        %2999 = vst.msk [vmem:[%s1182 + $0x98] sm:$0xff] %vm813, %v2983
        %3000 = vst.msk [vmem:[%s1182 + $0xa0] sm:$0xff] %vm813, %v2984
        %3001 = vst.msk [vmem:[%s1182 + $0xa8] sm:$0xff] %vm813, %v2985
        %v3002 = vld [vmem:[#allocation2] sm:$0xff]
        %v3003 = vld [vmem:[#allocation2 + $0x8] sm:$0xff]
        %v3004 = vld [vmem:[#allocation2 + $0x10] sm:$0xff]
        %v3005 = vld [vmem:[#allocation2 + $0x18] sm:$0xff]
        %v3006 = vld [vmem:[#allocation2 + $0x20] sm:$0xff]
        %v3007 = vld [vmem:[#allocation2 + $0x28] sm:$0xff]
        %v3008 = vld [vmem:[#allocation2 + $0x30] sm:$0xff]
        %v3009 = vld [vmem:[#allocation2 + $0x38] sm:$0xff]
        %v3010 = vld [vmem:[#allocation2 + $0x40] sm:$0xff]
        %v3011 = vld [vmem:[#allocation2 + $0x48] sm:$0xff]
        %v3012 = vld [vmem:[#allocation2 + $0x50] sm:$0xff]
        %v3013 = vld [vmem:[#allocation2 + $0x58] sm:$0xff]
        %v3014 = vld [vmem:[#allocation2 + $0x60] sm:$0xff]
        %v3015 = vld [vmem:[#allocation2 + $0x68] sm:$0xff]
        %v3016 = vld [vmem:[#allocation2 + $0x70] sm:$0xff]
        %v3017 = vld [vmem:[#allocation2 + $0x78] sm:$0xff]
        %v3018 = vld [vmem:[#allocation2 + $0x80] sm:$0xff]
        %v3019 = vld [vmem:[#allocation2 + $0x88] sm:$0xff]
        %v3020 = vld [vmem:[#allocation2 + $0x90] sm:$0xff]
        %v3021 = vld [vmem:[#allocation2 + $0x98] sm:$0xff]
        %v3022 = vld [vmem:[#allocation2 + $0xa0] sm:$0xff]
        %v3023 = vld [vmem:[#allocation2 + $0xa8] sm:$0xff]
        %v3024 = vld [vmem:[#allocation2 + $0xb0] sm:$0xff]
        %v3025 = vld [vmem:[#allocation2 + $0xb8] sm:$0xff]
        %v3026 = vld [vmem:[#allocation2 + $0xc0] sm:$0xff]
        %v3027 = vld [vmem:[#allocation2 + $0xc8] sm:$0xff]
        %v3028 = vld [vmem:[#allocation2 + $0xd0] sm:$0xff]
        %v3029 = vld [vmem:[#allocation2 + $0xd8] sm:$0xff]
        %v3030 = vld [vmem:[#allocation2 + $0xe0] sm:$0xff]
        %v3031 = vld [vmem:[#allocation2 + $0xe8] sm:$0xff]
        %v3032 = vld [vmem:[#allocation2 + $0xf0] sm:$0xff]
        %v3033 = vld [vmem:[#allocation2 + $0xf8] sm:$0xff]
        %v3034 = vld [vmem:[#allocation2 + $0x100] sm:$0xff]
        %v3035 = vld [vmem:[#allocation2 + $0x108] sm:$0xff]
        %v3036 = vld [vmem:[#allocation2 + $0x110] sm:$0xff]
        %v3037 = vld [vmem:[#allocation2 + $0x118] sm:$0xff]
        %3054 = vrot.lane.b32.xlu0 %v3003, 32
        %v3055 = vpop.permute.xlu0 %3054
        %3056 = vrot.lane.b32.xlu0 %v3004, 32
        %v3057 = vpop.permute.xlu0 %3056
        %3058 = vrot.lane.b32.xlu0 %v3005, 32
        %v3059 = vpop.permute.xlu0 %3058
        %3060 = vrot.lane.b32.xlu0 %v3006, 32
        %v3061 = vpop.permute.xlu0 %3060
        %3062 = vrot.lane.b32.xlu0 %v3009, 32
        %v3063 = vpop.permute.xlu0 %3062
        %3064 = vrot.lane.b32.xlu0 %v3010, 32
        %v3065 = vpop.permute.xlu0 %3064
        %3066 = vrot.lane.b32.xlu0 %v3011, 32
        %v3067 = vpop.permute.xlu0 %3066
        %3068 = vrot.lane.b32.xlu0 %v3012, 32
        %v3069 = vpop.permute.xlu0 %3068
        %3070 = vrot.lane.b32.xlu0 %v3015, 32
        %v3071 = vpop.permute.xlu0 %3070
        %3072 = vrot.lane.b32.xlu0 %v3016, 32
        %v3073 = vpop.permute.xlu0 %3072
        %3074 = vrot.lane.b32.xlu0 %v3017, 32
        %v3075 = vpop.permute.xlu0 %3074
        %3076 = vrot.lane.b32.xlu0 %v3018, 32
        %v3077 = vpop.permute.xlu0 %3076
        %3078 = vrot.lane.b32.xlu0 %v3021, 32
        %v3079 = vpop.permute.xlu0 %3078
        %3080 = vrot.lane.b32.xlu0 %v3022, 32
        %v3081 = vpop.permute.xlu0 %3080
        %3082 = vrot.lane.b32.xlu0 %v3023, 32
        %v3083 = vpop.permute.xlu0 %3082
        %3084 = vrot.lane.b32.xlu0 %v3024, 32
        %v3085 = vpop.permute.xlu0 %3084
        %3090 = vrot.lane.b32.xlu0 %v3004, 64
        %v3091 = vpop.permute.xlu0 %3090
        %3092 = vrot.lane.b32.xlu0 %v3005, 64
        %v3093 = vpop.permute.xlu0 %3092
        %3094 = vrot.lane.b32.xlu0 %v3006, 64
        %v3095 = vpop.permute.xlu0 %3094
        %3096 = vrot.lane.b32.xlu0 %v3007, 64
        %v3097 = vpop.permute.xlu0 %3096
        %3098 = vrot.lane.b32.xlu0 %v3010, 64
        %v3099 = vpop.permute.xlu0 %3098
        %3100 = vrot.lane.b32.xlu0 %v3011, 64
        %v3101 = vpop.permute.xlu0 %3100
        %3102 = vrot.lane.b32.xlu0 %v3012, 64
        %v3103 = vpop.permute.xlu0 %3102
        %3104 = vrot.lane.b32.xlu0 %v3013, 64
        %v3105 = vpop.permute.xlu0 %3104
        %3106 = vrot.lane.b32.xlu0 %v3016, 64
        %v3107 = vpop.permute.xlu0 %3106
        %3108 = vrot.lane.b32.xlu0 %v3017, 64
        %v3109 = vpop.permute.xlu0 %3108
        %3110 = vrot.lane.b32.xlu0 %v3018, 64
        %v3111 = vpop.permute.xlu0 %3110
        %3112 = vrot.lane.b32.xlu0 %v3019, 64
        %v3113 = vpop.permute.xlu0 %3112
        %3114 = vrot.lane.b32.xlu0 %v3022, 64
        %v3115 = vpop.permute.xlu0 %3114
        %3116 = vrot.lane.b32.xlu0 %v3023, 64
        %v3117 = vpop.permute.xlu0 %3116
        %3118 = vrot.lane.b32.xlu0 %v3024, 64
        %v3119 = vpop.permute.xlu0 %3118
        %3120 = vrot.lane.b32.xlu0 %v3025, 64
        %v3121 = vpop.permute.xlu0 %3120
        %3129 = vrot.lane.b32.xlu0 %v3008, 96
        %v3130 = vpop.permute.xlu0 %3129
        %3131 = vrot.lane.b32.xlu0 %v3009, 96
        %v3132 = vpop.permute.xlu0 %3131
        %3133 = vrot.lane.b32.xlu0 %v3010, 96
        %v3134 = vpop.permute.xlu0 %3133
        %3135 = vrot.lane.b32.xlu0 %v3011, 96
        %v3136 = vpop.permute.xlu0 %3135
        %3137 = vrot.lane.b32.xlu0 %v3014, 96
        %v3138 = vpop.permute.xlu0 %3137
        %3139 = vrot.lane.b32.xlu0 %v3015, 96
        %v3140 = vpop.permute.xlu0 %3139
        %3141 = vrot.lane.b32.xlu0 %v3016, 96
        %v3142 = vpop.permute.xlu0 %3141
        %3143 = vrot.lane.b32.xlu0 %v3017, 96
        %v3144 = vpop.permute.xlu0 %3143
        %3145 = vrot.lane.b32.xlu0 %v3020, 96
        %v3146 = vpop.permute.xlu0 %3145
        %3147 = vrot.lane.b32.xlu0 %v3021, 96
        %v3148 = vpop.permute.xlu0 %3147
        %3149 = vrot.lane.b32.xlu0 %v3022, 96
        %v3150 = vpop.permute.xlu0 %3149
        %3151 = vrot.lane.b32.xlu0 %v3023, 96
        %v3152 = vpop.permute.xlu0 %3151
        %3153 = vrot.lane.b32.xlu0 %v3026, 96
        %v3154 = vpop.permute.xlu0 %3153
        %3155 = vrot.lane.b32.xlu0 %v3027, 96
        %v3156 = vpop.permute.xlu0 %3155
        %3157 = vrot.lane.b32.xlu0 %v3028, 96
        %v3158 = vpop.permute.xlu0 %3157
        %3159 = vrot.lane.b32.xlu0 %v3029, 96
        %v3160 = vpop.permute.xlu0 %3159
        %3163 = vrot.lane.b32.xlu0 %v3013, 32
        %v3164 = vpop.permute.xlu0 %3163
        %3165 = vrot.lane.b32.xlu0 %v3019, 32
        %v3166 = vpop.permute.xlu0 %3165
        %3167 = vrot.lane.b32.xlu0 %v3025, 32
        %v3168 = vpop.permute.xlu0 %3167
        %3169 = vrot.lane.b32.xlu0 %v3028, 32
        %v3170 = vpop.permute.xlu0 %3169
        %3171 = vrot.lane.b32.xlu0 %v3029, 32
        %v3172 = vpop.permute.xlu0 %3171
        %3173 = vrot.lane.b32.xlu0 %v3030, 32
        %v3174 = vpop.permute.xlu0 %3173
        %3175 = vrot.lane.b32.xlu0 %v3031, 32
        %v3176 = vpop.permute.xlu0 %3175
        %3181 = vrot.lane.b32.xlu0 %v3014, 64
        %v3182 = vpop.permute.xlu0 %3181
        %3183 = vrot.lane.b32.xlu0 %v3015, 64
        %v3184 = vpop.permute.xlu0 %3183
        %3185 = vrot.lane.b32.xlu0 %v3020, 64
        %v3186 = vpop.permute.xlu0 %3185
        %3187 = vrot.lane.b32.xlu0 %v3021, 64
        %v3188 = vpop.permute.xlu0 %3187
        %3189 = vrot.lane.b32.xlu0 %v3026, 64
        %v3190 = vpop.permute.xlu0 %3189
        %3191 = vrot.lane.b32.xlu0 %v3027, 64
        %v3192 = vpop.permute.xlu0 %3191
        %3193 = vrot.lane.b32.xlu0 %v3028, 64
        %v3194 = vpop.permute.xlu0 %3193
        %3195 = vrot.lane.b32.xlu0 %v3029, 64
        %v3196 = vpop.permute.xlu0 %3195
        %3197 = vrot.lane.b32.xlu0 %v3032, 64
        %v3198 = vpop.permute.xlu0 %3197
        %3199 = vrot.lane.b32.xlu0 %v3033, 64
        %v3200 = vpop.permute.xlu0 %3199
        %3201 = vrot.lane.b32.xlu0 %v3034, 64
        %v3202 = vpop.permute.xlu0 %3201
        %3203 = vrot.lane.b32.xlu0 %v3035, 64
        %v3204 = vpop.permute.xlu0 %3203
        %3206 = vrot.lane.b32.xlu0 %v3018, 96
        %v3207 = vpop.permute.xlu0 %3206
        %3208 = vrot.lane.b32.xlu0 %v3024, 96
        %v3209 = vpop.permute.xlu0 %3208
        %3210 = vrot.lane.b32.xlu0 %v3030, 96
        %v3211 = vpop.permute.xlu0 %3210
        %3212 = vrot.lane.b32.xlu0 %v3033, 96
        %v3213 = vpop.permute.xlu0 %3212
        %3214 = vrot.lane.b32.xlu0 %v3034, 96
        %v3215 = vpop.permute.xlu0 %3214
        %3216 = vrot.lane.b32.xlu0 %v3035, 96
        %v3217 = vpop.permute.xlu0 %3216
        %3218 = vrot.lane.b32.xlu0 %v3036, 96
        %v3219 = vpop.permute.xlu0 %3218
        %v3222 = vsel %vm813, %v3002, %v3055
        %v3225 = vsel %vm813, %v3003, %v3057
        %v3228 = vsel %vm813, %v3004, %v3059
        %v3231 = vsel %vm813, %v3005, %v3061
        %v3234 = vsel %vm813, %v3008, %v3063
        %v3237 = vsel %vm813, %v3009, %v3065
        %v3240 = vsel %vm813, %v3010, %v3067
        %v3243 = vsel %vm813, %v3011, %v3069
        %v3246 = vsel %vm813, %v3014, %v3071
        %v3249 = vsel %vm813, %v3015, %v3073
        %v3252 = vsel %vm813, %v3016, %v3075
        %v3255 = vsel %vm813, %v3017, %v3077
        %v3258 = vsel %vm813, %v3020, %v3079
        %v3261 = vsel %vm813, %v3021, %v3081
        %v3264 = vsel %vm813, %v3022, %v3083
        %v3267 = vsel %vm813, %v3023, %v3085
        %v3269 = vsel %vm924, %v3222, %v3091
        %v3271 = vsel %vm924, %v3225, %v3093
        %v3273 = vsel %vm924, %v3228, %v3095
        %v3275 = vsel %vm924, %v3231, %v3097
        %v3277 = vsel %vm924, %v3234, %v3099
        %v3279 = vsel %vm924, %v3237, %v3101
        %v3281 = vsel %vm924, %v3240, %v3103
        %v3283 = vsel %vm924, %v3243, %v3105
        %v3285 = vsel %vm924, %v3246, %v3107
        %v3287 = vsel %vm924, %v3249, %v3109
        %v3289 = vsel %vm924, %v3252, %v3111
        %v3291 = vsel %vm924, %v3255, %v3113
        %v3293 = vsel %vm924, %v3258, %v3115
        %v3295 = vsel %vm924, %v3261, %v3117
        %v3297 = vsel %vm924, %v3264, %v3119
        %v3299 = vsel %vm924, %v3267, %v3121
        %v3301 = vsel %vm1497, %v3269, %v3130
        %v3304 = vsel %vm1497, %v3271, %v3132
        %v3307 = vsel %vm1497, %v3273, %v3134
        %v3310 = vsel %vm1497, %v3275, %v3136
        %v3313 = vsel %vm1497, %v3277, %v3138
        %v3316 = vsel %vm1497, %v3279, %v3140
        %v3319 = vsel %vm1497, %v3281, %v3142
        %v3322 = vsel %vm1497, %v3283, %v3144
        %v3325 = vsel %vm1497, %v3285, %v3146
        %v3328 = vsel %vm1497, %v3287, %v3148
        %v3331 = vsel %vm1497, %v3289, %v3150
        %v3334 = vsel %vm1497, %v3291, %v3152
        %v3337 = vsel %vm1497, %v3293, %v3154
        %v3340 = vsel %vm1497, %v3295, %v3156
        %v3343 = vsel %vm1497, %v3297, %v3158
        %v3346 = vsel %vm1497, %v3299, %v3160
        %v3350 = vsel %vm813, %v3012, %v3164
        %v3353 = vsel %vm813, %v3018, %v3166
        %v3356 = vsel %vm813, %v3024, %v3168
        %v3359 = vsel %vm813, %v3027, %v3170
        %v3362 = vsel %vm813, %v3028, %v3172
        %v3365 = vsel %vm813, %v3029, %v3174
        %v3368 = vsel %vm813, %v3030, %v3176
        %v3370 = vsel %vm924, %v3237, %v3182
        %v3372 = vsel %vm924, %v3240, %v3184
        %v3373 = vsel %vm924, %v3243, %v3107
        %v3374 = vsel %vm924, %v3350, %v3109
        %v3376 = vsel %vm924, %v3249, %v3186
        %v3378 = vsel %vm924, %v3252, %v3188
        %v3379 = vsel %vm924, %v3255, %v3115
        %v3380 = vsel %vm924, %v3353, %v3117
        %v3382 = vsel %vm924, %v3261, %v3190
        %v3384 = vsel %vm924, %v3264, %v3192
        %v3386 = vsel %vm924, %v3267, %v3194
        %v3388 = vsel %vm924, %v3356, %v3196
        %v3390 = vsel %vm924, %v3359, %v3198
        %v3392 = vsel %vm924, %v3362, %v3200
        %v3394 = vsel %vm924, %v3365, %v3202
        %v3396 = vsel %vm924, %v3368, %v3204
        %v3397 = vsel %vm1497, %v3370, %v3140
        %v3399 = vsel %vm1497, %v3372, %v3142
        %v3401 = vsel %vm1497, %v3373, %v3144
        %v3404 = vsel %vm1497, %v3374, %v3207
        %v3406 = vsel %vm1497, %v3376, %v3148
        %v3408 = vsel %vm1497, %v3378, %v3150
        %v3410 = vsel %vm1497, %v3379, %v3152
        %v3413 = vsel %vm1497, %v3380, %v3209
        %v3415 = vsel %vm1497, %v3382, %v3156
        %v3417 = vsel %vm1497, %v3384, %v3158
        %v3419 = vsel %vm1497, %v3386, %v3160
        %v3422 = vsel %vm1497, %v3388, %v3211
        %v3425 = vsel %vm1497, %v3390, %v3213
        %v3428 = vsel %vm1497, %v3392, %v3215
        %v3431 = vsel %vm1497, %v3394, %v3217
        %v3434 = vsel %vm1497, %v3396, %v3219
        %v3436 = vld [vmem:[%s11] sm:$0xf]
        %v3437 = vld [vmem:[%s11 + $0x4] sm:$0xf]
        %v3438 = vld [vmem:[%s11 + $0x8] sm:$0xf]
        %v3439 = vld [vmem:[%s11 + $0xc] sm:$0xf]
        %v3440 = vld [vmem:[%s11 + $0x10] sm:$0xf]
        %v3441 = vld [vmem:[%s11 + $0x14] sm:$0xf]
        %v3442 = vld [vmem:[%s11 + $0x18] sm:$0xf]
        %v3443 = vld [vmem:[%s11 + $0x1c] sm:$0xf]
        %v3444 = vld [vmem:[%s11 + $0x20] sm:$0xf]
        %v3445 = vld [vmem:[%s11 + $0x24] sm:$0xf]
        %v3446 = vld [vmem:[%s11 + $0x28] sm:$0xf]
        %v3447 = vld [vmem:[%s11 + $0x2c] sm:$0xf]
        %v3448 = vld [vmem:[%s11 + $0x30] sm:$0xf]
        %v3449 = vld [vmem:[%s11 + $0x34] sm:$0xf]
        %v3450 = vld [vmem:[%s11 + $0x38] sm:$0xf]
        %v3451 = vld [vmem:[%s11 + $0x3c] sm:$0xf]
        %v3452 = vld [vmem:[%s11 + $0x40] sm:$0xf]
        %v3453 = vld [vmem:[%s11 + $0x44] sm:$0xf]
        %v3454 = vld [vmem:[%s11 + $0x48] sm:$0xf]
        %v3455 = vld [vmem:[%s11 + $0x4c] sm:$0xf]
        %v3456 = vld [vmem:[%s11 + $0x50] sm:$0xf]
        %v3457 = vld [vmem:[%s11 + $0x54] sm:$0xf]
        %v3458 = vld [vmem:[%s11 + $0x58] sm:$0xf]
        %v3459 = vld [vmem:[%s11 + $0x5c] sm:$0xf]
        %v3460 = vld [vmem:[%s11 + $0x60] sm:$0xf]
        %v3461 = vld [vmem:[%s11 + $0x64] sm:$0xf]
        %v3462 = vld [vmem:[%s11 + $0x68] sm:$0xf]
        %v3463 = vld [vmem:[%s11 + $0x6c] sm:$0xf]
        %v3464 = vld [vmem:[%s11 + $0x70] sm:$0xf]
        %v3465 = vld [vmem:[%s11 + $0x74] sm:$0xf]
        %v3466 = vld [vmem:[%s11 + $0x78] sm:$0xf]
        %v3467 = vld [vmem:[%s11 + $0x7c] sm:$0xf]
        %v3468 = vld [vmem:[%s11 + $0x80] sm:$0xf]
        %v3469 = vld [vmem:[%s11 + $0x84] sm:$0xf]
        %v3470 = vld [vmem:[%s11 + $0x88] sm:$0xf]
        %v3471 = vld [vmem:[%s11 + $0x8c] sm:$0xf]
        %v3472 = vld [vmem:[%s12] sm:$0x1]
        %v3474 = vlaneseq
        %v3475 = vshrl.u32 %v3474, 7
        %v3476 = vsub.s32 0, %v3475
        %v3477 = vrot.slane %v3472, %v3476
        %v3515 = vunpack.c.l.b16 %v3436
        %v3516 = vunpack.c.l.b16 %v3437
        %v3517 = vunpack.c.l.b16 %v3438
        %v3518 = vunpack.c.l.b16 %v3439
        %v3519 = vunpack.c.l.b16 %v3440
        %v3520 = vunpack.c.l.b16 %v3441
        %v3521 = vunpack.c.l.b16 %v3442
        %v3522 = vunpack.c.l.b16 %v3443
        %v3523 = vunpack.c.l.b16 %v3444
        %v3524 = vunpack.c.l.b16 %v3445
        %v3525 = vunpack.c.l.b16 %v3446
        %v3526 = vunpack.c.l.b16 %v3447
        %v3527 = vunpack.c.l.b16 %v3448
        %v3528 = vunpack.c.l.b16 %v3449
        %v3529 = vunpack.c.l.b16 %v3450
        %v3530 = vunpack.c.l.b16 %v3451
        %v3531 = vunpack.c.l.b16 %v3452
        %v3532 = vunpack.c.l.b16 %v3453
        %v3533 = vunpack.c.l.b16 %v3454
        %v3534 = vunpack.c.l.b16 %v3455
        %v3535 = vunpack.c.l.b16 %v3456
        %v3536 = vunpack.c.l.b16 %v3457
        %v3537 = vunpack.c.l.b16 %v3458
        %v3538 = vunpack.c.l.b16 %v3459
        %v3539 = vunpack.c.l.b16 %v3460
        %v3540 = vunpack.c.l.b16 %v3461
        %v3541 = vunpack.c.l.b16 %v3462
        %v3542 = vunpack.c.l.b16 %v3463
        %v3543 = vunpack.c.l.b16 %v3464
        %v3544 = vunpack.c.l.b16 %v3465
        %v3545 = vunpack.c.l.b16 %v3466
        %v3546 = vunpack.c.l.b16 %v3467
        %v3547 = vunpack.c.l.b16 %v3468
        %v3548 = vunpack.c.l.b16 %v3469
        %v3549 = vunpack.c.l.b16 %v3470
        %v3550 = vunpack.c.l.b16 %v3471
        %v3551 = vpack.c.b16 %v3516, %v3515
        %v3552 = vpack.c.b16 %v3518, %v3517
        %v3553 = vpack.c.b16 %v3520, %v3519
        %v3554 = vpack.c.b16 %v3522, %v3521
        %v3555 = vpack.c.b16 %v3524, %v3523
        %v3556 = vpack.c.b16 %v3526, %v3525
        %v3557 = vpack.c.b16 %v3528, %v3527
        %v3558 = vpack.c.b16 %v3530, %v3529
        %v3559 = vpack.c.b16 %v3532, %v3531
        %v3560 = vpack.c.b16 %v3534, %v3533
        %v3561 = vpack.c.b16 %v3536, %v3535
        %v3562 = vpack.c.b16 %v3538, %v3537
        %v3563 = vpack.c.b16 %v3540, %v3539
        %v3564 = vpack.c.b16 %v3542, %v3541
        %v3565 = vpack.c.b16 %v3544, %v3543
        %v3566 = vpack.c.b16 %v3546, %v3545
        %v3567 = vpack.c.b16 %v3548, %v3547
        %v3568 = vpack.c.b16 %v3550, %v3549
        %v3587 = vsel %vm813, %v3016, 0
        %v3589 = vsel %vm813, %v3017, 0
        %v3591 = vsel %vm813, %v3018, 0
        %v3594 = vsel %vm813, %v3019, 0
        %v3596 = vsel %vm813, %v3022, 0
        %v3598 = vsel %vm813, %v3023, 0
        %v3600 = vsel %vm813, %v3024, 0
        %v3603 = vsel %vm813, %v3025, 0
        %v3605 = vsel %vm813, %v3028, 0
        %v3607 = vsel %vm813, %v3029, 0
        %v3609 = vsel %vm813, %v3030, 0
        %v3612 = vsel %vm813, %v3031, 0
        %v3615 = vsel %vm813, %v3034, 0
        %v3618 = vsel %vm813, %v3035, 0
        %v3621 = vsel %vm813, %v3036, 0
        %v3624 = vsel %vm813, %v3037, 0
        %3626 = vmatprep.subr.bf16.mxu0 0
        %3627 = vmatpush1.bf16.msra.mxu0 %v3551
        %3628 = vmatprep.subr.bf16.mxu0 0
        %3629 = vmatpush1.bf16.msra.mxu0 %v3552
        %3630 = vmatprep.subr.bf16.mxu0 0
        %3631 = vmatpush1.bf16.msra.mxu0 %v3553
        %3632 = vmatprep.subr.bf16.mxu0 0
        %3633 = vmatpush1.bf16.msra.mxu0 %v3554
        %3634 = vmatprep.subr.bf16.mxu0 0
        %3635 = vmatpush1.bf16.msra.mxu0 %v3555
        %3636 = vmatprep.subr.bf16.mxu0 0
        %3637 = vmatpush1.bf16.msra.mxu0 %v3556
        %3638 = vmatprep.subr.bf16.mxu0 0
        %3639 = vmatpush1.bf16.msra.mxu0 %v3557
        %3640 = vmatprep.subr.bf16.mxu0 0
        %3641 = vmatpush1.bf16.msra.mxu0 %v3558
        %3642 = vmatprep.subr.bf16.mxu0 0
        %3643 = vmatpush1.bf16.msra.mxu0 %v3559
        %3644 = vmatprep.subr.bf16.mxu0 0
        %3645 = vmatpush1.bf16.msra.mxu0 %v3560
        %3646 = vmatprep.subr.bf16.mxu0 0
        %3647 = vmatpush1.bf16.msra.mxu0 %v3561
        %3648 = vmatprep.subr.bf16.mxu0 0
        %3649 = vmatpush1.bf16.msra.mxu0 %v3562
        %3650 = vmatprep.subr.bf16.mxu0 0
        %3651 = vmatpush1.bf16.msra.mxu0 %v3563
        %3652 = vmatprep.subr.bf16.mxu0 0
        %3653 = vmatpush1.bf16.msra.mxu0 %v3564
        %3654 = vmatprep.subr.bf16.mxu0 0
        %3655 = vmatpush1.bf16.msra.mxu0 %v3565
        %3656 = vmatprep.subr.bf16.mxu0 0
        %3657 = vmatpush1.bf16.msra.mxu0 %v3566
        %3658 = vmatprep.mubr.bf16.mxu0 %v3397
        %3659 = vmatmul.mubr.bf16.gmra.mrb[0].mxu0 %v3301
        %v3660 = vpop.f32.mrb[0].mxu0
        %v3661 = vadd.f32 %v3477, %v3660
        %v3662 = vpop.f32.mrb[0].mxu0
        %v3663 = vpop.f32.mrb[0].mxu0
        %v3664 = vadd.f32 %v3477, %v3663
        %v3665 = vpop.f32.mrb[0].mxu0
        %3666 = vmatprep.mubr.bf16.mxu0 %v3399
        %3667 = vmatmul.mubr.bf16.gmra.mrb[0].mxu0 %v3304
        %v3668 = vpop.f32.mrb[0].mxu0
        %v3669 = vadd.f32 %v3477, %v3668
        %v3670 = vpop.f32.mrb[0].mxu0
        %v3671 = vpop.f32.mrb[0].mxu0
        %v3672 = vadd.f32 %v3477, %v3671
        %v3673 = vpop.f32.mrb[0].mxu0
        %3674 = vmatprep.mubr.bf16.mxu0 %v3401
        %3675 = vmatmul.mubr.bf16.gmra.mrb[0].mxu0 %v3307
        %v3676 = vpop.f32.mrb[0].mxu0
        %v3677 = vadd.f32 %v3477, %v3676
        %v3678 = vpop.f32.mrb[0].mxu0
        %v3679 = vpop.f32.mrb[0].mxu0
        %v3680 = vadd.f32 %v3477, %v3679
        %v3681 = vpop.f32.mrb[0].mxu0
        %3682 = vmatprep.mubr.bf16.mxu0 %v3404
        %3683 = vmatmul.mubr.bf16.gmra.mrb[0].mxu0 %v3310
        %v3684 = vpop.f32.mrb[0].mxu0
        %v3685 = vadd.f32 %v3477, %v3684
        %v3686 = vpop.f32.mrb[0].mxu0
        %v3687 = vpop.f32.mrb[0].mxu0
        %v3688 = vadd.f32 %v3477, %v3687
        %v3689 = vpop.f32.mrb[0].mxu0
        %3690 = vmatprep.mubr.bf16.mxu0 %v3406
        %3691 = vmatmul.mubr.bf16.gmra.mrb[0].mxu0 %v3313
        %v3692 = vpop.f32.mrb[0].mxu0
        %v3693 = vadd.f32 %v3477, %v3692
        %v3694 = vpop.f32.mrb[0].mxu0
        %v3695 = vpop.f32.mrb[0].mxu0
        %v3696 = vadd.f32 %v3477, %v3695
        %v3697 = vpop.f32.mrb[0].mxu0
        %3698 = vmatprep.mubr.bf16.mxu0 %v3408
        %3699 = vmatmul.mubr.bf16.gmra.mrb[0].mxu0 %v3316
        %v3700 = vpop.f32.mrb[0].mxu0
        %v3701 = vadd.f32 %v3477, %v3700
        %v3702 = vpop.f32.mrb[0].mxu0
        %v3703 = vpop.f32.mrb[0].mxu0
        %v3704 = vadd.f32 %v3477, %v3703
        %v3705 = vpop.f32.mrb[0].mxu0
        %3706 = vmatprep.mubr.bf16.mxu0 %v3410
        %3707 = vmatmul.mubr.bf16.gmra.mrb[0].mxu0 %v3319
        %v3708 = vpop.f32.mrb[0].mxu0
        %v3709 = vadd.f32 %v3477, %v3708
        %v3710 = vpop.f32.mrb[0].mxu0
        %v3711 = vpop.f32.mrb[0].mxu0
        %v3712 = vadd.f32 %v3477, %v3711
        %v3713 = vpop.f32.mrb[0].mxu0
        %3714 = vmatprep.mubr.bf16.mxu0 %v3413
        %3715 = vmatmul.mubr.bf16.gmra.mrb[0].mxu0 %v3322
        %v3716 = vpop.f32.mrb[0].mxu0
        %v3717 = vadd.f32 %v3477, %v3716
        %v3718 = vpop.f32.mrb[0].mxu0
        %v3719 = vpop.f32.mrb[0].mxu0
        %v3720 = vadd.f32 %v3477, %v3719
        %v3721 = vpop.f32.mrb[0].mxu0
        %3722 = vmatprep.mubr.bf16.mxu0 %v3415
        %3723 = vmatmul.mubr.bf16.gmra.mrb[0].mxu0 %v3325
        %v3724 = vpop.f32.mrb[0].mxu0
        %v3725 = vadd.f32 %v3477, %v3724
        %v3726 = vpop.f32.mrb[0].mxu0
        %v3727 = vpop.f32.mrb[0].mxu0
        %v3728 = vadd.f32 %v3477, %v3727
        %v3729 = vpop.f32.mrb[0].mxu0
        %3730 = vmatprep.mubr.bf16.mxu0 %v3417
        %3731 = vmatmul.mubr.bf16.gmra.mrb[0].mxu0 %v3328
        %v3732 = vpop.f32.mrb[0].mxu0
        %v3733 = vadd.f32 %v3477, %v3732
        %v3734 = vpop.f32.mrb[0].mxu0
        %v3735 = vpop.f32.mrb[0].mxu0
        %v3736 = vadd.f32 %v3477, %v3735
        %v3737 = vpop.f32.mrb[0].mxu0
        %3738 = vmatprep.mubr.bf16.mxu0 %v3419
        %3739 = vmatmul.mubr.bf16.gmra.mrb[0].mxu0 %v3331
        %v3740 = vpop.f32.mrb[0].mxu0
        %v3741 = vadd.f32 %v3477, %v3740
        %v3742 = vpop.f32.mrb[0].mxu0
        %v3743 = vpop.f32.mrb[0].mxu0
        %v3744 = vadd.f32 %v3477, %v3743
        %v3745 = vpop.f32.mrb[0].mxu0
        %3746 = vmatprep.mubr.bf16.mxu0 %v3422
        %3747 = vmatmul.mubr.bf16.gmra.mrb[0].mxu0 %v3334
        %v3748 = vpop.f32.mrb[0].mxu0
        %v3749 = vadd.f32 %v3477, %v3748
        %v3750 = vpop.f32.mrb[0].mxu0
        %v3751 = vpop.f32.mrb[0].mxu0
        %v3752 = vadd.f32 %v3477, %v3751
        %v3753 = vpop.f32.mrb[0].mxu0
        %3754 = vmatprep.mubr.bf16.mxu0 %v3425
        %3755 = vmatmul.mubr.bf16.gmra.mrb[0].mxu0 %v3337
        %v3756 = vpop.f32.mrb[0].mxu0
        %v3757 = vadd.f32 %v3477, %v3756
        %v3758 = vpop.f32.mrb[0].mxu0
        %v3759 = vpop.f32.mrb[0].mxu0
        %v3760 = vadd.f32 %v3477, %v3759
        %v3761 = vpop.f32.mrb[0].mxu0
        %3762 = vmatprep.mubr.bf16.mxu0 %v3428
        %3763 = vmatmul.mubr.bf16.gmra.mrb[0].mxu0 %v3340
        %v3764 = vpop.f32.mrb[0].mxu0
        %v3765 = vadd.f32 %v3477, %v3764
        %v3766 = vpop.f32.mrb[0].mxu0
        %v3767 = vpop.f32.mrb[0].mxu0
        %v3768 = vadd.f32 %v3477, %v3767
        %v3769 = vpop.f32.mrb[0].mxu0
        %3770 = vmatprep.mubr.bf16.mxu0 %v3431
        %3771 = vmatmul.mubr.bf16.gmra.mrb[0].mxu0 %v3343
        %v3772 = vpop.f32.mrb[0].mxu0
        %v3773 = vadd.f32 %v3477, %v3772
        %v3774 = vpop.f32.mrb[0].mxu0
        %v3775 = vpop.f32.mrb[0].mxu0
        %v3776 = vadd.f32 %v3477, %v3775
        %v3777 = vpop.f32.mrb[0].mxu0
        %3778 = vmatprep.mubr.bf16.mxu0 %v3434
        %3779 = vmatmul.mubr.bf16.gmra.mrb[0].mxu0 %v3346
        %v3780 = vpop.f32.mrb[0].mxu0
        %v3781 = vadd.f32 %v3477, %v3780
        %v3782 = vpop.f32.mrb[0].mxu0
        %v3783 = vpop.f32.mrb[0].mxu0
        %v3784 = vadd.f32 %v3477, %v3783
        %v3785 = vpop.f32.mrb[0].mxu0
        %3786 = vdwg.mxu0
        %3787 = vmatprep.subr.bf16.mxu0 0
        %3788 = vmatpush1.bf16.msra.mxu0 %v3567
        %3789 = vmatprep.subr.bf16.mxu0 0
        %3790 = vmatpush1.bf16.msra.mxu0 %v3568
        %3791 = vmatprep.subr.bf16.mxu0 0
        %3792 = vmatpush1.bf16.msra.mxu0 0
        %3793 = vmatprep.subr.bf16.mxu0 0
        %3794 = vmatpush1.bf16.msra.mxu0 0
        %3795 = vmatprep.subr.bf16.mxu0 0
        %3796 = vmatpush1.bf16.msra.mxu0 0
        %3797 = vmatprep.subr.bf16.mxu0 0
        %3798 = vmatpush1.bf16.msra.mxu0 0
        %3799 = vmatprep.subr.bf16.mxu0 0
        %3800 = vmatpush1.bf16.msra.mxu0 0
        %3801 = vmatprep.subr.bf16.mxu0 0
        %3802 = vmatpush1.bf16.msra.mxu0 0
        %3803 = vmatprep.subr.bf16.mxu0 0
        %3804 = vmatpush1.bf16.msra.mxu0 0
        %3805 = vmatprep.subr.bf16.mxu0 0
        %3806 = vmatpush1.bf16.msra.mxu0 0
        %3807 = vmatprep.subr.bf16.mxu0 0
        %3808 = vmatpush1.bf16.msra.mxu0 0
        %3809 = vmatprep.subr.bf16.mxu0 0
        %3810 = vmatpush1.bf16.msra.mxu0 0
        %3811 = vmatprep.subr.bf16.mxu0 0
        %3812 = vmatpush1.bf16.msra.mxu0 0
        %3813 = vmatprep.subr.bf16.mxu0 0
        %3814 = vmatpush1.bf16.msra.mxu0 0
        %3815 = vmatprep.subr.bf16.mxu0 0
        %3816 = vmatpush1.bf16.msra.mxu0 0
        %3817 = vmatprep.subr.bf16.mxu0 0
        %3818 = vmatpush1.bf16.msra.mxu0 0
        %3819 = vmatprep.mubr.bf16.mxu0 0
        %3820 = vmatmul.mubr.bf16.gmra.mrb[0].mxu0 %v3587
        %v3821 = vpop.f32.mrb[0].mxu0
        %v3822 = vadd.f32 %v3661, %v3821
        %v3823 = vpop.f32.mrb[0].mxu0
        %v3824 = vpop.f32.mrb[0].mxu0
        %v3825 = vadd.f32 %v3664, %v3824
        %v3826 = vpop.f32.mrb[0].mxu0
        %3827 = vmatprep.mubr.bf16.mxu0 0
        %3828 = vmatmul.mubr.bf16.gmra.mrb[0].mxu0 %v3589
        %v3829 = vpop.f32.mrb[0].mxu0
        %v3830 = vadd.f32 %v3669, %v3829
        %v3831 = vpop.f32.mrb[0].mxu0
        %v3832 = vpop.f32.mrb[0].mxu0
        %v3833 = vadd.f32 %v3672, %v3832
        %v3834 = vpop.f32.mrb[0].mxu0
        %3835 = vmatprep.mubr.bf16.mxu0 0
        %3836 = vmatmul.mubr.bf16.gmra.mrb[0].mxu0 %v3591
        %v3837 = vpop.f32.mrb[0].mxu0
        %v3838 = vadd.f32 %v3677, %v3837
        %v3839 = vpop.f32.mrb[0].mxu0
        %v3840 = vpop.f32.mrb[0].mxu0
        %v3841 = vadd.f32 %v3680, %v3840
        %v3842 = vpop.f32.mrb[0].mxu0
        %3843 = vmatprep.mubr.bf16.mxu0 0
        %3844 = vmatmul.mubr.bf16.gmra.mrb[0].mxu0 %v3594
        %v3845 = vpop.f32.mrb[0].mxu0
        %v3846 = vadd.f32 %v3685, %v3845
        %v3847 = vpop.f32.mrb[0].mxu0
        %v3848 = vpop.f32.mrb[0].mxu0
        %v3849 = vadd.f32 %v3688, %v3848
        %v3850 = vpop.f32.mrb[0].mxu0
        %3851 = vmatprep.mubr.bf16.mxu0 0
        %3852 = vmatmul.mubr.bf16.gmra.mrb[0].mxu0 %v3596
        %v3853 = vpop.f32.mrb[0].mxu0
        %v3854 = vadd.f32 %v3693, %v3853
        %v3855 = vpop.f32.mrb[0].mxu0
        %v3856 = vpop.f32.mrb[0].mxu0
        %v3857 = vadd.f32 %v3696, %v3856
        %v3858 = vpop.f32.mrb[0].mxu0
        %3859 = vmatprep.mubr.bf16.mxu0 0
        %3860 = vmatmul.mubr.bf16.gmra.mrb[0].mxu0 %v3598
        %v3861 = vpop.f32.mrb[0].mxu0
        %v3862 = vadd.f32 %v3701, %v3861
        %v3863 = vpop.f32.mrb[0].mxu0
        %v3864 = vpop.f32.mrb[0].mxu0
        %v3865 = vadd.f32 %v3704, %v3864
        %v3866 = vpop.f32.mrb[0].mxu0
        %3867 = vmatprep.mubr.bf16.mxu0 0
        %3868 = vmatmul.mubr.bf16.gmra.mrb[0].mxu0 %v3600
        %v3869 = vpop.f32.mrb[0].mxu0
        %v3870 = vadd.f32 %v3709, %v3869
        %v3871 = vpop.f32.mrb[0].mxu0
        %v3872 = vpop.f32.mrb[0].mxu0
        %v3873 = vadd.f32 %v3712, %v3872
        %v3874 = vpop.f32.mrb[0].mxu0
        %3875 = vmatprep.mubr.bf16.mxu0 0
        %3876 = vmatmul.mubr.bf16.gmra.mrb[0].mxu0 %v3603
        %v3877 = vpop.f32.mrb[0].mxu0
        %v3878 = vadd.f32 %v3717, %v3877
        %v3879 = vpop.f32.mrb[0].mxu0
        %v3880 = vpop.f32.mrb[0].mxu0
        %v3881 = vadd.f32 %v3720, %v3880
        %v3882 = vpop.f32.mrb[0].mxu0
        %3883 = vmatprep.mubr.bf16.mxu0 0
        %3884 = vmatmul.mubr.bf16.gmra.mrb[0].mxu0 %v3605
        %v3885 = vpop.f32.mrb[0].mxu0
        %v3886 = vadd.f32 %v3725, %v3885
        %v3887 = vpop.f32.mrb[0].mxu0
        %v3888 = vpop.f32.mrb[0].mxu0
        %v3889 = vadd.f32 %v3728, %v3888
        %v3890 = vpop.f32.mrb[0].mxu0
        %3891 = vmatprep.mubr.bf16.mxu0 0
        %3892 = vmatmul.mubr.bf16.gmra.mrb[0].mxu0 %v3607
        %v3893 = vpop.f32.mrb[0].mxu0
        %v3894 = vadd.f32 %v3733, %v3893
        %v3895 = vpop.f32.mrb[0].mxu0
        %v3896 = vpop.f32.mrb[0].mxu0
        %v3897 = vadd.f32 %v3736, %v3896
        %v3898 = vpop.f32.mrb[0].mxu0
        %3899 = vmatprep.mubr.bf16.mxu0 0
        %3900 = vmatmul.mubr.bf16.gmra.mrb[0].mxu0 %v3609
        %v3901 = vpop.f32.mrb[0].mxu0
        %v3902 = vadd.f32 %v3741, %v3901
        %v3903 = vpop.f32.mrb[0].mxu0
        %v3904 = vpop.f32.mrb[0].mxu0
        %v3905 = vadd.f32 %v3744, %v3904
        %v3906 = vpop.f32.mrb[0].mxu0
        %3907 = vmatprep.mubr.bf16.mxu0 0
        %3908 = vmatmul.mubr.bf16.gmra.mrb[0].mxu0 %v3612
        %v3909 = vpop.f32.mrb[0].mxu0
        %v3910 = vadd.f32 %v3749, %v3909
        %v3911 = vpop.f32.mrb[0].mxu0
        %v3912 = vpop.f32.mrb[0].mxu0
        %v3913 = vadd.f32 %v3752, %v3912
        %v3914 = vpop.f32.mrb[0].mxu0
        %3915 = vmatprep.mubr.bf16.mxu0 0
        %3916 = vmatmul.mubr.bf16.gmra.mrb[0].mxu0 %v3615
        %v3917 = vpop.f32.mrb[0].mxu0
        %v3918 = vadd.f32 %v3757, %v3917
        %v3919 = vpop.f32.mrb[0].mxu0
        %v3920 = vpop.f32.mrb[0].mxu0
        %v3921 = vadd.f32 %v3760, %v3920
        %v3922 = vpop.f32.mrb[0].mxu0
        %3923 = vmatprep.mubr.bf16.mxu0 0
        %3924 = vmatmul.mubr.bf16.gmra.mrb[0].mxu0 %v3618
        %v3925 = vpop.f32.mrb[0].mxu0
        %v3926 = vadd.f32 %v3765, %v3925
        %v3927 = vpop.f32.mrb[0].mxu0
        %v3928 = vpop.f32.mrb[0].mxu0
        %v3929 = vadd.f32 %v3768, %v3928
        %v3930 = vpop.f32.mrb[0].mxu0
        %3931 = vmatprep.mubr.bf16.mxu0 0
        %3932 = vmatmul.mubr.bf16.gmra.mrb[0].mxu0 %v3621
        %v3933 = vpop.f32.mrb[0].mxu0
        %v3934 = vadd.f32 %v3773, %v3933
        %v3935 = vpop.f32.mrb[0].mxu0
        %v3936 = vpop.f32.mrb[0].mxu0
        %v3937 = vadd.f32 %v3776, %v3936
        %v3938 = vpop.f32.mrb[0].mxu0
        %3939 = vmatprep.mubr.bf16.mxu0 0
        %3940 = vmatmul.mubr.bf16.gmra.mrb[0].mxu0 %v3624
        %v3941 = vpop.f32.mrb[0].mxu0
        %v3942 = vadd.f32 %v3781, %v3941
        %v3943 = vpop.f32.mrb[0].mxu0
        %v3944 = vpop.f32.mrb[0].mxu0
        %v3945 = vadd.f32 %v3784, %v3944
        %v3946 = vpop.f32.mrb[0].mxu0
        %3947 = vdwg.mxu0
        %v3948 = vmax.f32 %v3822, 0.0
        %v3949 = vmax.f32 %v3825, 0.0
        %v3950 = vmax.f32 %v3830, 0.0
        %v3951 = vmax.f32 %v3833, 0.0
        %v3952 = vmax.f32 %v3838, 0.0
        %v3953 = vmax.f32 %v3841, 0.0
        %v3954 = vmax.f32 %v3846, 0.0
        %v3955 = vmax.f32 %v3849, 0.0
        %v3956 = vmax.f32 %v3854, 0.0
        %v3957 = vmax.f32 %v3857, 0.0
        %v3958 = vmax.f32 %v3862, 0.0
        %v3959 = vmax.f32 %v3865, 0.0
        %v3960 = vmax.f32 %v3870, 0.0
        %v3961 = vmax.f32 %v3873, 0.0
        %v3962 = vmax.f32 %v3878, 0.0
        %v3963 = vmax.f32 %v3881, 0.0
        %v3964 = vmax.f32 %v3886, 0.0
        %v3965 = vmax.f32 %v3889, 0.0
        %v3966 = vmax.f32 %v3894, 0.0
        %v3967 = vmax.f32 %v3897, 0.0
        %v3968 = vmax.f32 %v3902, 0.0
        %v3969 = vmax.f32 %v3905, 0.0
        %v3970 = vmax.f32 %v3910, 0.0
        %v3971 = vmax.f32 %v3913, 0.0
        %v3972 = vmax.f32 %v3918, 0.0
        %v3973 = vmax.f32 %v3921, 0.0
        %v3974 = vmax.f32 %v3926, 0.0
        %v3975 = vmax.f32 %v3929, 0.0
        %v3976 = vmax.f32 %v3934, 0.0
        %v3977 = vmax.f32 %v3937, 0.0
        %v3978 = vmax.f32 %v3942, 0.0
        %v3979 = vmax.f32 %v3945, 0.0
        %v3980 = vpack.c.bf16 %v3949, %v3948
        %v3981 = vpack.c.bf16 %v3951, %v3950
        %v3982 = vpack.c.bf16 %v3953, %v3952
        %v3983 = vpack.c.bf16 %v3955, %v3954
        %v3984 = vpack.c.bf16 %v3957, %v3956
        %v3985 = vpack.c.bf16 %v3959, %v3958
        %v3986 = vpack.c.bf16 %v3961, %v3960
        %v3987 = vpack.c.bf16 %v3963, %v3962
        %v3988 = vpack.c.bf16 %v3965, %v3964
        %v3989 = vpack.c.bf16 %v3967, %v3966
        %v3990 = vpack.c.bf16 %v3969, %v3968
        %v3991 = vpack.c.bf16 %v3971, %v3970
        %v3992 = vpack.c.bf16 %v3973, %v3972
        %v3993 = vpack.c.bf16 %v3975, %v3974
        %v3994 = vpack.c.bf16 %v3977, %v3976
        %v3995 = vpack.c.bf16 %v3979, %v3978
        %v3996 = vld [vmem:[%s13] sm:$0xf]
        %v3997 = vld [vmem:[%s13 + $0x4] sm:$0xf]
        %v3998 = vld [vmem:[%s13 + $0x8] sm:$0xf]
        %v3999 = vld [vmem:[%s13 + $0xc] sm:$0xf]
        %v4000 = vld [vmem:[%s14] sm:$0x1]
        %v4002 = vlaneseq
        %v4003 = vshrl.u32 %v4002, 7
        %v4004 = vsub.s32 0, %v4003
        %v4005 = vrot.slane %v4000, %v4004
        %v4011 = vunpack.c.l.b16 %v3996
        %v4012 = vunpack.c.l.b16 %v3997
        %v4013 = vunpack.c.l.b16 %v3998
        %v4014 = vunpack.c.l.b16 %v3999
        %v4015 = vpack.c.b16 %v4012, %v4011
        %v4016 = vpack.c.b16 %v4014, %v4013
        %v4020 = vsel %vm813, %v3980, 0
        %v4023 = vsel %vm813, %v3981, 0
        %v4026 = vsel %vm813, %v3982, 0
        %v4029 = vsel %vm813, %v3983, 0
        %v4032 = vsel %vm813, %v3984, 0
        %v4035 = vsel %vm813, %v3985, 0
        %v4038 = vsel %vm813, %v3986, 0
        %v4041 = vsel %vm813, %v3987, 0
        %v4044 = vsel %vm813, %v3988, 0
        %v4047 = vsel %vm813, %v3989, 0
        %v4050 = vsel %vm813, %v3990, 0
        %v4053 = vsel %vm813, %v3991, 0
        %v4056 = vsel %vm813, %v3992, 0
        %v4059 = vsel %vm813, %v3993, 0
        %v4062 = vsel %vm813, %v3994, 0
        %v4065 = vsel %vm813, %v3995, 0
        %4067 = vmatprep.subr.bf16.mxu0 0
        %4068 = vmatpush1.bf16.msra.mxu0 %v4015
        %4069 = vmatprep.subr.bf16.mxu0 0
        %4070 = vmatpush1.bf16.msra.mxu0 %v4016
        %4071 = vmatprep.subr.bf16.mxu0 0
        %4072 = vmatpush1.bf16.msra.mxu0 0
        %4073 = vmatprep.subr.bf16.mxu0 0
        %4074 = vmatpush1.bf16.msra.mxu0 0
        %4075 = vmatprep.subr.bf16.mxu0 0
        %4076 = vmatpush1.bf16.msra.mxu0 0
        %4077 = vmatprep.subr.bf16.mxu0 0
        %4078 = vmatpush1.bf16.msra.mxu0 0
        %4079 = vmatprep.subr.bf16.mxu0 0
        %4080 = vmatpush1.bf16.msra.mxu0 0
        %4081 = vmatprep.subr.bf16.mxu0 0
        %4082 = vmatpush1.bf16.msra.mxu0 0
        %4083 = vmatprep.subr.bf16.mxu0 0
        %4084 = vmatpush1.bf16.msra.mxu0 0
        %4085 = vmatprep.subr.bf16.mxu0 0
        %4086 = vmatpush1.bf16.msra.mxu0 0
        %4087 = vmatprep.subr.bf16.mxu0 0
        %4088 = vmatpush1.bf16.msra.mxu0 0
        %4089 = vmatprep.subr.bf16.mxu0 0
        %4090 = vmatpush1.bf16.msra.mxu0 0
        %4091 = vmatprep.subr.bf16.mxu0 0
        %4092 = vmatpush1.bf16.msra.mxu0 0
        %4093 = vmatprep.subr.bf16.mxu0 0
        %4094 = vmatpush1.bf16.msra.mxu0 0
        %4095 = vmatprep.subr.bf16.mxu0 0
        %4096 = vmatpush1.bf16.msra.mxu0 0
        %4097 = vmatprep.subr.bf16.mxu0 0
        %4098 = vmatpush1.bf16.msra.mxu0 0
        %4099 = vmatprep.mubr.bf16.mxu0 0
        %4100 = vmatmul.mubr.bf16.gmra.mrb[0].mxu0 %v4020
        %v4101 = vpop.f32.mrb[0].mxu0
        %v4102 = vadd.f32 %v4005, %v4101
        %v4103 = vpop.f32.mrb[0].mxu0
        %v4104 = vpop.f32.mrb[0].mxu0
        %v4105 = vadd.f32 %v4005, %v4104
        %v4106 = vpop.f32.mrb[0].mxu0
        %4107 = vmatprep.mubr.bf16.mxu0 0
        %4108 = vmatmul.mubr.bf16.gmra.mrb[0].mxu0 %v4023
        %v4109 = vpop.f32.mrb[0].mxu0
        %v4110 = vadd.f32 %v4005, %v4109
        %v4111 = vpop.f32.mrb[0].mxu0
        %v4112 = vpop.f32.mrb[0].mxu0
        %v4113 = vadd.f32 %v4005, %v4112
        %v4114 = vpop.f32.mrb[0].mxu0
        %4115 = vmatprep.mubr.bf16.mxu0 0
        %4116 = vmatmul.mubr.bf16.gmra.mrb[0].mxu0 %v4026
        %v4117 = vpop.f32.mrb[0].mxu0
        %v4118 = vadd.f32 %v4005, %v4117
        %v4119 = vpop.f32.mrb[0].mxu0
        %v4120 = vpop.f32.mrb[0].mxu0
        %v4121 = vadd.f32 %v4005, %v4120
        %v4122 = vpop.f32.mrb[0].mxu0
        %4123 = vmatprep.mubr.bf16.mxu0 0
        %4124 = vmatmul.mubr.bf16.gmra.mrb[0].mxu0 %v4029
        %v4125 = vpop.f32.mrb[0].mxu0
        %v4126 = vadd.f32 %v4005, %v4125
        %v4127 = vpop.f32.mrb[0].mxu0
        %v4128 = vpop.f32.mrb[0].mxu0
        %v4129 = vadd.f32 %v4005, %v4128
        %v4130 = vpop.f32.mrb[0].mxu0
        %4131 = vmatprep.mubr.bf16.mxu0 0
        %4132 = vmatmul.mubr.bf16.gmra.mrb[0].mxu0 %v4032
        %v4133 = vpop.f32.mrb[0].mxu0
        %v4134 = vadd.f32 %v4005, %v4133
        %v4135 = vpop.f32.mrb[0].mxu0
        %v4136 = vpop.f32.mrb[0].mxu0
        %v4137 = vadd.f32 %v4005, %v4136
        %v4138 = vpop.f32.mrb[0].mxu0
        %4139 = vmatprep.mubr.bf16.mxu0 0
        %4140 = vmatmul.mubr.bf16.gmra.mrb[0].mxu0 %v4035
        %v4141 = vpop.f32.mrb[0].mxu0
        %v4142 = vadd.f32 %v4005, %v4141
        %v4143 = vpop.f32.mrb[0].mxu0
        %v4144 = vpop.f32.mrb[0].mxu0
        %v4145 = vadd.f32 %v4005, %v4144
        %v4146 = vpop.f32.mrb[0].mxu0
        %4147 = vmatprep.mubr.bf16.mxu0 0
        %4148 = vmatmul.mubr.bf16.gmra.mrb[0].mxu0 %v4038
        %v4149 = vpop.f32.mrb[0].mxu0
        %v4150 = vadd.f32 %v4005, %v4149
        %v4151 = vpop.f32.mrb[0].mxu0
        %v4152 = vpop.f32.mrb[0].mxu0
        %v4153 = vadd.f32 %v4005, %v4152
        %v4154 = vpop.f32.mrb[0].mxu0
        %4155 = vmatprep.mubr.bf16.mxu0 0
        %4156 = vmatmul.mubr.bf16.gmra.mrb[0].mxu0 %v4041
        %v4157 = vpop.f32.mrb[0].mxu0
        %v4158 = vadd.f32 %v4005, %v4157
        %v4159 = vpop.f32.mrb[0].mxu0
        %v4160 = vpop.f32.mrb[0].mxu0
        %v4161 = vadd.f32 %v4005, %v4160
        %v4162 = vpop.f32.mrb[0].mxu0
        %4163 = vmatprep.mubr.bf16.mxu0 0
        %4164 = vmatmul.mubr.bf16.gmra.mrb[0].mxu0 %v4044
        %v4165 = vpop.f32.mrb[0].mxu0
        %v4166 = vadd.f32 %v4005, %v4165
        %v4167 = vpop.f32.mrb[0].mxu0
        %v4168 = vpop.f32.mrb[0].mxu0
        %v4169 = vadd.f32 %v4005, %v4168
        %v4170 = vpop.f32.mrb[0].mxu0
        %4171 = vmatprep.mubr.bf16.mxu0 0
        %4172 = vmatmul.mubr.bf16.gmra.mrb[0].mxu0 %v4047
        %v4173 = vpop.f32.mrb[0].mxu0
        %v4174 = vadd.f32 %v4005, %v4173
        %v4175 = vpop.f32.mrb[0].mxu0
        %v4176 = vpop.f32.mrb[0].mxu0
        %v4177 = vadd.f32 %v4005, %v4176
        %v4178 = vpop.f32.mrb[0].mxu0
        %4179 = vmatprep.mubr.bf16.mxu0 0
        %4180 = vmatmul.mubr.bf16.gmra.mrb[0].mxu0 %v4050
        %v4181 = vpop.f32.mrb[0].mxu0
        %v4182 = vadd.f32 %v4005, %v4181
        %v4183 = vpop.f32.mrb[0].mxu0
        %v4184 = vpop.f32.mrb[0].mxu0
        %v4185 = vadd.f32 %v4005, %v4184
        %v4186 = vpop.f32.mrb[0].mxu0
        %4187 = vmatprep.mubr.bf16.mxu0 0
        %4188 = vmatmul.mubr.bf16.gmra.mrb[0].mxu0 %v4053
        %v4189 = vpop.f32.mrb[0].mxu0
        %v4190 = vadd.f32 %v4005, %v4189
        %v4191 = vpop.f32.mrb[0].mxu0
        %v4192 = vpop.f32.mrb[0].mxu0
        %v4193 = vadd.f32 %v4005, %v4192
        %v4194 = vpop.f32.mrb[0].mxu0
        %4195 = vmatprep.mubr.bf16.mxu0 0
        %4196 = vmatmul.mubr.bf16.gmra.mrb[0].mxu0 %v4056
        %v4197 = vpop.f32.mrb[0].mxu0
        %v4198 = vadd.f32 %v4005, %v4197
        %v4199 = vpop.f32.mrb[0].mxu0
        %v4200 = vpop.f32.mrb[0].mxu0
        %v4201 = vadd.f32 %v4005, %v4200
        %v4202 = vpop.f32.mrb[0].mxu0
        %4203 = vmatprep.mubr.bf16.mxu0 0
        %4204 = vmatmul.mubr.bf16.gmra.mrb[0].mxu0 %v4059
        %v4205 = vpop.f32.mrb[0].mxu0
        %v4206 = vadd.f32 %v4005, %v4205
        %v4207 = vpop.f32.mrb[0].mxu0
        %v4208 = vpop.f32.mrb[0].mxu0
        %v4209 = vadd.f32 %v4005, %v4208
        %v4210 = vpop.f32.mrb[0].mxu0
        %4211 = vmatprep.mubr.bf16.mxu0 0
        %4212 = vmatmul.mubr.bf16.gmra.mrb[0].mxu0 %v4062
        %v4213 = vpop.f32.mrb[0].mxu0
        %v4214 = vadd.f32 %v4005, %v4213
        %v4215 = vpop.f32.mrb[0].mxu0
        %v4216 = vpop.f32.mrb[0].mxu0
        %v4217 = vadd.f32 %v4005, %v4216
        %v4218 = vpop.f32.mrb[0].mxu0
        %4219 = vmatprep.mubr.bf16.mxu0 0
        %4220 = vmatmul.mubr.bf16.gmra.mrb[0].mxu0 %v4065
        %v4221 = vpop.f32.mrb[0].mxu0
        %v4222 = vadd.f32 %v4005, %v4221
        %v4223 = vpop.f32.mrb[0].mxu0
        %v4224 = vpop.f32.mrb[0].mxu0
        %v4225 = vadd.f32 %v4005, %v4224
        %v4226 = vpop.f32.mrb[0].mxu0
        %4227 = vdwg.mxu0
        %v4228 = vadd.f32 %v4102, %v2658
        %v4229 = vadd.f32 %v4105, %v2659
        %v4230 = vadd.f32 %v4110, %v2660
        %v4231 = vadd.f32 %v4113, %v2661
        %v4232 = vadd.f32 %v4118, %v2662
        %v4233 = vadd.f32 %v4121, %v2663
        %v4234 = vadd.f32 %v4126, %v2664
        %v4235 = vadd.f32 %v4129, %v2665
        %v4236 = vadd.f32 %v4134, %v2666
        %v4237 = vadd.f32 %v4137, %v2667
        %v4238 = vadd.f32 %v4142, %v2668
        %v4239 = vadd.f32 %v4145, %v2669
        %v4240 = vadd.f32 %v4150, %v2670
        %v4241 = vadd.f32 %v4153, %v2671
        %v4242 = vadd.f32 %v4158, %v2672
        %v4243 = vadd.f32 %v4161, %v2673
        %v4244 = vadd.f32 %v4166, %v2674
        %v4245 = vadd.f32 %v4169, %v2675
        %v4246 = vadd.f32 %v4174, %v2676
        %v4247 = vadd.f32 %v4177, %v2677
        %v4248 = vadd.f32 %v4182, %v2678
        %v4249 = vadd.f32 %v4185, %v2679
        %v4250 = vadd.f32 %v4190, %v2680
        %v4251 = vadd.f32 %v4193, %v2681
        %v4252 = vadd.f32 %v4198, %v2682
        %v4253 = vadd.f32 %v4201, %v2683
        %v4254 = vadd.f32 %v4206, %v2684
        %v4255 = vadd.f32 %v4209, %v2685
        %v4256 = vadd.f32 %v4214, %v2686
        %v4257 = vadd.f32 %v4217, %v2687
        %v4258 = vadd.f32 %v4222, %v2688
        %v4259 = vadd.f32 %v4225, %v2689
        %v4260 = vmax.f32 %v4228, 0.0
        %v4261 = vmax.f32 %v4229, 0.0
        %v4262 = vmax.f32 %v4230, 0.0
        %v4263 = vmax.f32 %v4231, 0.0
        %v4264 = vmax.f32 %v4232, 0.0
        %v4265 = vmax.f32 %v4233, 0.0
        %v4266 = vmax.f32 %v4234, 0.0
        %v4267 = vmax.f32 %v4235, 0.0
        %v4268 = vmax.f32 %v4236, 0.0
        %v4269 = vmax.f32 %v4237, 0.0
        %v4270 = vmax.f32 %v4238, 0.0
        %v4271 = vmax.f32 %v4239, 0.0
        %v4272 = vmax.f32 %v4240, 0.0
        %v4273 = vmax.f32 %v4241, 0.0
        %v4274 = vmax.f32 %v4242, 0.0
        %v4275 = vmax.f32 %v4243, 0.0
        %v4276 = vmax.f32 %v4244, 0.0
        %v4277 = vmax.f32 %v4245, 0.0
        %v4278 = vmax.f32 %v4246, 0.0
        %v4279 = vmax.f32 %v4247, 0.0
        %v4280 = vmax.f32 %v4248, 0.0
        %v4281 = vmax.f32 %v4249, 0.0
        %v4282 = vmax.f32 %v4250, 0.0
        %v4283 = vmax.f32 %v4251, 0.0
        %v4284 = vmax.f32 %v4252, 0.0
        %v4285 = vmax.f32 %v4253, 0.0
        %v4286 = vmax.f32 %v4254, 0.0
        %v4287 = vmax.f32 %v4255, 0.0
        %v4288 = vmax.f32 %v4256, 0.0
        %v4289 = vmax.f32 %v4257, 0.0
        %v4290 = vmax.f32 %v4258, 0.0
        %v4291 = vmax.f32 %v4259, 0.0
        %v4292 = vpack.c.bf16 %v4261, %v4260
        %v4293 = vpack.c.bf16 %v4263, %v4262
        %v4294 = vpack.c.bf16 %v4265, %v4264
        %v4295 = vpack.c.bf16 %v4267, %v4266
        %v4296 = vpack.c.bf16 %v4269, %v4268
        %v4297 = vpack.c.bf16 %v4271, %v4270
        %v4298 = vpack.c.bf16 %v4273, %v4272
        %v4299 = vpack.c.bf16 %v4275, %v4274
        %v4300 = vpack.c.bf16 %v4277, %v4276
        %v4301 = vpack.c.bf16 %v4279, %v4278
        %v4302 = vpack.c.bf16 %v4281, %v4280
        %v4303 = vpack.c.bf16 %v4283, %v4282
        %v4304 = vpack.c.bf16 %v4285, %v4284
        %v4305 = vpack.c.bf16 %v4287, %v4286
        %v4306 = vpack.c.bf16 %v4289, %v4288
        %v4307 = vpack.c.bf16 %v4291, %v4290
        %v4308 = vld [vmem:[%s15] sm:$0xf]
        %v4309 = vld [vmem:[%s15 + $0x4] sm:$0xf]
        %v4310 = vld [vmem:[%s15 + $0x8] sm:$0xf]
        %v4311 = vld [vmem:[%s15 + $0xc] sm:$0xf]
        %v4312 = vld [vmem:[%s15 + $0x10] sm:$0xf]
        %v4313 = vld [vmem:[%s15 + $0x14] sm:$0xf]
        %v4314 = vld [vmem:[%s15 + $0x18] sm:$0xf]
        %v4315 = vld [vmem:[%s15 + $0x1c] sm:$0xf]
        %v4316 = vld [vmem:[%s15 + $0x20] sm:$0xf]
        %v4317 = vld [vmem:[%s15 + $0x24] sm:$0xf]
        %v4318 = vld [vmem:[%s15 + $0x28] sm:$0xf]
        %v4319 = vld [vmem:[%s15 + $0x2c] sm:$0xf]
        %v4320 = vld [vmem:[%s15 + $0x30] sm:$0xf]
        %v4321 = vld [vmem:[%s15 + $0x34] sm:$0xf]
        %v4322 = vld [vmem:[%s15 + $0x38] sm:$0xf]
        %v4323 = vld [vmem:[%s15 + $0x3c] sm:$0xf]
        %v4324 = vld [vmem:[%s16] sm:$0x1]
        %v4326 = vlaneseq
        %v4327 = vshrl.u32 %v4326, 7
        %v4328 = vsub.s32 0, %v4327
        %v4329 = vrot.slane %v4324, %v4328
        %v4347 = vunpack.c.l.b16 %v4308
        %v4348 = vunpack.c.l.b16 %v4309
        %v4349 = vunpack.c.l.b16 %v4310
        %v4350 = vunpack.c.l.b16 %v4311
        %v4351 = vunpack.c.l.b16 %v4312
        %v4352 = vunpack.c.l.b16 %v4313
        %v4353 = vunpack.c.l.b16 %v4314
        %v4354 = vunpack.c.l.b16 %v4315
        %v4355 = vunpack.c.l.b16 %v4316
        %v4356 = vunpack.c.l.b16 %v4317
        %v4357 = vunpack.c.l.b16 %v4318
        %v4358 = vunpack.c.l.b16 %v4319
        %v4359 = vunpack.c.l.b16 %v4320
        %v4360 = vunpack.c.l.b16 %v4321
        %v4361 = vunpack.c.l.b16 %v4322
        %v4362 = vunpack.c.l.b16 %v4323
        %v4363 = vpack.c.b16 %v4348, %v4347
        %v4364 = vpack.c.b16 %v4350, %v4349
        %v4365 = vpack.c.b16 %v4352, %v4351
        %v4366 = vpack.c.b16 %v4354, %v4353
        %v4367 = vpack.c.b16 %v4356, %v4355
        %v4368 = vpack.c.b16 %v4358, %v4357
        %v4369 = vpack.c.b16 %v4360, %v4359
        %v4370 = vpack.c.b16 %v4362, %v4361
        %4379 = vmatprep.subr.bf16.mxu0 0
        %4380 = vmatpush1.bf16.msra.mxu0 %v4363
        %4381 = vmatprep.subr.bf16.mxu0 0
        %4382 = vmatpush1.bf16.msra.mxu0 %v4364
        %4383 = vmatprep.subr.bf16.mxu0 0
        %4384 = vmatpush1.bf16.msra.mxu0 %v4365
        %4385 = vmatprep.subr.bf16.mxu0 0
        %4386 = vmatpush1.bf16.msra.mxu0 %v4366
        %4387 = vmatprep.subr.bf16.mxu0 0
        %4388 = vmatpush1.bf16.msra.mxu0 %v4367
        %4389 = vmatprep.subr.bf16.mxu0 0
        %4390 = vmatpush1.bf16.msra.mxu0 %v4368
        %4391 = vmatprep.subr.bf16.mxu0 0
        %4392 = vmatpush1.bf16.msra.mxu0 %v4369
        %4393 = vmatprep.subr.bf16.mxu0 0
        %4394 = vmatpush1.bf16.msra.mxu0 %v4370
        %4395 = vmatprep.subr.bf16.mxu0 0
        %4396 = vmatpush1.bf16.msra.mxu0 0
        %4397 = vmatprep.subr.bf16.mxu0 0
        %4398 = vmatpush1.bf16.msra.mxu0 0
        %4399 = vmatprep.subr.bf16.mxu0 0
        %4400 = vmatpush1.bf16.msra.mxu0 0
        %4401 = vmatprep.subr.bf16.mxu0 0
        %4402 = vmatpush1.bf16.msra.mxu0 0
        %4403 = vmatprep.subr.bf16.mxu0 0
        %4404 = vmatpush1.bf16.msra.mxu0 0
        %4405 = vmatprep.subr.bf16.mxu0 0
        %4406 = vmatpush1.bf16.msra.mxu0 0
        %4407 = vmatprep.subr.bf16.mxu0 0
        %4408 = vmatpush1.bf16.msra.mxu0 0
        %4409 = vmatprep.subr.bf16.mxu0 0
        %4410 = vmatpush1.bf16.msra.mxu0 0
        %4411 = vmatprep.mubr.bf16.mxu0 0
        %4412 = vmatmul.mubr.bf16.gmra.mrb[0].mxu0 %v4292
        %v4413 = vpop.f32.mrb[0].mxu0
        %v4414 = vadd.f32 %v4329, %v4413
        %v4415 = vpop.f32.mrb[0].mxu0
        %v4416 = vpop.f32.mrb[0].mxu0
        %v4417 = vadd.f32 %v4329, %v4416
        %v4418 = vpop.f32.mrb[0].mxu0
        %4419 = vmatprep.mubr.bf16.mxu0 0
        %4420 = vmatmul.mubr.bf16.gmra.mrb[0].mxu0 %v4293
        %v4421 = vpop.f32.mrb[0].mxu0
        %v4422 = vadd.f32 %v4329, %v4421
        %v4423 = vpop.f32.mrb[0].mxu0
        %v4424 = vpop.f32.mrb[0].mxu0
        %v4425 = vadd.f32 %v4329, %v4424
        %v4426 = vpop.f32.mrb[0].mxu0
        %4427 = vmatprep.mubr.bf16.mxu0 0
        %4428 = vmatmul.mubr.bf16.gmra.mrb[0].mxu0 %v4294
        %v4429 = vpop.f32.mrb[0].mxu0
        %v4430 = vadd.f32 %v4329, %v4429
        %v4431 = vpop.f32.mrb[0].mxu0
        %v4432 = vpop.f32.mrb[0].mxu0
        %v4433 = vadd.f32 %v4329, %v4432
        %v4434 = vpop.f32.mrb[0].mxu0
        %4435 = vmatprep.mubr.bf16.mxu0 0
        %4436 = vmatmul.mubr.bf16.gmra.mrb[0].mxu0 %v4295
        %v4437 = vpop.f32.mrb[0].mxu0
        %v4438 = vadd.f32 %v4329, %v4437
        %v4439 = vpop.f32.mrb[0].mxu0
        %v4440 = vpop.f32.mrb[0].mxu0
        %v4441 = vadd.f32 %v4329, %v4440
        %v4442 = vpop.f32.mrb[0].mxu0
        %4443 = vmatprep.mubr.bf16.mxu0 0
        %4444 = vmatmul.mubr.bf16.gmra.mrb[0].mxu0 %v4296
        %v4445 = vpop.f32.mrb[0].mxu0
        %v4446 = vadd.f32 %v4329, %v4445
        %v4447 = vpop.f32.mrb[0].mxu0
        %v4448 = vpop.f32.mrb[0].mxu0
        %v4449 = vadd.f32 %v4329, %v4448
        %v4450 = vpop.f32.mrb[0].mxu0
        %4451 = vmatprep.mubr.bf16.mxu0 0
        %4452 = vmatmul.mubr.bf16.gmra.mrb[0].mxu0 %v4297
        %v4453 = vpop.f32.mrb[0].mxu0
        %v4454 = vadd.f32 %v4329, %v4453
        %v4455 = vpop.f32.mrb[0].mxu0
        %v4456 = vpop.f32.mrb[0].mxu0
        %v4457 = vadd.f32 %v4329, %v4456
        %v4458 = vpop.f32.mrb[0].mxu0
        %4459 = vmatprep.mubr.bf16.mxu0 0
        %4460 = vmatmul.mubr.bf16.gmra.mrb[0].mxu0 %v4298
        %v4461 = vpop.f32.mrb[0].mxu0
        %v4462 = vadd.f32 %v4329, %v4461
        %v4463 = vpop.f32.mrb[0].mxu0
        %v4464 = vpop.f32.mrb[0].mxu0
        %v4465 = vadd.f32 %v4329, %v4464
        %v4466 = vpop.f32.mrb[0].mxu0
        %4467 = vmatprep.mubr.bf16.mxu0 0
        %4468 = vmatmul.mubr.bf16.gmra.mrb[0].mxu0 %v4299
        %v4469 = vpop.f32.mrb[0].mxu0
        %v4470 = vadd.f32 %v4329, %v4469
        %v4471 = vpop.f32.mrb[0].mxu0
        %v4472 = vpop.f32.mrb[0].mxu0
        %v4473 = vadd.f32 %v4329, %v4472
        %v4474 = vpop.f32.mrb[0].mxu0
        %4475 = vmatprep.mubr.bf16.mxu0 0
        %4476 = vmatmul.mubr.bf16.gmra.mrb[0].mxu0 %v4300
        %v4477 = vpop.f32.mrb[0].mxu0
        %v4478 = vadd.f32 %v4329, %v4477
        %v4479 = vpop.f32.mrb[0].mxu0
        %v4480 = vpop.f32.mrb[0].mxu0
        %v4481 = vadd.f32 %v4329, %v4480
        %v4482 = vpop.f32.mrb[0].mxu0
        %4483 = vmatprep.mubr.bf16.mxu0 0
        %4484 = vmatmul.mubr.bf16.gmra.mrb[0].mxu0 %v4301
        %v4485 = vpop.f32.mrb[0].mxu0
        %v4486 = vadd.f32 %v4329, %v4485
        %v4487 = vpop.f32.mrb[0].mxu0
        %v4488 = vpop.f32.mrb[0].mxu0
        %v4489 = vadd.f32 %v4329, %v4488
        %v4490 = vpop.f32.mrb[0].mxu0
        %4491 = vmatprep.mubr.bf16.mxu0 0
        %4492 = vmatmul.mubr.bf16.gmra.mrb[0].mxu0 %v4302
        %v4493 = vpop.f32.mrb[0].mxu0
        %v4494 = vadd.f32 %v4329, %v4493
        %v4495 = vpop.f32.mrb[0].mxu0
        %v4496 = vpop.f32.mrb[0].mxu0
        %v4497 = vadd.f32 %v4329, %v4496
        %v4498 = vpop.f32.mrb[0].mxu0
        %4499 = vmatprep.mubr.bf16.mxu0 0
        %4500 = vmatmul.mubr.bf16.gmra.mrb[0].mxu0 %v4303
        %v4501 = vpop.f32.mrb[0].mxu0
        %v4502 = vadd.f32 %v4329, %v4501
        %v4503 = vpop.f32.mrb[0].mxu0
        %v4504 = vpop.f32.mrb[0].mxu0
        %v4505 = vadd.f32 %v4329, %v4504
        %v4506 = vpop.f32.mrb[0].mxu0
        %4507 = vmatprep.mubr.bf16.mxu0 0
        %4508 = vmatmul.mubr.bf16.gmra.mrb[0].mxu0 %v4304
        %v4509 = vpop.f32.mrb[0].mxu0
        %v4510 = vadd.f32 %v4329, %v4509
        %v4511 = vpop.f32.mrb[0].mxu0
        %v4512 = vpop.f32.mrb[0].mxu0
        %v4513 = vadd.f32 %v4329, %v4512
        %v4514 = vpop.f32.mrb[0].mxu0
        %4515 = vmatprep.mubr.bf16.mxu0 0
        %4516 = vmatmul.mubr.bf16.gmra.mrb[0].mxu0 %v4305
        %v4517 = vpop.f32.mrb[0].mxu0
        %v4518 = vadd.f32 %v4329, %v4517
        %v4519 = vpop.f32.mrb[0].mxu0
        %v4520 = vpop.f32.mrb[0].mxu0
        %v4521 = vadd.f32 %v4329, %v4520
        %v4522 = vpop.f32.mrb[0].mxu0
        %4523 = vmatprep.mubr.bf16.mxu0 0
        %4524 = vmatmul.mubr.bf16.gmra.mrb[0].mxu0 %v4306
        %v4525 = vpop.f32.mrb[0].mxu0
        %v4526 = vadd.f32 %v4329, %v4525
        %v4527 = vpop.f32.mrb[0].mxu0
        %v4528 = vpop.f32.mrb[0].mxu0
        %v4529 = vadd.f32 %v4329, %v4528
        %v4530 = vpop.f32.mrb[0].mxu0
        %4531 = vmatprep.mubr.bf16.mxu0 0
        %4532 = vmatmul.mubr.bf16.gmra.mrb[0].mxu0 %v4307
        %v4533 = vpop.f32.mrb[0].mxu0
        %v4534 = vadd.f32 %v4329, %v4533
        %v4535 = vpop.f32.mrb[0].mxu0
        %v4536 = vpop.f32.mrb[0].mxu0
        %v4537 = vadd.f32 %v4329, %v4536
        %v4538 = vpop.f32.mrb[0].mxu0
        %4539 = vdwg.mxu0
        %v4540 = vmax.f32 %v4414, 0.0
        %v4541 = vmax.f32 %v4417, 0.0
        %v4542 = vmax.f32 %v4422, 0.0
        %v4543 = vmax.f32 %v4425, 0.0
        %v4544 = vmax.f32 %v4430, 0.0
        %v4545 = vmax.f32 %v4433, 0.0
        %v4546 = vmax.f32 %v4438, 0.0
        %v4547 = vmax.f32 %v4441, 0.0
        %v4548 = vmax.f32 %v4446, 0.0
        %v4549 = vmax.f32 %v4449, 0.0
        %v4550 = vmax.f32 %v4454, 0.0
        %v4551 = vmax.f32 %v4457, 0.0
        %v4552 = vmax.f32 %v4462, 0.0
        %v4553 = vmax.f32 %v4465, 0.0
        %v4554 = vmax.f32 %v4470, 0.0
        %v4555 = vmax.f32 %v4473, 0.0
        %v4556 = vmax.f32 %v4478, 0.0
        %v4557 = vmax.f32 %v4481, 0.0
        %v4558 = vmax.f32 %v4486, 0.0
        %v4559 = vmax.f32 %v4489, 0.0
        %v4560 = vmax.f32 %v4494, 0.0
        %v4561 = vmax.f32 %v4497, 0.0
        %v4562 = vmax.f32 %v4502, 0.0
        %v4563 = vmax.f32 %v4505, 0.0
        %v4564 = vmax.f32 %v4510, 0.0
        %v4565 = vmax.f32 %v4513, 0.0
        %v4566 = vmax.f32 %v4518, 0.0
        %v4567 = vmax.f32 %v4521, 0.0
        %v4568 = vmax.f32 %v4526, 0.0
        %v4569 = vmax.f32 %v4529, 0.0
        %v4570 = vmax.f32 %v4534, 0.0
        %v4571 = vmax.f32 %v4537, 0.0
        %v4572 = vpack.c.bf16 %v4541, %v4540
        %v4573 = vpack.c.bf16 %v4543, %v4542
        %v4574 = vpack.c.bf16 %v4545, %v4544
        %v4575 = vpack.c.bf16 %v4547, %v4546
        %v4576 = vpack.c.bf16 %v4549, %v4548
        %v4577 = vpack.c.bf16 %v4551, %v4550
        %v4578 = vpack.c.bf16 %v4553, %v4552
        %v4579 = vpack.c.bf16 %v4555, %v4554
        %v4580 = vpack.c.bf16 %v4557, %v4556
        %v4581 = vpack.c.bf16 %v4559, %v4558
        %v4582 = vpack.c.bf16 %v4561, %v4560
        %v4583 = vpack.c.bf16 %v4563, %v4562
        %v4584 = vpack.c.bf16 %v4565, %v4564
        %v4585 = vpack.c.bf16 %v4567, %v4566
        %v4586 = vpack.c.bf16 %v4569, %v4568
        %v4587 = vpack.c.bf16 %v4571, %v4570
        %4588 = vst.msk [vmem:[%s1182] sm:$0xff] %vm813, %v4572
        %4589 = vst.msk [vmem:[%s1182 + $0x8] sm:$0xff] %vm813, %v4573
        %4590 = vst.msk [vmem:[%s1182 + $0x10] sm:$0xff] %vm813, %v4574
        %4591 = vst.msk [vmem:[%s1182 + $0x18] sm:$0xff] %vm813, %v4575
        %4592 = vst.msk [vmem:[%s1182 + $0x30] sm:$0xff] %vm813, %v4576
        %4593 = vst.msk [vmem:[%s1182 + $0x38] sm:$0xff] %vm813, %v4577
        %4594 = vst.msk [vmem:[%s1182 + $0x40] sm:$0xff] %vm813, %v4578
        %4595 = vst.msk [vmem:[%s1182 + $0x48] sm:$0xff] %vm813, %v4579
        %4596 = vst.msk [vmem:[%s1182 + $0x60] sm:$0xff] %vm813, %v4580
        %4597 = vst.msk [vmem:[%s1182 + $0x68] sm:$0xff] %vm813, %v4581
        %4598 = vst.msk [vmem:[%s1182 + $0x70] sm:$0xff] %vm813, %v4582
        %4599 = vst.msk [vmem:[%s1182 + $0x78] sm:$0xff] %vm813, %v4583
        %4600 = vst.msk [vmem:[%s1182 + $0x90] sm:$0xff] %vm813, %v4584
        %4601 = vst.msk [vmem:[%s1182 + $0x98] sm:$0xff] %vm813, %v4585
        %4602 = vst.msk [vmem:[%s1182 + $0xa0] sm:$0xff] %vm813, %v4586
        %4603 = vst.msk [vmem:[%s1182 + $0xa8] sm:$0xff] %vm813, %v4587
        %v4604 = vld [vmem:[#allocation2] sm:$0xff]
        %v4605 = vld [vmem:[#allocation2 + $0x8] sm:$0xff]
        %v4606 = vld [vmem:[#allocation2 + $0x10] sm:$0xff]
        %v4607 = vld [vmem:[#allocation2 + $0x18] sm:$0xff]
        %v4608 = vld [vmem:[#allocation2 + $0x20] sm:$0xff]
        %v4609 = vld [vmem:[#allocation2 + $0x28] sm:$0xff]
        %v4610 = vld [vmem:[#allocation2 + $0x30] sm:$0xff]
        %v4611 = vld [vmem:[#allocation2 + $0x38] sm:$0xff]
        %v4612 = vld [vmem:[#allocation2 + $0x40] sm:$0xff]
        %v4613 = vld [vmem:[#allocation2 + $0x48] sm:$0xff]
        %v4614 = vld [vmem:[#allocation2 + $0x50] sm:$0xff]
        %v4615 = vld [vmem:[#allocation2 + $0x58] sm:$0xff]
        %v4616 = vld [vmem:[#allocation2 + $0x60] sm:$0xff]
        %v4617 = vld [vmem:[#allocation2 + $0x68] sm:$0xff]
        %v4618 = vld [vmem:[#allocation2 + $0x70] sm:$0xff]
        %v4619 = vld [vmem:[#allocation2 + $0x78] sm:$0xff]
        %v4620 = vld [vmem:[#allocation2 + $0x80] sm:$0xff]
        %v4621 = vld [vmem:[#allocation2 + $0x88] sm:$0xff]
        %v4622 = vld [vmem:[#allocation2 + $0x90] sm:$0xff]
        %v4623 = vld [vmem:[#allocation2 + $0x98] sm:$0xff]
        %v4624 = vld [vmem:[#allocation2 + $0xa0] sm:$0xff]
        %v4625 = vld [vmem:[#allocation2 + $0xa8] sm:$0xff]
        %v4626 = vld [vmem:[#allocation2 + $0xb0] sm:$0xff]
        %v4627 = vld [vmem:[#allocation2 + $0xb8] sm:$0xff]
        %v4628 = vld [vmem:[#allocation2 + $0xc0] sm:$0xff]
        %v4629 = vld [vmem:[#allocation2 + $0xc8] sm:$0xff]
        %v4630 = vld [vmem:[#allocation2 + $0xd0] sm:$0xff]
        %v4631 = vld [vmem:[#allocation2 + $0xd8] sm:$0xff]
        %v4632 = vld [vmem:[#allocation2 + $0xe0] sm:$0xff]
        %v4633 = vld [vmem:[#allocation2 + $0xe8] sm:$0xff]
        %v4634 = vld [vmem:[#allocation2 + $0xf0] sm:$0xff]
        %v4635 = vld [vmem:[#allocation2 + $0xf8] sm:$0xff]
        %v4636 = vld [vmem:[#allocation2 + $0x100] sm:$0xff]
        %v4637 = vld [vmem:[#allocation2 + $0x108] sm:$0xff]
        %v4638 = vld [vmem:[#allocation2 + $0x110] sm:$0xff]
        %v4639 = vld [vmem:[#allocation2 + $0x118] sm:$0xff]
        %4656 = vrot.lane.b32.xlu0 %v4605, 32
        %v4657 = vpop.permute.xlu0 %4656
        %4658 = vrot.lane.b32.xlu0 %v4606, 32
        %v4659 = vpop.permute.xlu0 %4658
        %4660 = vrot.lane.b32.xlu0 %v4607, 32
        %v4661 = vpop.permute.xlu0 %4660
        %4662 = vrot.lane.b32.xlu0 %v4608, 32
        %v4663 = vpop.permute.xlu0 %4662
        %4664 = vrot.lane.b32.xlu0 %v4611, 32
        %v4665 = vpop.permute.xlu0 %4664
        %4666 = vrot.lane.b32.xlu0 %v4612, 32
        %v4667 = vpop.permute.xlu0 %4666
        %4668 = vrot.lane.b32.xlu0 %v4613, 32
        %v4669 = vpop.permute.xlu0 %4668
        %4670 = vrot.lane.b32.xlu0 %v4614, 32
        %v4671 = vpop.permute.xlu0 %4670
        %4672 = vrot.lane.b32.xlu0 %v4617, 32
        %v4673 = vpop.permute.xlu0 %4672
        %4674 = vrot.lane.b32.xlu0 %v4618, 32
        %v4675 = vpop.permute.xlu0 %4674
        %4676 = vrot.lane.b32.xlu0 %v4619, 32
        %v4677 = vpop.permute.xlu0 %4676
        %4678 = vrot.lane.b32.xlu0 %v4620, 32
        %v4679 = vpop.permute.xlu0 %4678
        %4680 = vrot.lane.b32.xlu0 %v4623, 32
        %v4681 = vpop.permute.xlu0 %4680
        %4682 = vrot.lane.b32.xlu0 %v4624, 32
        %v4683 = vpop.permute.xlu0 %4682
        %4684 = vrot.lane.b32.xlu0 %v4625, 32
        %v4685 = vpop.permute.xlu0 %4684
        %4686 = vrot.lane.b32.xlu0 %v4626, 32
        %v4687 = vpop.permute.xlu0 %4686
        %4692 = vrot.lane.b32.xlu0 %v4606, 64
        %v4693 = vpop.permute.xlu0 %4692
        %4694 = vrot.lane.b32.xlu0 %v4607, 64
        %v4695 = vpop.permute.xlu0 %4694
        %4696 = vrot.lane.b32.xlu0 %v4608, 64
        %v4697 = vpop.permute.xlu0 %4696
        %4698 = vrot.lane.b32.xlu0 %v4609, 64
        %v4699 = vpop.permute.xlu0 %4698
        %4700 = vrot.lane.b32.xlu0 %v4612, 64
        %v4701 = vpop.permute.xlu0 %4700
        %4702 = vrot.lane.b32.xlu0 %v4613, 64
        %v4703 = vpop.permute.xlu0 %4702
        %4704 = vrot.lane.b32.xlu0 %v4614, 64
        %v4705 = vpop.permute.xlu0 %4704
        %4706 = vrot.lane.b32.xlu0 %v4615, 64
        %v4707 = vpop.permute.xlu0 %4706
        %4708 = vrot.lane.b32.xlu0 %v4618, 64
        %v4709 = vpop.permute.xlu0 %4708
        %4710 = vrot.lane.b32.xlu0 %v4619, 64
        %v4711 = vpop.permute.xlu0 %4710
        %4712 = vrot.lane.b32.xlu0 %v4620, 64
        %v4713 = vpop.permute.xlu0 %4712
        %4714 = vrot.lane.b32.xlu0 %v4621, 64
        %v4715 = vpop.permute.xlu0 %4714
        %4716 = vrot.lane.b32.xlu0 %v4624, 64
        %v4717 = vpop.permute.xlu0 %4716
        %4718 = vrot.lane.b32.xlu0 %v4625, 64
        %v4719 = vpop.permute.xlu0 %4718
        %4720 = vrot.lane.b32.xlu0 %v4626, 64
        %v4721 = vpop.permute.xlu0 %4720
        %4722 = vrot.lane.b32.xlu0 %v4627, 64
        %v4723 = vpop.permute.xlu0 %4722
        %4731 = vrot.lane.b32.xlu0 %v4610, 96
        %v4732 = vpop.permute.xlu0 %4731
        %4733 = vrot.lane.b32.xlu0 %v4611, 96
        %v4734 = vpop.permute.xlu0 %4733
        %4735 = vrot.lane.b32.xlu0 %v4612, 96
        %v4736 = vpop.permute.xlu0 %4735
        %4737 = vrot.lane.b32.xlu0 %v4613, 96
        %v4738 = vpop.permute.xlu0 %4737
        %4739 = vrot.lane.b32.xlu0 %v4616, 96
        %v4740 = vpop.permute.xlu0 %4739
        %4741 = vrot.lane.b32.xlu0 %v4617, 96
        %v4742 = vpop.permute.xlu0 %4741
        %4743 = vrot.lane.b32.xlu0 %v4618, 96
        %v4744 = vpop.permute.xlu0 %4743
        %4745 = vrot.lane.b32.xlu0 %v4619, 96
        %v4746 = vpop.permute.xlu0 %4745
        %4747 = vrot.lane.b32.xlu0 %v4622, 96
        %v4748 = vpop.permute.xlu0 %4747
        %4749 = vrot.lane.b32.xlu0 %v4623, 96
        %v4750 = vpop.permute.xlu0 %4749
        %4751 = vrot.lane.b32.xlu0 %v4624, 96
        %v4752 = vpop.permute.xlu0 %4751
        %4753 = vrot.lane.b32.xlu0 %v4625, 96
        %v4754 = vpop.permute.xlu0 %4753
        %4755 = vrot.lane.b32.xlu0 %v4628, 96
        %v4756 = vpop.permute.xlu0 %4755
        %4757 = vrot.lane.b32.xlu0 %v4629, 96
        %v4758 = vpop.permute.xlu0 %4757
        %4759 = vrot.lane.b32.xlu0 %v4630, 96
        %v4760 = vpop.permute.xlu0 %4759
        %4761 = vrot.lane.b32.xlu0 %v4631, 96
        %v4762 = vpop.permute.xlu0 %4761
        %4765 = vrot.lane.b32.xlu0 %v4615, 32
        %v4766 = vpop.permute.xlu0 %4765
        %4767 = vrot.lane.b32.xlu0 %v4621, 32
        %v4768 = vpop.permute.xlu0 %4767
        %4769 = vrot.lane.b32.xlu0 %v4627, 32
        %v4770 = vpop.permute.xlu0 %4769
        %4771 = vrot.lane.b32.xlu0 %v4630, 32
        %v4772 = vpop.permute.xlu0 %4771
        %4773 = vrot.lane.b32.xlu0 %v4631, 32
        %v4774 = vpop.permute.xlu0 %4773
        %4775 = vrot.lane.b32.xlu0 %v4632, 32
        %v4776 = vpop.permute.xlu0 %4775
        %4777 = vrot.lane.b32.xlu0 %v4633, 32
        %v4778 = vpop.permute.xlu0 %4777
        %4783 = vrot.lane.b32.xlu0 %v4616, 64
        %v4784 = vpop.permute.xlu0 %4783
        %4785 = vrot.lane.b32.xlu0 %v4617, 64
        %v4786 = vpop.permute.xlu0 %4785
        %4787 = vrot.lane.b32.xlu0 %v4622, 64
        %v4788 = vpop.permute.xlu0 %4787
        %4789 = vrot.lane.b32.xlu0 %v4623, 64
        %v4790 = vpop.permute.xlu0 %4789
        %4791 = vrot.lane.b32.xlu0 %v4628, 64
        %v4792 = vpop.permute.xlu0 %4791
        %4793 = vrot.lane.b32.xlu0 %v4629, 64
        %v4794 = vpop.permute.xlu0 %4793
        %4795 = vrot.lane.b32.xlu0 %v4630, 64
        %v4796 = vpop.permute.xlu0 %4795
        %4797 = vrot.lane.b32.xlu0 %v4631, 64
        %v4798 = vpop.permute.xlu0 %4797
        %4799 = vrot.lane.b32.xlu0 %v4634, 64
        %v4800 = vpop.permute.xlu0 %4799
        %4801 = vrot.lane.b32.xlu0 %v4635, 64
        %v4802 = vpop.permute.xlu0 %4801
        %4803 = vrot.lane.b32.xlu0 %v4636, 64
        %v4804 = vpop.permute.xlu0 %4803
        %4805 = vrot.lane.b32.xlu0 %v4637, 64
        %v4806 = vpop.permute.xlu0 %4805
        %4808 = vrot.lane.b32.xlu0 %v4620, 96
        %v4809 = vpop.permute.xlu0 %4808
        %4810 = vrot.lane.b32.xlu0 %v4626, 96
        %v4811 = vpop.permute.xlu0 %4810
        %4812 = vrot.lane.b32.xlu0 %v4632, 96
        %v4813 = vpop.permute.xlu0 %4812
        %4814 = vrot.lane.b32.xlu0 %v4635, 96
        %v4815 = vpop.permute.xlu0 %4814
        %4816 = vrot.lane.b32.xlu0 %v4636, 96
        %v4817 = vpop.permute.xlu0 %4816
        %4818 = vrot.lane.b32.xlu0 %v4637, 96
        %v4819 = vpop.permute.xlu0 %4818
        %4820 = vrot.lane.b32.xlu0 %v4638, 96
        %v4821 = vpop.permute.xlu0 %4820
        %v4824 = vsel %vm813, %v4604, %v4657
        %v4827 = vsel %vm813, %v4605, %v4659
        %v4830 = vsel %vm813, %v4606, %v4661
        %v4833 = vsel %vm813, %v4607, %v4663
        %v4836 = vsel %vm813, %v4610, %v4665
        %v4839 = vsel %vm813, %v4611, %v4667
        %v4842 = vsel %vm813, %v4612, %v4669
        %v4845 = vsel %vm813, %v4613, %v4671
        %v4848 = vsel %vm813, %v4616, %v4673
        %v4851 = vsel %vm813, %v4617, %v4675
        %v4854 = vsel %vm813, %v4618, %v4677
        %v4857 = vsel %vm813, %v4619, %v4679
        %v4860 = vsel %vm813, %v4622, %v4681
        %v4863 = vsel %vm813, %v4623, %v4683
        %v4866 = vsel %vm813, %v4624, %v4685
        %v4869 = vsel %vm813, %v4625, %v4687
        %v4871 = vsel %vm924, %v4824, %v4693
        %v4873 = vsel %vm924, %v4827, %v4695
        %v4875 = vsel %vm924, %v4830, %v4697
        %v4877 = vsel %vm924, %v4833, %v4699
        %v4879 = vsel %vm924, %v4836, %v4701
        %v4881 = vsel %vm924, %v4839, %v4703
        %v4883 = vsel %vm924, %v4842, %v4705
        %v4885 = vsel %vm924, %v4845, %v4707
        %v4887 = vsel %vm924, %v4848, %v4709
        %v4889 = vsel %vm924, %v4851, %v4711
        %v4891 = vsel %vm924, %v4854, %v4713
        %v4893 = vsel %vm924, %v4857, %v4715
        %v4895 = vsel %vm924, %v4860, %v4717
        %v4897 = vsel %vm924, %v4863, %v4719
        %v4899 = vsel %vm924, %v4866, %v4721
        %v4901 = vsel %vm924, %v4869, %v4723
        %v4903 = vsel %vm1497, %v4871, %v4732
        %v4906 = vsel %vm1497, %v4873, %v4734
        %v4909 = vsel %vm1497, %v4875, %v4736
        %v4912 = vsel %vm1497, %v4877, %v4738
        %v4915 = vsel %vm1497, %v4879, %v4740
        %v4918 = vsel %vm1497, %v4881, %v4742
        %v4921 = vsel %vm1497, %v4883, %v4744
        %v4924 = vsel %vm1497, %v4885, %v4746
        %v4927 = vsel %vm1497, %v4887, %v4748
        %v4930 = vsel %vm1497, %v4889, %v4750
        %v4933 = vsel %vm1497, %v4891, %v4752
        %v4936 = vsel %vm1497, %v4893, %v4754
        %v4939 = vsel %vm1497, %v4895, %v4756
        %v4942 = vsel %vm1497, %v4897, %v4758
        %v4945 = vsel %vm1497, %v4899, %v4760
        %v4948 = vsel %vm1497, %v4901, %v4762
        %v4952 = vsel %vm813, %v4614, %v4766
        %v4955 = vsel %vm813, %v4620, %v4768
        %v4958 = vsel %vm813, %v4626, %v4770
        %v4961 = vsel %vm813, %v4629, %v4772
        %v4964 = vsel %vm813, %v4630, %v4774
        %v4967 = vsel %vm813, %v4631, %v4776
        %v4970 = vsel %vm813, %v4632, %v4778
        %v4972 = vsel %vm924, %v4839, %v4784
        %v4974 = vsel %vm924, %v4842, %v4786
        %v4975 = vsel %vm924, %v4845, %v4709
        %v4976 = vsel %vm924, %v4952, %v4711
        %v4978 = vsel %vm924, %v4851, %v4788
        %v4980 = vsel %vm924, %v4854, %v4790
        %v4981 = vsel %vm924, %v4857, %v4717
        %v4982 = vsel %vm924, %v4955, %v4719
        %v4984 = vsel %vm924, %v4863, %v4792
        %v4986 = vsel %vm924, %v4866, %v4794
        %v4988 = vsel %vm924, %v4869, %v4796
        %v4990 = vsel %vm924, %v4958, %v4798
        %v4992 = vsel %vm924, %v4961, %v4800
        %v4994 = vsel %vm924, %v4964, %v4802
        %v4996 = vsel %vm924, %v4967, %v4804
        %v4998 = vsel %vm924, %v4970, %v4806
        %v4999 = vsel %vm1497, %v4972, %v4742
        %v5001 = vsel %vm1497, %v4974, %v4744
        %v5003 = vsel %vm1497, %v4975, %v4746
        %v5006 = vsel %vm1497, %v4976, %v4809
        %v5008 = vsel %vm1497, %v4978, %v4750
        %v5010 = vsel %vm1497, %v4980, %v4752
        %v5012 = vsel %vm1497, %v4981, %v4754
        %v5015 = vsel %vm1497, %v4982, %v4811
        %v5017 = vsel %vm1497, %v4984, %v4758
        %v5019 = vsel %vm1497, %v4986, %v4760
        %v5021 = vsel %vm1497, %v4988, %v4762
        %v5024 = vsel %vm1497, %v4990, %v4813
        %v5027 = vsel %vm1497, %v4992, %v4815
        %v5030 = vsel %vm1497, %v4994, %v4817
        %v5033 = vsel %vm1497, %v4996, %v4819
        %v5036 = vsel %vm1497, %v4998, %v4821
        %v5038 = vld [vmem:[%s17] sm:$0xf]
        %v5039 = vld [vmem:[%s17 + $0x4] sm:$0xf]
        %v5040 = vld [vmem:[%s17 + $0x8] sm:$0xf]
        %v5041 = vld [vmem:[%s17 + $0xc] sm:$0xf]
        %v5042 = vld [vmem:[%s17 + $0x10] sm:$0xf]
        %v5043 = vld [vmem:[%s17 + $0x14] sm:$0xf]
        %v5044 = vld [vmem:[%s17 + $0x18] sm:$0xf]
        %v5045 = vld [vmem:[%s17 + $0x1c] sm:$0xf]
        %v5046 = vld [vmem:[%s17 + $0x20] sm:$0xf]
        %v5047 = vld [vmem:[%s17 + $0x24] sm:$0xf]
        %v5048 = vld [vmem:[%s17 + $0x28] sm:$0xf]
        %v5049 = vld [vmem:[%s17 + $0x2c] sm:$0xf]
        %v5050 = vld [vmem:[%s17 + $0x30] sm:$0xf]
        %v5051 = vld [vmem:[%s17 + $0x34] sm:$0xf]
        %v5052 = vld [vmem:[%s17 + $0x38] sm:$0xf]
        %v5053 = vld [vmem:[%s17 + $0x3c] sm:$0xf]
        %v5054 = vld [vmem:[%s17 + $0x40] sm:$0xf]
        %v5055 = vld [vmem:[%s17 + $0x44] sm:$0xf]
        %v5056 = vld [vmem:[%s17 + $0x48] sm:$0xf]
        %v5057 = vld [vmem:[%s17 + $0x4c] sm:$0xf]
        %v5058 = vld [vmem:[%s17 + $0x50] sm:$0xf]
        %v5059 = vld [vmem:[%s17 + $0x54] sm:$0xf]
        %v5060 = vld [vmem:[%s17 + $0x58] sm:$0xf]
        %v5061 = vld [vmem:[%s17 + $0x5c] sm:$0xf]
        %v5062 = vld [vmem:[%s17 + $0x60] sm:$0xf]
        %v5063 = vld [vmem:[%s17 + $0x64] sm:$0xf]
        %v5064 = vld [vmem:[%s17 + $0x68] sm:$0xf]
        %v5065 = vld [vmem:[%s17 + $0x6c] sm:$0xf]
        %v5066 = vld [vmem:[%s17 + $0x70] sm:$0xf]
        %v5067 = vld [vmem:[%s17 + $0x74] sm:$0xf]
        %v5068 = vld [vmem:[%s17 + $0x78] sm:$0xf]
        %v5069 = vld [vmem:[%s17 + $0x7c] sm:$0xf]
        %v5070 = vld [vmem:[%s17 + $0x80] sm:$0xf]
        %v5071 = vld [vmem:[%s17 + $0x84] sm:$0xf]
        %v5072 = vld [vmem:[%s17 + $0x88] sm:$0xf]
        %v5073 = vld [vmem:[%s17 + $0x8c] sm:$0xf]
        %v5074 = vld [vmem:[%s18] sm:$0x1]
        %v5076 = vlaneseq
        %v5077 = vshrl.u32 %v5076, 7
        %v5078 = vsub.s32 0, %v5077
        %v5079 = vrot.slane %v5074, %v5078
        %v5117 = vunpack.c.l.b16 %v5038
        %v5118 = vunpack.c.l.b16 %v5039
        %v5119 = vunpack.c.l.b16 %v5040
        %v5120 = vunpack.c.l.b16 %v5041
        %v5121 = vunpack.c.l.b16 %v5042
        %v5122 = vunpack.c.l.b16 %v5043
        %v5123 = vunpack.c.l.b16 %v5044
        %v5124 = vunpack.c.l.b16 %v5045
        %v5125 = vunpack.c.l.b16 %v5046
        %v5126 = vunpack.c.l.b16 %v5047
        %v5127 = vunpack.c.l.b16 %v5048
        %v5128 = vunpack.c.l.b16 %v5049
        %v5129 = vunpack.c.l.b16 %v5050
        %v5130 = vunpack.c.l.b16 %v5051
        %v5131 = vunpack.c.l.b16 %v5052
        %v5132 = vunpack.c.l.b16 %v5053
        %v5133 = vunpack.c.l.b16 %v5054
        %v5134 = vunpack.c.l.b16 %v5055
        %v5135 = vunpack.c.l.b16 %v5056
        %v5136 = vunpack.c.l.b16 %v5057
        %v5137 = vunpack.c.l.b16 %v5058
        %v5138 = vunpack.c.l.b16 %v5059
        %v5139 = vunpack.c.l.b16 %v5060
        %v5140 = vunpack.c.l.b16 %v5061
        %v5141 = vunpack.c.l.b16 %v5062
        %v5142 = vunpack.c.l.b16 %v5063
        %v5143 = vunpack.c.l.b16 %v5064
        %v5144 = vunpack.c.l.b16 %v5065
        %v5145 = vunpack.c.l.b16 %v5066
        %v5146 = vunpack.c.l.b16 %v5067
        %v5147 = vunpack.c.l.b16 %v5068
        %v5148 = vunpack.c.l.b16 %v5069
        %v5149 = vunpack.c.l.b16 %v5070
        %v5150 = vunpack.c.l.b16 %v5071
        %v5151 = vunpack.c.l.b16 %v5072
        %v5152 = vunpack.c.l.b16 %v5073
        %v5153 = vpack.c.b16 %v5118, %v5117
        %v5154 = vpack.c.b16 %v5120, %v5119
        %v5155 = vpack.c.b16 %v5122, %v5121
        %v5156 = vpack.c.b16 %v5124, %v5123
        %v5157 = vpack.c.b16 %v5126, %v5125
        %v5158 = vpack.c.b16 %v5128, %v5127
        %v5159 = vpack.c.b16 %v5130, %v5129
        %v5160 = vpack.c.b16 %v5132, %v5131
        %v5161 = vpack.c.b16 %v5134, %v5133
        %v5162 = vpack.c.b16 %v5136, %v5135
        %v5163 = vpack.c.b16 %v5138, %v5137
        %v5164 = vpack.c.b16 %v5140, %v5139
        %v5165 = vpack.c.b16 %v5142, %v5141
        %v5166 = vpack.c.b16 %v5144, %v5143
        %v5167 = vpack.c.b16 %v5146, %v5145
        %v5168 = vpack.c.b16 %v5148, %v5147
        %v5169 = vpack.c.b16 %v5150, %v5149
        %v5170 = vpack.c.b16 %v5152, %v5151
        %v5189 = vsel %vm813, %v4618, 0
        %v5191 = vsel %vm813, %v4619, 0
        %v5193 = vsel %vm813, %v4620, 0
        %v5196 = vsel %vm813, %v4621, 0
        %v5198 = vsel %vm813, %v4624, 0
        %v5200 = vsel %vm813, %v4625, 0
        %v5202 = vsel %vm813, %v4626, 0
        %v5205 = vsel %vm813, %v4627, 0
        %v5207 = vsel %vm813, %v4630, 0
        %v5209 = vsel %vm813, %v4631, 0
        %v5211 = vsel %vm813, %v4632, 0
        %v5214 = vsel %vm813, %v4633, 0
        %v5217 = vsel %vm813, %v4636, 0
        %v5220 = vsel %vm813, %v4637, 0
        %v5223 = vsel %vm813, %v4638, 0
        %v5226 = vsel %vm813, %v4639, 0
        %5228 = vmatprep.subr.bf16.mxu0 0
        %5229 = vmatpush1.bf16.msra.mxu0 %v5153
        %5230 = vmatprep.subr.bf16.mxu0 0
        %5231 = vmatpush1.bf16.msra.mxu0 %v5154
        %5232 = vmatprep.subr.bf16.mxu0 0
        %5233 = vmatpush1.bf16.msra.mxu0 %v5155
        %5234 = vmatprep.subr.bf16.mxu0 0
        %5235 = vmatpush1.bf16.msra.mxu0 %v5156
        %5236 = vmatprep.subr.bf16.mxu0 0
        %5237 = vmatpush1.bf16.msra.mxu0 %v5157
        %5238 = vmatprep.subr.bf16.mxu0 0
        %5239 = vmatpush1.bf16.msra.mxu0 %v5158
        %5240 = vmatprep.subr.bf16.mxu0 0
        %5241 = vmatpush1.bf16.msra.mxu0 %v5159
        %5242 = vmatprep.subr.bf16.mxu0 0
        %5243 = vmatpush1.bf16.msra.mxu0 %v5160
        %5244 = vmatprep.subr.bf16.mxu0 0
        %5245 = vmatpush1.bf16.msra.mxu0 %v5161
        %5246 = vmatprep.subr.bf16.mxu0 0
        %5247 = vmatpush1.bf16.msra.mxu0 %v5162
        %5248 = vmatprep.subr.bf16.mxu0 0
        %5249 = vmatpush1.bf16.msra.mxu0 %v5163
        %5250 = vmatprep.subr.bf16.mxu0 0
        %5251 = vmatpush1.bf16.msra.mxu0 %v5164
        %5252 = vmatprep.subr.bf16.mxu0 0
        %5253 = vmatpush1.bf16.msra.mxu0 %v5165
        %5254 = vmatprep.subr.bf16.mxu0 0
        %5255 = vmatpush1.bf16.msra.mxu0 %v5166
        %5256 = vmatprep.subr.bf16.mxu0 0
        %5257 = vmatpush1.bf16.msra.mxu0 %v5167
        %5258 = vmatprep.subr.bf16.mxu0 0
        %5259 = vmatpush1.bf16.msra.mxu0 %v5168
        %5260 = vmatprep.mubr.bf16.mxu0 %v4999
        %5261 = vmatmul.mubr.bf16.gmra.mrb[0].mxu0 %v4903
        %v5262 = vpop.f32.mrb[0].mxu0
        %v5263 = vadd.f32 %v5079, %v5262
        %v5264 = vpop.f32.mrb[0].mxu0
        %v5265 = vpop.f32.mrb[0].mxu0
        %v5266 = vadd.f32 %v5079, %v5265
        %v5267 = vpop.f32.mrb[0].mxu0
        %5268 = vmatprep.mubr.bf16.mxu0 %v5001
        %5269 = vmatmul.mubr.bf16.gmra.mrb[0].mxu0 %v4906
        %v5270 = vpop.f32.mrb[0].mxu0
        %v5271 = vadd.f32 %v5079, %v5270
        %v5272 = vpop.f32.mrb[0].mxu0
        %v5273 = vpop.f32.mrb[0].mxu0
        %v5274 = vadd.f32 %v5079, %v5273
        %v5275 = vpop.f32.mrb[0].mxu0
        %5276 = vmatprep.mubr.bf16.mxu0 %v5003
        %5277 = vmatmul.mubr.bf16.gmra.mrb[0].mxu0 %v4909
        %v5278 = vpop.f32.mrb[0].mxu0
        %v5279 = vadd.f32 %v5079, %v5278
        %v5280 = vpop.f32.mrb[0].mxu0
        %v5281 = vpop.f32.mrb[0].mxu0
        %v5282 = vadd.f32 %v5079, %v5281
        %v5283 = vpop.f32.mrb[0].mxu0
        %5284 = vmatprep.mubr.bf16.mxu0 %v5006
        %5285 = vmatmul.mubr.bf16.gmra.mrb[0].mxu0 %v4912
        %v5286 = vpop.f32.mrb[0].mxu0
        %v5287 = vadd.f32 %v5079, %v5286
        %v5288 = vpop.f32.mrb[0].mxu0
        %v5289 = vpop.f32.mrb[0].mxu0
        %v5290 = vadd.f32 %v5079, %v5289
        %v5291 = vpop.f32.mrb[0].mxu0
        %5292 = vmatprep.mubr.bf16.mxu0 %v5008
        %5293 = vmatmul.mubr.bf16.gmra.mrb[0].mxu0 %v4915
        %v5294 = vpop.f32.mrb[0].mxu0
        %v5295 = vadd.f32 %v5079, %v5294
        %v5296 = vpop.f32.mrb[0].mxu0
        %v5297 = vpop.f32.mrb[0].mxu0
        %v5298 = vadd.f32 %v5079, %v5297
        %v5299 = vpop.f32.mrb[0].mxu0
        %5300 = vmatprep.mubr.bf16.mxu0 %v5010
        %5301 = vmatmul.mubr.bf16.gmra.mrb[0].mxu0 %v4918
        %v5302 = vpop.f32.mrb[0].mxu0
        %v5303 = vadd.f32 %v5079, %v5302
        %v5304 = vpop.f32.mrb[0].mxu0
        %v5305 = vpop.f32.mrb[0].mxu0
        %v5306 = vadd.f32 %v5079, %v5305
        %v5307 = vpop.f32.mrb[0].mxu0
        %5308 = vmatprep.mubr.bf16.mxu0 %v5012
        %5309 = vmatmul.mubr.bf16.gmra.mrb[0].mxu0 %v4921
        %v5310 = vpop.f32.mrb[0].mxu0
        %v5311 = vadd.f32 %v5079, %v5310
        %v5312 = vpop.f32.mrb[0].mxu0
        %v5313 = vpop.f32.mrb[0].mxu0
        %v5314 = vadd.f32 %v5079, %v5313
        %v5315 = vpop.f32.mrb[0].mxu0
        %5316 = vmatprep.mubr.bf16.mxu0 %v5015
        %5317 = vmatmul.mubr.bf16.gmra.mrb[0].mxu0 %v4924
        %v5318 = vpop.f32.mrb[0].mxu0
        %v5319 = vadd.f32 %v5079, %v5318
        %v5320 = vpop.f32.mrb[0].mxu0
        %v5321 = vpop.f32.mrb[0].mxu0
        %v5322 = vadd.f32 %v5079, %v5321
        %v5323 = vpop.f32.mrb[0].mxu0
        %5324 = vmatprep.mubr.bf16.mxu0 %v5017
        %5325 = vmatmul.mubr.bf16.gmra.mrb[0].mxu0 %v4927
        %v5326 = vpop.f32.mrb[0].mxu0
        %v5327 = vadd.f32 %v5079, %v5326
        %v5328 = vpop.f32.mrb[0].mxu0
        %v5329 = vpop.f32.mrb[0].mxu0
        %v5330 = vadd.f32 %v5079, %v5329
        %v5331 = vpop.f32.mrb[0].mxu0
        %5332 = vmatprep.mubr.bf16.mxu0 %v5019
        %5333 = vmatmul.mubr.bf16.gmra.mrb[0].mxu0 %v4930
        %v5334 = vpop.f32.mrb[0].mxu0
        %v5335 = vadd.f32 %v5079, %v5334
        %v5336 = vpop.f32.mrb[0].mxu0
        %v5337 = vpop.f32.mrb[0].mxu0
        %v5338 = vadd.f32 %v5079, %v5337
        %v5339 = vpop.f32.mrb[0].mxu0
        %5340 = vmatprep.mubr.bf16.mxu0 %v5021
        %5341 = vmatmul.mubr.bf16.gmra.mrb[0].mxu0 %v4933
        %v5342 = vpop.f32.mrb[0].mxu0
        %v5343 = vadd.f32 %v5079, %v5342
        %v5344 = vpop.f32.mrb[0].mxu0
        %v5345 = vpop.f32.mrb[0].mxu0
        %v5346 = vadd.f32 %v5079, %v5345
        %v5347 = vpop.f32.mrb[0].mxu0
        %5348 = vmatprep.mubr.bf16.mxu0 %v5024
        %5349 = vmatmul.mubr.bf16.gmra.mrb[0].mxu0 %v4936
        %v5350 = vpop.f32.mrb[0].mxu0
        %v5351 = vadd.f32 %v5079, %v5350
        %v5352 = vpop.f32.mrb[0].mxu0
        %v5353 = vpop.f32.mrb[0].mxu0
        %v5354 = vadd.f32 %v5079, %v5353
        %v5355 = vpop.f32.mrb[0].mxu0
        %5356 = vmatprep.mubr.bf16.mxu0 %v5027
        %5357 = vmatmul.mubr.bf16.gmra.mrb[0].mxu0 %v4939
        %v5358 = vpop.f32.mrb[0].mxu0
        %v5359 = vadd.f32 %v5079, %v5358
        %v5360 = vpop.f32.mrb[0].mxu0
        %v5361 = vpop.f32.mrb[0].mxu0
        %v5362 = vadd.f32 %v5079, %v5361
        %v5363 = vpop.f32.mrb[0].mxu0
        %5364 = vmatprep.mubr.bf16.mxu0 %v5030
        %5365 = vmatmul.mubr.bf16.gmra.mrb[0].mxu0 %v4942
        %v5366 = vpop.f32.mrb[0].mxu0
        %v5367 = vadd.f32 %v5079, %v5366
        %v5368 = vpop.f32.mrb[0].mxu0
        %v5369 = vpop.f32.mrb[0].mxu0
        %v5370 = vadd.f32 %v5079, %v5369
        %v5371 = vpop.f32.mrb[0].mxu0
        %5372 = vmatprep.mubr.bf16.mxu0 %v5033
        %5373 = vmatmul.mubr.bf16.gmra.mrb[0].mxu0 %v4945
        %v5374 = vpop.f32.mrb[0].mxu0
        %v5375 = vadd.f32 %v5079, %v5374
        %v5376 = vpop.f32.mrb[0].mxu0
        %v5377 = vpop.f32.mrb[0].mxu0
        %v5378 = vadd.f32 %v5079, %v5377
        %v5379 = vpop.f32.mrb[0].mxu0
        %5380 = vmatprep.mubr.bf16.mxu0 %v5036
        %5381 = vmatmul.mubr.bf16.gmra.mrb[0].mxu0 %v4948
        %v5382 = vpop.f32.mrb[0].mxu0
        %v5383 = vadd.f32 %v5079, %v5382
        %v5384 = vpop.f32.mrb[0].mxu0
        %v5385 = vpop.f32.mrb[0].mxu0
        %v5386 = vadd.f32 %v5079, %v5385
        %v5387 = vpop.f32.mrb[0].mxu0
        %5388 = vdwg.mxu0
        %5389 = vmatprep.subr.bf16.mxu0 0
        %5390 = vmatpush1.bf16.msra.mxu0 %v5169
        %5391 = vmatprep.subr.bf16.mxu0 0
        %5392 = vmatpush1.bf16.msra.mxu0 %v5170
        %5393 = vmatprep.subr.bf16.mxu0 0
        %5394 = vmatpush1.bf16.msra.mxu0 0
        %5395 = vmatprep.subr.bf16.mxu0 0
        %5396 = vmatpush1.bf16.msra.mxu0 0
        %5397 = vmatprep.subr.bf16.mxu0 0
        %5398 = vmatpush1.bf16.msra.mxu0 0
        %5399 = vmatprep.subr.bf16.mxu0 0
        %5400 = vmatpush1.bf16.msra.mxu0 0
        %5401 = vmatprep.subr.bf16.mxu0 0
        %5402 = vmatpush1.bf16.msra.mxu0 0
        %5403 = vmatprep.subr.bf16.mxu0 0
        %5404 = vmatpush1.bf16.msra.mxu0 0
        %5405 = vmatprep.subr.bf16.mxu0 0
        %5406 = vmatpush1.bf16.msra.mxu0 0
        %5407 = vmatprep.subr.bf16.mxu0 0
        %5408 = vmatpush1.bf16.msra.mxu0 0
        %5409 = vmatprep.subr.bf16.mxu0 0
        %5410 = vmatpush1.bf16.msra.mxu0 0
        %5411 = vmatprep.subr.bf16.mxu0 0
        %5412 = vmatpush1.bf16.msra.mxu0 0
        %5413 = vmatprep.subr.bf16.mxu0 0
        %5414 = vmatpush1.bf16.msra.mxu0 0
        %5415 = vmatprep.subr.bf16.mxu0 0
        %5416 = vmatpush1.bf16.msra.mxu0 0
        %5417 = vmatprep.subr.bf16.mxu0 0
        %5418 = vmatpush1.bf16.msra.mxu0 0
        %5419 = vmatprep.subr.bf16.mxu0 0
        %5420 = vmatpush1.bf16.msra.mxu0 0
        %5421 = vmatprep.mubr.bf16.mxu0 0
        %5422 = vmatmul.mubr.bf16.gmra.mrb[0].mxu0 %v5189
        %v5423 = vpop.f32.mrb[0].mxu0
        %v5424 = vadd.f32 %v5263, %v5423
        %v5425 = vpop.f32.mrb[0].mxu0
        %v5426 = vpop.f32.mrb[0].mxu0
        %v5427 = vadd.f32 %v5266, %v5426
        %v5428 = vpop.f32.mrb[0].mxu0
        %5429 = vmatprep.mubr.bf16.mxu0 0
        %5430 = vmatmul.mubr.bf16.gmra.mrb[0].mxu0 %v5191
        %v5431 = vpop.f32.mrb[0].mxu0
        %v5432 = vadd.f32 %v5271, %v5431
        %v5433 = vpop.f32.mrb[0].mxu0
        %v5434 = vpop.f32.mrb[0].mxu0
        %v5435 = vadd.f32 %v5274, %v5434
        %v5436 = vpop.f32.mrb[0].mxu0
        %5437 = vmatprep.mubr.bf16.mxu0 0
        %5438 = vmatmul.mubr.bf16.gmra.mrb[0].mxu0 %v5193
        %v5439 = vpop.f32.mrb[0].mxu0
        %v5440 = vadd.f32 %v5279, %v5439
        %v5441 = vpop.f32.mrb[0].mxu0
        %v5442 = vpop.f32.mrb[0].mxu0
        %v5443 = vadd.f32 %v5282, %v5442
        %v5444 = vpop.f32.mrb[0].mxu0
        %5445 = vmatprep.mubr.bf16.mxu0 0
        %5446 = vmatmul.mubr.bf16.gmra.mrb[0].mxu0 %v5196
        %v5447 = vpop.f32.mrb[0].mxu0
        %v5448 = vadd.f32 %v5287, %v5447
        %v5449 = vpop.f32.mrb[0].mxu0
        %v5450 = vpop.f32.mrb[0].mxu0
        %v5451 = vadd.f32 %v5290, %v5450
        %v5452 = vpop.f32.mrb[0].mxu0
        %5453 = vmatprep.mubr.bf16.mxu0 0
        %5454 = vmatmul.mubr.bf16.gmra.mrb[0].mxu0 %v5198
        %v5455 = vpop.f32.mrb[0].mxu0
        %v5456 = vadd.f32 %v5295, %v5455
        %v5457 = vpop.f32.mrb[0].mxu0
        %v5458 = vpop.f32.mrb[0].mxu0
        %v5459 = vadd.f32 %v5298, %v5458
        %v5460 = vpop.f32.mrb[0].mxu0
        %5461 = vmatprep.mubr.bf16.mxu0 0
        %5462 = vmatmul.mubr.bf16.gmra.mrb[0].mxu0 %v5200
        %v5463 = vpop.f32.mrb[0].mxu0
        %v5464 = vadd.f32 %v5303, %v5463
        %v5465 = vpop.f32.mrb[0].mxu0
        %v5466 = vpop.f32.mrb[0].mxu0
        %v5467 = vadd.f32 %v5306, %v5466
        %v5468 = vpop.f32.mrb[0].mxu0
        %5469 = vmatprep.mubr.bf16.mxu0 0
        %5470 = vmatmul.mubr.bf16.gmra.mrb[0].mxu0 %v5202
        %v5471 = vpop.f32.mrb[0].mxu0
        %v5472 = vadd.f32 %v5311, %v5471
        %v5473 = vpop.f32.mrb[0].mxu0
        %v5474 = vpop.f32.mrb[0].mxu0
        %v5475 = vadd.f32 %v5314, %v5474
        %v5476 = vpop.f32.mrb[0].mxu0
        %5477 = vmatprep.mubr.bf16.mxu0 0
        %5478 = vmatmul.mubr.bf16.gmra.mrb[0].mxu0 %v5205
        %v5479 = vpop.f32.mrb[0].mxu0
        %v5480 = vadd.f32 %v5319, %v5479
        %v5481 = vpop.f32.mrb[0].mxu0
        %v5482 = vpop.f32.mrb[0].mxu0
        %v5483 = vadd.f32 %v5322, %v5482
        %v5484 = vpop.f32.mrb[0].mxu0
        %5485 = vmatprep.mubr.bf16.mxu0 0
        %5486 = vmatmul.mubr.bf16.gmra.mrb[0].mxu0 %v5207
        %v5487 = vpop.f32.mrb[0].mxu0
        %v5488 = vadd.f32 %v5327, %v5487
        %v5489 = vpop.f32.mrb[0].mxu0
        %v5490 = vpop.f32.mrb[0].mxu0
        %v5491 = vadd.f32 %v5330, %v5490
        %v5492 = vpop.f32.mrb[0].mxu0
        %5493 = vmatprep.mubr.bf16.mxu0 0
        %5494 = vmatmul.mubr.bf16.gmra.mrb[0].mxu0 %v5209
        %v5495 = vpop.f32.mrb[0].mxu0
        %v5496 = vadd.f32 %v5335, %v5495
        %v5497 = vpop.f32.mrb[0].mxu0
        %v5498 = vpop.f32.mrb[0].mxu0
        %v5499 = vadd.f32 %v5338, %v5498
        %v5500 = vpop.f32.mrb[0].mxu0
        %5501 = vmatprep.mubr.bf16.mxu0 0
        %5502 = vmatmul.mubr.bf16.gmra.mrb[0].mxu0 %v5211
        %v5503 = vpop.f32.mrb[0].mxu0
        %v5504 = vadd.f32 %v5343, %v5503
        %v5505 = vpop.f32.mrb[0].mxu0
        %v5506 = vpop.f32.mrb[0].mxu0
        %v5507 = vadd.f32 %v5346, %v5506
        %v5508 = vpop.f32.mrb[0].mxu0
        %5509 = vmatprep.mubr.bf16.mxu0 0
        %5510 = vmatmul.mubr.bf16.gmra.mrb[0].mxu0 %v5214
        %v5511 = vpop.f32.mrb[0].mxu0
        %v5512 = vadd.f32 %v5351, %v5511
        %v5513 = vpop.f32.mrb[0].mxu0
        %v5514 = vpop.f32.mrb[0].mxu0
        %v5515 = vadd.f32 %v5354, %v5514
        %v5516 = vpop.f32.mrb[0].mxu0
        %5517 = vmatprep.mubr.bf16.mxu0 0
        %5518 = vmatmul.mubr.bf16.gmra.mrb[0].mxu0 %v5217
        %v5519 = vpop.f32.mrb[0].mxu0
        %v5520 = vadd.f32 %v5359, %v5519
        %v5521 = vpop.f32.mrb[0].mxu0
        %v5522 = vpop.f32.mrb[0].mxu0
        %v5523 = vadd.f32 %v5362, %v5522
        %v5524 = vpop.f32.mrb[0].mxu0
        %5525 = vmatprep.mubr.bf16.mxu0 0
        %5526 = vmatmul.mubr.bf16.gmra.mrb[0].mxu0 %v5220
        %v5527 = vpop.f32.mrb[0].mxu0
        %v5528 = vadd.f32 %v5367, %v5527
        %v5529 = vpop.f32.mrb[0].mxu0
        %v5530 = vpop.f32.mrb[0].mxu0
        %v5531 = vadd.f32 %v5370, %v5530
        %v5532 = vpop.f32.mrb[0].mxu0
        %5533 = vmatprep.mubr.bf16.mxu0 0
        %5534 = vmatmul.mubr.bf16.gmra.mrb[0].mxu0 %v5223
        %v5535 = vpop.f32.mrb[0].mxu0
        %v5536 = vadd.f32 %v5375, %v5535
        %v5537 = vpop.f32.mrb[0].mxu0
        %v5538 = vpop.f32.mrb[0].mxu0
        %v5539 = vadd.f32 %v5378, %v5538
        %v5540 = vpop.f32.mrb[0].mxu0
        %5541 = vmatprep.mubr.bf16.mxu0 0
        %5542 = vmatmul.mubr.bf16.gmra.mrb[0].mxu0 %v5226
        %v5543 = vpop.f32.mrb[0].mxu0
        %v5544 = vadd.f32 %v5383, %v5543
        %v5545 = vpop.f32.mrb[0].mxu0
        %v5546 = vpop.f32.mrb[0].mxu0
        %v5547 = vadd.f32 %v5386, %v5546
        %v5548 = vpop.f32.mrb[0].mxu0
        %5549 = vdwg.mxu0
        %v5550 = vmax.f32 %v5424, 0.0
        %v5551 = vmax.f32 %v5427, 0.0
        %v5552 = vmax.f32 %v5432, 0.0
        %v5553 = vmax.f32 %v5435, 0.0
        %v5554 = vmax.f32 %v5440, 0.0
        %v5555 = vmax.f32 %v5443, 0.0
        %v5556 = vmax.f32 %v5448, 0.0
        %v5557 = vmax.f32 %v5451, 0.0
        %v5558 = vmax.f32 %v5456, 0.0
        %v5559 = vmax.f32 %v5459, 0.0
        %v5560 = vmax.f32 %v5464, 0.0
        %v5561 = vmax.f32 %v5467, 0.0
        %v5562 = vmax.f32 %v5472, 0.0
        %v5563 = vmax.f32 %v5475, 0.0
        %v5564 = vmax.f32 %v5480, 0.0
        %v5565 = vmax.f32 %v5483, 0.0
        %v5566 = vmax.f32 %v5488, 0.0
        %v5567 = vmax.f32 %v5491, 0.0
        %v5568 = vmax.f32 %v5496, 0.0
        %v5569 = vmax.f32 %v5499, 0.0
        %v5570 = vmax.f32 %v5504, 0.0
        %v5571 = vmax.f32 %v5507, 0.0
        %v5572 = vmax.f32 %v5512, 0.0
        %v5573 = vmax.f32 %v5515, 0.0
        %v5574 = vmax.f32 %v5520, 0.0
        %v5575 = vmax.f32 %v5523, 0.0
        %v5576 = vmax.f32 %v5528, 0.0
        %v5577 = vmax.f32 %v5531, 0.0
        %v5578 = vmax.f32 %v5536, 0.0
        %v5579 = vmax.f32 %v5539, 0.0
        %v5580 = vmax.f32 %v5544, 0.0
        %v5581 = vmax.f32 %v5547, 0.0
        %v5582 = vpack.c.bf16 %v5551, %v5550
        %v5583 = vpack.c.bf16 %v5553, %v5552
        %v5584 = vpack.c.bf16 %v5555, %v5554
        %v5585 = vpack.c.bf16 %v5557, %v5556
        %v5586 = vpack.c.bf16 %v5559, %v5558
        %v5587 = vpack.c.bf16 %v5561, %v5560
        %v5588 = vpack.c.bf16 %v5563, %v5562
        %v5589 = vpack.c.bf16 %v5565, %v5564
        %v5590 = vpack.c.bf16 %v5567, %v5566
        %v5591 = vpack.c.bf16 %v5569, %v5568
        %v5592 = vpack.c.bf16 %v5571, %v5570
        %v5593 = vpack.c.bf16 %v5573, %v5572
        %v5594 = vpack.c.bf16 %v5575, %v5574
        %v5595 = vpack.c.bf16 %v5577, %v5576
        %v5596 = vpack.c.bf16 %v5579, %v5578
        %v5597 = vpack.c.bf16 %v5581, %v5580
        %v5598 = vld [vmem:[%s19] sm:$0xf]
        %v5599 = vld [vmem:[%s19 + $0x4] sm:$0xf]
        %v5600 = vld [vmem:[%s19 + $0x8] sm:$0xf]
        %v5601 = vld [vmem:[%s19 + $0xc] sm:$0xf]
        %v5602 = vld [vmem:[%s20] sm:$0x1]
        %v5604 = vlaneseq
        %v5605 = vshrl.u32 %v5604, 7
        %v5606 = vsub.s32 0, %v5605
        %v5607 = vrot.slane %v5602, %v5606
        %v5613 = vunpack.c.l.b16 %v5598
        %v5614 = vunpack.c.l.b16 %v5599
        %v5615 = vunpack.c.l.b16 %v5600
        %v5616 = vunpack.c.l.b16 %v5601
        %v5617 = vpack.c.b16 %v5614, %v5613
        %v5618 = vpack.c.b16 %v5616, %v5615
        %v5622 = vsel %vm813, %v5582, 0
        %v5625 = vsel %vm813, %v5583, 0
        %v5628 = vsel %vm813, %v5584, 0
        %v5631 = vsel %vm813, %v5585, 0
        %v5634 = vsel %vm813, %v5586, 0
        %v5637 = vsel %vm813, %v5587, 0
        %v5640 = vsel %vm813, %v5588, 0
        %v5643 = vsel %vm813, %v5589, 0
        %v5646 = vsel %vm813, %v5590, 0
        %v5649 = vsel %vm813, %v5591, 0
        %v5652 = vsel %vm813, %v5592, 0
        %v5655 = vsel %vm813, %v5593, 0
        %v5658 = vsel %vm813, %v5594, 0
        %v5661 = vsel %vm813, %v5595, 0
        %v5664 = vsel %vm813, %v5596, 0
        %v5667 = vsel %vm813, %v5597, 0
        %5669 = vmatprep.subr.bf16.mxu0 0
        %5670 = vmatpush1.bf16.msra.mxu0 %v5617
        %5671 = vmatprep.subr.bf16.mxu0 0
        %5672 = vmatpush1.bf16.msra.mxu0 %v5618
        %5673 = vmatprep.subr.bf16.mxu0 0
        %5674 = vmatpush1.bf16.msra.mxu0 0
        %5675 = vmatprep.subr.bf16.mxu0 0
        %5676 = vmatpush1.bf16.msra.mxu0 0
        %5677 = vmatprep.subr.bf16.mxu0 0
        %5678 = vmatpush1.bf16.msra.mxu0 0
        %5679 = vmatprep.subr.bf16.mxu0 0
        %5680 = vmatpush1.bf16.msra.mxu0 0
        %5681 = vmatprep.subr.bf16.mxu0 0
        %5682 = vmatpush1.bf16.msra.mxu0 0
        %5683 = vmatprep.subr.bf16.mxu0 0
        %5684 = vmatpush1.bf16.msra.mxu0 0
        %5685 = vmatprep.subr.bf16.mxu0 0
        %5686 = vmatpush1.bf16.msra.mxu0 0
        %5687 = vmatprep.subr.bf16.mxu0 0
        %5688 = vmatpush1.bf16.msra.mxu0 0
        %5689 = vmatprep.subr.bf16.mxu0 0
        %5690 = vmatpush1.bf16.msra.mxu0 0
        %5691 = vmatprep.subr.bf16.mxu0 0
        %5692 = vmatpush1.bf16.msra.mxu0 0
        %5693 = vmatprep.subr.bf16.mxu0 0
        %5694 = vmatpush1.bf16.msra.mxu0 0
        %5695 = vmatprep.subr.bf16.mxu0 0
        %5696 = vmatpush1.bf16.msra.mxu0 0
        %5697 = vmatprep.subr.bf16.mxu0 0
        %5698 = vmatpush1.bf16.msra.mxu0 0
        %5699 = vmatprep.subr.bf16.mxu0 0
        %5700 = vmatpush1.bf16.msra.mxu0 0
        %5701 = vmatprep.mubr.bf16.mxu0 0
        %5702 = vmatmul.mubr.bf16.gmra.mrb[0].mxu0 %v5622
        %v5703 = vpop.f32.mrb[0].mxu0
        %v5704 = vadd.f32 %v5607, %v5703
        %v5705 = vpop.f32.mrb[0].mxu0
        %v5706 = vpop.f32.mrb[0].mxu0
        %v5707 = vadd.f32 %v5607, %v5706
        %v5708 = vpop.f32.mrb[0].mxu0
        %5709 = vmatprep.mubr.bf16.mxu0 0
        %5710 = vmatmul.mubr.bf16.gmra.mrb[0].mxu0 %v5625
        %v5711 = vpop.f32.mrb[0].mxu0
        %v5712 = vadd.f32 %v5607, %v5711
        %v5713 = vpop.f32.mrb[0].mxu0
        %v5714 = vpop.f32.mrb[0].mxu0
        %v5715 = vadd.f32 %v5607, %v5714
        %v5716 = vpop.f32.mrb[0].mxu0
        %5717 = vmatprep.mubr.bf16.mxu0 0
        %5718 = vmatmul.mubr.bf16.gmra.mrb[0].mxu0 %v5628
        %v5719 = vpop.f32.mrb[0].mxu0
        %v5720 = vadd.f32 %v5607, %v5719
        %v5721 = vpop.f32.mrb[0].mxu0
        %v5722 = vpop.f32.mrb[0].mxu0
        %v5723 = vadd.f32 %v5607, %v5722
        %v5724 = vpop.f32.mrb[0].mxu0
        %5725 = vmatprep.mubr.bf16.mxu0 0
        %5726 = vmatmul.mubr.bf16.gmra.mrb[0].mxu0 %v5631
        %v5727 = vpop.f32.mrb[0].mxu0
        %v5728 = vadd.f32 %v5607, %v5727
        %v5729 = vpop.f32.mrb[0].mxu0
        %v5730 = vpop.f32.mrb[0].mxu0
        %v5731 = vadd.f32 %v5607, %v5730
        %v5732 = vpop.f32.mrb[0].mxu0
        %5733 = vmatprep.mubr.bf16.mxu0 0
        %5734 = vmatmul.mubr.bf16.gmra.mrb[0].mxu0 %v5634
        %v5735 = vpop.f32.mrb[0].mxu0
        %v5736 = vadd.f32 %v5607, %v5735
        %v5737 = vpop.f32.mrb[0].mxu0
        %v5738 = vpop.f32.mrb[0].mxu0
        %v5739 = vadd.f32 %v5607, %v5738
        %v5740 = vpop.f32.mrb[0].mxu0
        %5741 = vmatprep.mubr.bf16.mxu0 0
        %5742 = vmatmul.mubr.bf16.gmra.mrb[0].mxu0 %v5637
        %v5743 = vpop.f32.mrb[0].mxu0
        %v5744 = vadd.f32 %v5607, %v5743
        %v5745 = vpop.f32.mrb[0].mxu0
        %v5746 = vpop.f32.mrb[0].mxu0
        %v5747 = vadd.f32 %v5607, %v5746
        %v5748 = vpop.f32.mrb[0].mxu0
        %5749 = vmatprep.mubr.bf16.mxu0 0
        %5750 = vmatmul.mubr.bf16.gmra.mrb[0].mxu0 %v5640
        %v5751 = vpop.f32.mrb[0].mxu0
        %v5752 = vadd.f32 %v5607, %v5751
        %v5753 = vpop.f32.mrb[0].mxu0
        %v5754 = vpop.f32.mrb[0].mxu0
        %v5755 = vadd.f32 %v5607, %v5754
        %v5756 = vpop.f32.mrb[0].mxu0
        %5757 = vmatprep.mubr.bf16.mxu0 0
        %5758 = vmatmul.mubr.bf16.gmra.mrb[0].mxu0 %v5643
        %v5759 = vpop.f32.mrb[0].mxu0
        %v5760 = vadd.f32 %v5607, %v5759
        %v5761 = vpop.f32.mrb[0].mxu0
        %v5762 = vpop.f32.mrb[0].mxu0
        %v5763 = vadd.f32 %v5607, %v5762
        %v5764 = vpop.f32.mrb[0].mxu0
        %5765 = vmatprep.mubr.bf16.mxu0 0
        %5766 = vmatmul.mubr.bf16.gmra.mrb[0].mxu0 %v5646
        %v5767 = vpop.f32.mrb[0].mxu0
        %v5768 = vadd.f32 %v5607, %v5767
        %v5769 = vpop.f32.mrb[0].mxu0
        %v5770 = vpop.f32.mrb[0].mxu0
        %v5771 = vadd.f32 %v5607, %v5770
        %v5772 = vpop.f32.mrb[0].mxu0
        %5773 = vmatprep.mubr.bf16.mxu0 0
        %5774 = vmatmul.mubr.bf16.gmra.mrb[0].mxu0 %v5649
        %v5775 = vpop.f32.mrb[0].mxu0
        %v5776 = vadd.f32 %v5607, %v5775
        %v5777 = vpop.f32.mrb[0].mxu0
        %v5778 = vpop.f32.mrb[0].mxu0
        %v5779 = vadd.f32 %v5607, %v5778
        %v5780 = vpop.f32.mrb[0].mxu0
        %5781 = vmatprep.mubr.bf16.mxu0 0
        %5782 = vmatmul.mubr.bf16.gmra.mrb[0].mxu0 %v5652
        %v5783 = vpop.f32.mrb[0].mxu0
        %v5784 = vadd.f32 %v5607, %v5783
        %v5785 = vpop.f32.mrb[0].mxu0
        %v5786 = vpop.f32.mrb[0].mxu0
        %v5787 = vadd.f32 %v5607, %v5786
        %v5788 = vpop.f32.mrb[0].mxu0
        %5789 = vmatprep.mubr.bf16.mxu0 0
        %5790 = vmatmul.mubr.bf16.gmra.mrb[0].mxu0 %v5655
        %v5791 = vpop.f32.mrb[0].mxu0
        %v5792 = vadd.f32 %v5607, %v5791
        %v5793 = vpop.f32.mrb[0].mxu0
        %v5794 = vpop.f32.mrb[0].mxu0
        %v5795 = vadd.f32 %v5607, %v5794
        %v5796 = vpop.f32.mrb[0].mxu0
        %5797 = vmatprep.mubr.bf16.mxu0 0
        %5798 = vmatmul.mubr.bf16.gmra.mrb[0].mxu0 %v5658
        %v5799 = vpop.f32.mrb[0].mxu0
        %v5800 = vadd.f32 %v5607, %v5799
        %v5801 = vpop.f32.mrb[0].mxu0
        %v5802 = vpop.f32.mrb[0].mxu0
        %v5803 = vadd.f32 %v5607, %v5802
        %v5804 = vpop.f32.mrb[0].mxu0
        %5805 = vmatprep.mubr.bf16.mxu0 0
        %5806 = vmatmul.mubr.bf16.gmra.mrb[0].mxu0 %v5661
        %v5807 = vpop.f32.mrb[0].mxu0
        %v5808 = vadd.f32 %v5607, %v5807
        %v5809 = vpop.f32.mrb[0].mxu0
        %v5810 = vpop.f32.mrb[0].mxu0
        %v5811 = vadd.f32 %v5607, %v5810
        %v5812 = vpop.f32.mrb[0].mxu0
        %5813 = vmatprep.mubr.bf16.mxu0 0
        %5814 = vmatmul.mubr.bf16.gmra.mrb[0].mxu0 %v5664
        %v5815 = vpop.f32.mrb[0].mxu0
        %v5816 = vadd.f32 %v5607, %v5815
        %v5817 = vpop.f32.mrb[0].mxu0
        %v5818 = vpop.f32.mrb[0].mxu0
        %v5819 = vadd.f32 %v5607, %v5818
        %v5820 = vpop.f32.mrb[0].mxu0
        %5821 = vmatprep.mubr.bf16.mxu0 0
        %5822 = vmatmul.mubr.bf16.gmra.mrb[0].mxu0 %v5667
        %v5823 = vpop.f32.mrb[0].mxu0
        %v5824 = vadd.f32 %v5607, %v5823
        %v5825 = vpop.f32.mrb[0].mxu0
        %v5826 = vpop.f32.mrb[0].mxu0
        %v5827 = vadd.f32 %v5607, %v5826
        %v5828 = vpop.f32.mrb[0].mxu0
        %5829 = vdwg.mxu0
        %v5830 = vadd.f32 %v5704, %v4260
        %v5831 = vadd.f32 %v5707, %v4261
        %v5832 = vadd.f32 %v5712, %v4262
        %v5833 = vadd.f32 %v5715, %v4263
        %v5834 = vadd.f32 %v5720, %v4264
        %v5835 = vadd.f32 %v5723, %v4265
        %v5836 = vadd.f32 %v5728, %v4266
        %v5837 = vadd.f32 %v5731, %v4267
        %v5838 = vadd.f32 %v5736, %v4268
        %v5839 = vadd.f32 %v5739, %v4269
        %v5840 = vadd.f32 %v5744, %v4270
        %v5841 = vadd.f32 %v5747, %v4271
        %v5842 = vadd.f32 %v5752, %v4272
        %v5843 = vadd.f32 %v5755, %v4273
        %v5844 = vadd.f32 %v5760, %v4274
        %v5845 = vadd.f32 %v5763, %v4275
        %v5846 = vadd.f32 %v5768, %v4276
        %v5847 = vadd.f32 %v5771, %v4277
        %v5848 = vadd.f32 %v5776, %v4278
        %v5849 = vadd.f32 %v5779, %v4279
        %v5850 = vadd.f32 %v5784, %v4280
        %v5851 = vadd.f32 %v5787, %v4281
        %v5852 = vadd.f32 %v5792, %v4282
        %v5853 = vadd.f32 %v5795, %v4283
        %v5854 = vadd.f32 %v5800, %v4284
        %v5855 = vadd.f32 %v5803, %v4285
        %v5856 = vadd.f32 %v5808, %v4286
        %v5857 = vadd.f32 %v5811, %v4287
        %v5858 = vadd.f32 %v5816, %v4288
        %v5859 = vadd.f32 %v5819, %v4289
        %v5860 = vadd.f32 %v5824, %v4290
        %v5861 = vadd.f32 %v5827, %v4291
        %v5862 = vmax.f32 %v5830, 0.0
        %v5863 = vmax.f32 %v5831, 0.0
        %v5864 = vmax.f32 %v5832, 0.0
        %v5865 = vmax.f32 %v5833, 0.0
        %v5866 = vmax.f32 %v5834, 0.0
        %v5867 = vmax.f32 %v5835, 0.0
        %v5868 = vmax.f32 %v5836, 0.0
        %v5869 = vmax.f32 %v5837, 0.0
        %v5870 = vmax.f32 %v5838, 0.0
        %v5871 = vmax.f32 %v5839, 0.0
        %v5872 = vmax.f32 %v5840, 0.0
        %v5873 = vmax.f32 %v5841, 0.0
        %v5874 = vmax.f32 %v5842, 0.0
        %v5875 = vmax.f32 %v5843, 0.0
        %v5876 = vmax.f32 %v5844, 0.0
        %v5877 = vmax.f32 %v5845, 0.0
        %v5878 = vmax.f32 %v5846, 0.0
        %v5879 = vmax.f32 %v5847, 0.0
        %v5880 = vmax.f32 %v5848, 0.0
        %v5881 = vmax.f32 %v5849, 0.0
        %v5882 = vmax.f32 %v5850, 0.0
        %v5883 = vmax.f32 %v5851, 0.0
        %v5884 = vmax.f32 %v5852, 0.0
        %v5885 = vmax.f32 %v5853, 0.0
        %v5886 = vmax.f32 %v5854, 0.0
        %v5887 = vmax.f32 %v5855, 0.0
        %v5888 = vmax.f32 %v5856, 0.0
        %v5889 = vmax.f32 %v5857, 0.0
        %v5890 = vmax.f32 %v5858, 0.0
        %v5891 = vmax.f32 %v5859, 0.0
        %v5892 = vmax.f32 %v5860, 0.0
        %v5893 = vmax.f32 %v5861, 0.0
        %5894 = vst [vmem:[%s809] sm:$0xff] %v5862
        %5895 = vst [vmem:[%s809 + $0x8] sm:$0xff] %v5863
        %5896 = vst [vmem:[%s809 + $0x10] sm:$0xff] %v5864
        %5897 = vst [vmem:[%s809 + $0x18] sm:$0xff] %v5865
        %5898 = vst [vmem:[%s809 + $0x20] sm:$0xff] %v5866
        %5899 = vst [vmem:[%s809 + $0x28] sm:$0xff] %v5867
        %5900 = vst [vmem:[%s809 + $0x30] sm:$0xff] %v5868
        %5901 = vst [vmem:[%s809 + $0x38] sm:$0xff] %v5869
        %5902 = vst [vmem:[%s809 + $0x40] sm:$0xff] %v5870
        %5903 = vst [vmem:[%s809 + $0x48] sm:$0xff] %v5871
        %5904 = vst [vmem:[%s809 + $0x50] sm:$0xff] %v5872
        %5905 = vst [vmem:[%s809 + $0x58] sm:$0xff] %v5873
        %5906 = vst [vmem:[%s809 + $0x60] sm:$0xff] %v5874
        %5907 = vst [vmem:[%s809 + $0x68] sm:$0xff] %v5875
        %5908 = vst [vmem:[%s809 + $0x70] sm:$0xff] %v5876
        %5909 = vst [vmem:[%s809 + $0x78] sm:$0xff] %v5877
        %5910 = vst [vmem:[%s809 + $0x80] sm:$0xff] %v5878
        %5911 = vst [vmem:[%s809 + $0x88] sm:$0xff] %v5879
        %5912 = vst [vmem:[%s809 + $0x90] sm:$0xff] %v5880
        %5913 = vst [vmem:[%s809 + $0x98] sm:$0xff] %v5881
        %5914 = vst [vmem:[%s809 + $0xa0] sm:$0xff] %v5882
        %5915 = vst [vmem:[%s809 + $0xa8] sm:$0xff] %v5883
        %5916 = vst [vmem:[%s809 + $0xb0] sm:$0xff] %v5884
        %5917 = vst [vmem:[%s809 + $0xb8] sm:$0xff] %v5885
        %5918 = vst [vmem:[%s809 + $0xc0] sm:$0xff] %v5886
        %5919 = vst [vmem:[%s809 + $0xc8] sm:$0xff] %v5887
        %5920 = vst [vmem:[%s809 + $0xd0] sm:$0xff] %v5888
        %5921 = vst [vmem:[%s809 + $0xd8] sm:$0xff] %v5889
        %5922 = vst [vmem:[%s809 + $0xe0] sm:$0xff] %v5890
        %5923 = vst [vmem:[%s809 + $0xe8] sm:$0xff] %v5891
        %5924 = vst [vmem:[%s809 + $0xf0] sm:$0xff] %v5892
        %5925 = vst [vmem:[%s809 + $0xf8] sm:$0xff] %v5893
        %s5926 = sand.u32 %s486, 1
        %s5927 = sand.u32 %s486, 1
        %s5928 = smul.addr %s5927, 256
        %s5929 = scalar_lea.vmem [#allocation4], %s5928
        // Predicated region
        $region143: #{roi_feature_extractor.1} parent=137 // pred_check
          %p5930 = pneg %p496
        $region144: #{roi_feature_extractor.1} parent=137 // pred_check_branch
          %5932 = sbr.rel (%p5930) target = $region146
        $region145: #{roi_feature_extractor.1} parent=137 // pred_region
          %s5933 = smul.u32 2, %s32
          %s5934 = smul.addr %s5933, 8
          %s5935 = scalar_lea.vmem %s21, %s5934
          // Predicated region
          $region147: #{roi_feature_extractor.1} parent=145 // pred_check
            _
          $region148: #{roi_feature_extractor.1} parent=145 // pred_check_branch
            %5937 = sbr.rel (0) target = $region150
          $region149: #{roi_feature_extractor.1} parent=145 // pred_region
            // Predicated region
            $region151: #{roi_feature_extractor.1} parent=149 // pred_check
              _
            $region152: #{roi_feature_extractor.1} parent=149 // pred_check_branch
              %5939 = sbr.rel (0) target = $region154
            $region153: #{roi_feature_extractor.1} parent=149 // pred_region
              // Predicated region
              $region166: #{roi_feature_extractor.1} parent=153 // pred_check
                _
              $region167: #{roi_feature_extractor.1} parent=153 // pred_check_branch
                %6016 = sbr.rel (0) target = $region169
              $region168: #{roi_feature_extractor.1} parent=153 // pred_region
                loop: start=0, step=1, limit=1
                $region170: #{roi_feature_extractor.1} parent=168 // loop_pre_header
                  _
                $region171: #{roi_feature_extractor.1} parent=168 // loop_header
                  %s6018 = sphi 0, %s6022
                  %p6019 = scmp.ge.s32.totalorder %s6018, 1
                  %s6023 = sphi %s5929, %s5929
                  %s6024 = sphi %s5935, %s5935
                $region172: #{roi_feature_extractor.1} parent=168 // loop_header_branch
                  %6021 = sbr.rel (%p6019) target = $region176
                $region173: #{roi_feature_extractor.1} parent=168 // loop_body
                  %v6025 = vld [vmem:[%s6023] sm:$0xff]
                  %6026 = vst [vmem:[%s6024] sm:$0xff] %v6025
                  %v6027 = vld [vmem:[%s6023 + $0x8] sm:$0xff]
                  %6028 = vst [vmem:[%s6024 + $0x8] sm:$0xff] %v6027
                  %v6029 = vld [vmem:[%s6023 + $0x10] sm:$0xff]
                  %6030 = vst [vmem:[%s6024 + $0x20] sm:$0xff] %v6029
                  %v6031 = vld [vmem:[%s6023 + $0x18] sm:$0xff]
                  %6032 = vst [vmem:[%s6024 + $0x28] sm:$0xff] %v6031
                  %v6033 = vld [vmem:[%s6023 + $0x20] sm:$0xff]
                  %6034 = vst [vmem:[%s6024 + $0x40] sm:$0xff] %v6033
                  %v6035 = vld [vmem:[%s6023 + $0x28] sm:$0xff]
                  %6036 = vst [vmem:[%s6024 + $0x48] sm:$0xff] %v6035
                  %v6037 = vld [vmem:[%s6023 + $0x30] sm:$0xff]
                  %6038 = vst [vmem:[%s6024 + $0x60] sm:$0xff] %v6037
                  %v6039 = vld [vmem:[%s6023 + $0x38] sm:$0xff]
                  %6040 = vst [vmem:[%s6024 + $0x68] sm:$0xff] %v6039
                  %v6041 = vld [vmem:[%s6023 + $0x40] sm:$0xff]
                  %6042 = vst [vmem:[%s6024 + $0x80] sm:$0xff] %v6041
                  %v6043 = vld [vmem:[%s6023 + $0x48] sm:$0xff]
                  %6044 = vst [vmem:[%s6024 + $0x88] sm:$0xff] %v6043
                  %v6045 = vld [vmem:[%s6023 + $0x50] sm:$0xff]
                  %6046 = vst [vmem:[%s6024 + $0xa0] sm:$0xff] %v6045
                  %v6047 = vld [vmem:[%s6023 + $0x58] sm:$0xff]
                  %6048 = vst [vmem:[%s6024 + $0xa8] sm:$0xff] %v6047
                  %v6049 = vld [vmem:[%s6023 + $0x60] sm:$0xff]
                  %6050 = vst [vmem:[%s6024 + $0xc0] sm:$0xff] %v6049
                  %v6051 = vld [vmem:[%s6023 + $0x68] sm:$0xff]
                  %6052 = vst [vmem:[%s6024 + $0xc8] sm:$0xff] %v6051
                  %v6053 = vld [vmem:[%s6023 + $0x70] sm:$0xff]
                  %6054 = vst [vmem:[%s6024 + $0xe0] sm:$0xff] %v6053
                  %v6055 = vld [vmem:[%s6023 + $0x78] sm:$0xff]
                  %6056 = vst [vmem:[%s6024 + $0xe8] sm:$0xff] %v6055
                  %v6057 = vld [vmem:[%s6023 + $0x80] sm:$0xff]
                  %6058 = vst [vmem:[%s6024 + $0x100] sm:$0xff] %v6057
                  %v6059 = vld [vmem:[%s6023 + $0x88] sm:$0xff]
                  %6060 = vst [vmem:[%s6024 + $0x108] sm:$0xff] %v6059
                  %v6061 = vld [vmem:[%s6023 + $0x90] sm:$0xff]
                  %6062 = vst [vmem:[%s6024 + $0x120] sm:$0xff] %v6061
                  %v6063 = vld [vmem:[%s6023 + $0x98] sm:$0xff]
                  %6064 = vst [vmem:[%s6024 + $0x128] sm:$0xff] %v6063
                  %v6065 = vld [vmem:[%s6023 + $0xa0] sm:$0xff]
                  %6066 = vst [vmem:[%s6024 + $0x140] sm:$0xff] %v6065
                  %v6067 = vld [vmem:[%s6023 + $0xa8] sm:$0xff]
                  %6068 = vst [vmem:[%s6024 + $0x148] sm:$0xff] %v6067
                  %v6069 = vld [vmem:[%s6023 + $0xb0] sm:$0xff]
                  %6070 = vst [vmem:[%s6024 + $0x160] sm:$0xff] %v6069
                  %v6071 = vld [vmem:[%s6023 + $0xb8] sm:$0xff]
                  %6072 = vst [vmem:[%s6024 + $0x168] sm:$0xff] %v6071
                  %v6073 = vld [vmem:[%s6023 + $0xc0] sm:$0xff]
                  %6074 = vst [vmem:[%s6024 + $0x180] sm:$0xff] %v6073
                  %v6075 = vld [vmem:[%s6023 + $0xc8] sm:$0xff]
                  %6076 = vst [vmem:[%s6024 + $0x188] sm:$0xff] %v6075
                  %v6077 = vld [vmem:[%s6023 + $0xd0] sm:$0xff]
                  %6078 = vst [vmem:[%s6024 + $0x1a0] sm:$0xff] %v6077
                  %v6079 = vld [vmem:[%s6023 + $0xd8] sm:$0xff]
                  %6080 = vst [vmem:[%s6024 + $0x1a8] sm:$0xff] %v6079
                  %v6081 = vld [vmem:[%s6023 + $0xe0] sm:$0xff]
                  %6082 = vst [vmem:[%s6024 + $0x1c0] sm:$0xff] %v6081
                  %v6083 = vld [vmem:[%s6023 + $0xe8] sm:$0xff]
                  %6084 = vst [vmem:[%s6024 + $0x1c8] sm:$0xff] %v6083
                  %v6085 = vld [vmem:[%s6023 + $0xf0] sm:$0xff]
                  %6086 = vst [vmem:[%s6024 + $0x1e0] sm:$0xff] %v6085
                  %v6087 = vld [vmem:[%s6023 + $0xf8] sm:$0xff]
                  %6088 = vst [vmem:[%s6024 + $0x1e8] sm:$0xff] %v6087
                $region174: #{roi_feature_extractor.1} parent=168 // loop_footer
                  %s6022 = sadd.s32 1, %s6018
                $region175: #{roi_feature_extractor.1} parent=168 // loop_footer_branch
                  %6017 = sbr.rel target = $region171
                $region176: #{roi_feature_extractor.1} parent=168 // loop_exit
                  _
              $region169: #{roi_feature_extractor.1} parent=153 // pred_fallthru
                _
              // Predicated region
              $region177: #{roi_feature_extractor.1} parent=153 // pred_check
                _
              $region178: #{roi_feature_extractor.1} parent=153 // pred_check_branch
                %6090 = sbr.rel target = $region180
              $region179: #{roi_feature_extractor.1} parent=153 // pred_region
                _
              $region180: #{roi_feature_extractor.1} parent=153 // pred_fallthru
                _
            $region154: #{roi_feature_extractor.1} parent=149 // pred_fallthru
              _
            // Predicated region
            $region155: #{roi_feature_extractor.1} parent=149 // pred_check
              _
            $region156: #{roi_feature_extractor.1} parent=149 // pred_check_branch
              %5941 = sbr.rel target = $region158
            $region157: #{roi_feature_extractor.1} parent=149 // pred_region
              loop: start=0, step=1, limit=1
              $region159: #{roi_feature_extractor.1} parent=157 // loop_pre_header
                _
              $region160: #{roi_feature_extractor.1} parent=157 // loop_header
                %s5944 = sphi 0, %s5948
                %p5945 = scmp.ge.s32.totalorder %s5944, 1
                %s5949 = sphi %s5929, %s5929
                %s5950 = sphi %s5935, %s5935
              $region161: #{roi_feature_extractor.1} parent=157 // loop_header_branch
                %5947 = sbr.rel (%p5945) target = $region165
              $region162: #{roi_feature_extractor.1} parent=157 // loop_body
                %v5951 = vld [vmem:[%s5949] sm:$0xff]
                %5952 = vst [vmem:[%s5950] sm:$0xff] %v5951
                %v5953 = vld [vmem:[%s5949 + $0x8] sm:$0xff]
                %5954 = vst [vmem:[%s5950 + $0x8] sm:$0xff] %v5953
                %v5955 = vld [vmem:[%s5949 + $0x10] sm:$0xff]
                %5956 = vst [vmem:[%s5950 + $0x20] sm:$0xff] %v5955
                %v5957 = vld [vmem:[%s5949 + $0x18] sm:$0xff]
                %5958 = vst [vmem:[%s5950 + $0x28] sm:$0xff] %v5957
                %v5959 = vld [vmem:[%s5949 + $0x20] sm:$0xff]
                %5960 = vst [vmem:[%s5950 + $0x40] sm:$0xff] %v5959
                %v5961 = vld [vmem:[%s5949 + $0x28] sm:$0xff]
                %5962 = vst [vmem:[%s5950 + $0x48] sm:$0xff] %v5961
                %v5963 = vld [vmem:[%s5949 + $0x30] sm:$0xff]
                %5964 = vst [vmem:[%s5950 + $0x60] sm:$0xff] %v5963
                %v5965 = vld [vmem:[%s5949 + $0x38] sm:$0xff]
                %5966 = vst [vmem:[%s5950 + $0x68] sm:$0xff] %v5965
                %v5967 = vld [vmem:[%s5949 + $0x40] sm:$0xff]
                %5968 = vst [vmem:[%s5950 + $0x80] sm:$0xff] %v5967
                %v5969 = vld [vmem:[%s5949 + $0x48] sm:$0xff]
                %5970 = vst [vmem:[%s5950 + $0x88] sm:$0xff] %v5969
                %v5971 = vld [vmem:[%s5949 + $0x50] sm:$0xff]
                %5972 = vst [vmem:[%s5950 + $0xa0] sm:$0xff] %v5971
                %v5973 = vld [vmem:[%s5949 + $0x58] sm:$0xff]
                %5974 = vst [vmem:[%s5950 + $0xa8] sm:$0xff] %v5973
                %v5975 = vld [vmem:[%s5949 + $0x60] sm:$0xff]
                %5976 = vst [vmem:[%s5950 + $0xc0] sm:$0xff] %v5975
                %v5977 = vld [vmem:[%s5949 + $0x68] sm:$0xff]
                %5978 = vst [vmem:[%s5950 + $0xc8] sm:$0xff] %v5977
                %v5979 = vld [vmem:[%s5949 + $0x70] sm:$0xff]
                %5980 = vst [vmem:[%s5950 + $0xe0] sm:$0xff] %v5979
                %v5981 = vld [vmem:[%s5949 + $0x78] sm:$0xff]
                %5982 = vst [vmem:[%s5950 + $0xe8] sm:$0xff] %v5981
                %v5983 = vld [vmem:[%s5949 + $0x80] sm:$0xff]
                %5984 = vst [vmem:[%s5950 + $0x100] sm:$0xff] %v5983
                %v5985 = vld [vmem:[%s5949 + $0x88] sm:$0xff]
                %5986 = vst [vmem:[%s5950 + $0x108] sm:$0xff] %v5985
                %v5987 = vld [vmem:[%s5949 + $0x90] sm:$0xff]
                %5988 = vst [vmem:[%s5950 + $0x120] sm:$0xff] %v5987
                %v5989 = vld [vmem:[%s5949 + $0x98] sm:$0xff]
                %5990 = vst [vmem:[%s5950 + $0x128] sm:$0xff] %v5989
                %v5991 = vld [vmem:[%s5949 + $0xa0] sm:$0xff]
                %5992 = vst [vmem:[%s5950 + $0x140] sm:$0xff] %v5991
                %v5993 = vld [vmem:[%s5949 + $0xa8] sm:$0xff]
                %5994 = vst [vmem:[%s5950 + $0x148] sm:$0xff] %v5993
                %v5995 = vld [vmem:[%s5949 + $0xb0] sm:$0xff]
                %5996 = vst [vmem:[%s5950 + $0x160] sm:$0xff] %v5995
                %v5997 = vld [vmem:[%s5949 + $0xb8] sm:$0xff]
                %5998 = vst [vmem:[%s5950 + $0x168] sm:$0xff] %v5997
                %v5999 = vld [vmem:[%s5949 + $0xc0] sm:$0xff]
                %6000 = vst [vmem:[%s5950 + $0x180] sm:$0xff] %v5999
                %v6001 = vld [vmem:[%s5949 + $0xc8] sm:$0xff]
                %6002 = vst [vmem:[%s5950 + $0x188] sm:$0xff] %v6001
                %v6003 = vld [vmem:[%s5949 + $0xd0] sm:$0xff]
                %6004 = vst [vmem:[%s5950 + $0x1a0] sm:$0xff] %v6003
                %v6005 = vld [vmem:[%s5949 + $0xd8] sm:$0xff]
                %6006 = vst [vmem:[%s5950 + $0x1a8] sm:$0xff] %v6005
                %v6007 = vld [vmem:[%s5949 + $0xe0] sm:$0xff]
                %6008 = vst [vmem:[%s5950 + $0x1c0] sm:$0xff] %v6007
                %v6009 = vld [vmem:[%s5949 + $0xe8] sm:$0xff]
                %6010 = vst [vmem:[%s5950 + $0x1c8] sm:$0xff] %v6009
                %v6011 = vld [vmem:[%s5949 + $0xf0] sm:$0xff]
                %6012 = vst [vmem:[%s5950 + $0x1e0] sm:$0xff] %v6011
                %v6013 = vld [vmem:[%s5949 + $0xf8] sm:$0xff]
                %6014 = vst [vmem:[%s5950 + $0x1e8] sm:$0xff] %v6013
              $region163: #{roi_feature_extractor.1} parent=157 // loop_footer
                %s5948 = sadd.s32 1, %s5944
              $region164: #{roi_feature_extractor.1} parent=157 // loop_footer_branch
                %5943 = sbr.rel target = $region160
              $region165: #{roi_feature_extractor.1} parent=157 // loop_exit
                _
            $region158: #{roi_feature_extractor.1} parent=149 // pred_fallthru
              _
          $region150: #{roi_feature_extractor.1} parent=145 // pred_fallthru
            _
          %6091 = vnop
        $region146: #{roi_feature_extractor.1} parent=137 // pred_fallthru
          _
      $region138: #{roi_feature_extractor.1} parent=5 // pred_fallthru
        _
      %p6092 = scmp.le.s32.totalorder 2, %s27
      // Predicated region
      $region181: #{roi_feature_extractor.1} parent=5 // pred_check
        %p6093 = pneg %p6092
      $region182: #{roi_feature_extractor.1} parent=5 // pred_check_branch
        %6095 = sbr.rel (%p6093) target = $region184
      $region183: #{roi_feature_extractor.1} parent=5 // pred_region
        %s6096 = ssub.s32 %s27, 2
        // Predicated region
        $region185: #{roi_feature_extractor.1} parent=183 // pred_check
          %p6097 = pneg %p502
        $region186: #{roi_feature_extractor.1} parent=183 // pred_check_branch
          %6099 = sbr.rel (%p6097) target = $region188
        $region187: #{roi_feature_extractor.1} parent=183 // pred_region
          %s6100 = sand.u32 %s487, 1
          %s6101 = sand.u32 %s487, 1
          %s6102 = smul.addr %s6101, 256
          %s6103 = scalar_lea.vmem [#allocation4], %s6102
        $region188: #{roi_feature_extractor.1} parent=183 // pred_fallthru
          _
      $region184: #{roi_feature_extractor.1} parent=5 // pred_fallthru
        _
    $region6: #{roi_feature_extractor.1} parent=1 // loop_footer
      %s31 = sadd.s32 1, %s27
    $region7: #{roi_feature_extractor.1} parent=1 // loop_footer_branch
      %26 = sbr.rel target = $region3
    $region8: #{roi_feature_extractor.1} parent=1 // loop_exit
      _

</llo_original>
